<compile_context>
chip_gen: v6e
topology: v6e:2x2x1
jax: 0.10.0
libtpu: 0.0.40
codegen_flags: <defaults>
</compile_context>

<pallas_src>
import functools

import jax
import jax.numpy as jnp
from jax import lax
from jax.experimental import pallas as pl
from jax.experimental.pallas import tpu as pltpu

_LN_EPS = 1e-5  # torch.nn.LayerNorm default


def _gelu(x):
    # TODO(synk): PyTorch nn.GELU() defaults to the exact erf form; the tanh
    # approximation is used here (Mosaic-safe transcendental, ~1e-3 rel diff).
    c = 0.7978845608028654  # sqrt(2/pi)
    return 0.5 * x * (1.0 + jnp.tanh(c * (x + 0.044715 * x * x * x)))


def _layernorm(x, w, b, eps):
    mu = jnp.mean(x, axis=-1, keepdims=True)
    xc = x - mu
    var = jnp.mean(xc * xc, axis=-1, keepdims=True)
    return xc * (lax.rsqrt(var + eps) * w) + b


def _linear(x, w_ref, b_ref=None):
    """y = x @ W^T (+ b), W stored PyTorch-style as (out_features, in_features)."""
    y = lax.dot_general(x, w_ref[...].astype(jnp.float32),
                        (((1,), (1,)), ((), ())),
                        preferred_element_type=jnp.float32)
    if b_ref is not None:
        y = y + b_ref[...].astype(jnp.float32)
    return y


def _encoder_block_kernel(x_ref, pos_ref,
                          ln1w_ref, ln1b_ref, wqkv_ref, wproj_ref, bproj_ref,
                          ln2w_ref, ln2b_ref, wfc1_ref, bfc1_ref, wfc2_ref,
                          bfc2_ref,
                          out_ref, carry_ref, *, num_heads, head_dim):
    f32 = jnp.float32
    d = pl.program_id(1)
    Bb, N, C = out_ref.shape
    scale = head_dim ** -0.5

    # Residual stream lives in a VMEM scratch across the depth grid axis.
    @pl.when(d == 0)
    def _():
        carry_ref[...] = x_ref[...].astype(f32)

    # x = block(x + pos): pos is re-added before every block.
    xp = carry_ref[...] + pos_ref[...].astype(f32)                # (Bb, N, C)
    x2d = xp.reshape(Bb * N, C)                                   # tokens x channels

    # ---------------- attention branch ---------------------------------------
    a = _layernorm(x2d, ln1w_ref[...].astype(f32), ln1b_ref[...].astype(f32),
                   _LN_EPS)
    # qkv weight rows are [Wq; Wk; Wv] (each (C, C)); slice at the ref level
    # (sublane-aligned view, no copy) instead of lane-slicing a (.., 3C) activation.
    q = _linear(a, wqkv_ref.at[0 * C:1 * C, :]).reshape(Bb, N, C)
    k = _linear(a, wqkv_ref.at[1 * C:2 * C, :]).reshape(Bb, N, C)
    v = _linear(a, wqkv_ref.at[2 * C:3 * C, :]).reshape(Bb, N, C)

    head_outs = []
    for h in range(num_heads):                                    # static, unrolled
        sl = slice(h * head_dim, (h + 1) * head_dim)
        qh, kh, vh = q[:, :, sl], k[:, :, sl], v[:, :, sl]        # (Bb, N, hd)
        s = jnp.einsum('bqd,bkd->bqk', qh, kh,
                       preferred_element_type=f32) * scale        # (Bb, N, N)
        s = s - jnp.max(s, axis=-1, keepdims=True)                # XLU reduce
        p = jnp.exp(s)                                            # EUP
        inv = pl.reciprocal(jnp.sum(p, axis=-1, keepdims=True),
                            approx=True)                          # EUP vrcp
        p = p * inv                                               # softmax
        head_outs.append(jnp.einsum('bqk,bkd->bqd', p, vh,
                                    preferred_element_type=f32))
    attn = jnp.concatenate(head_outs, axis=-1).reshape(Bb * N, C)
    attn = _linear(attn, wproj_ref, bproj_ref)
    x2d = x2d + attn                                              # residual 1

    # ---------------- MLP branch ----------------------------------------------
    a2 = _layernorm(x2d, ln2w_ref[...].astype(f32), ln2b_ref[...].astype(f32),
                    _LN_EPS)
    h1 = _gelu(_linear(a2, wfc1_ref, bfc1_ref))
    x2d = x2d + _linear(h1, wfc2_ref, bfc2_ref)                   # residual 2

    res = x2d.reshape(Bb, N, C)
    carry_ref[...] = res

    # Output block index is constant along the depth axis, so HBM writeback only
    # happens once per batch block (after the last depth iteration).
    @pl.when(d == pl.num_programs(1) - 1)
    def _():
        out_ref[...] = res.astype(out_ref.dtype)


def transformer_encoder_forward(x, pos, params, *, num_heads, batch_block=None):
    """x, pos: [B, N, C].  params: dict of depth-stacked per-block weights."""
    B, N, C = x.shape
    depth = params["w_qkv"].shape[0]
    Hm = params["w_fc1"].shape[1]
    assert C % num_heads == 0
    head_dim = C // num_heads
    Bb = batch_block or B
    assert B % Bb == 0

    kernel = functools.partial(_encoder_block_kernel,
                               num_heads=num_heads, head_dim=head_dim)

    xmap = lambda b, d: (b, 0, 0)     # activations: one batch block, full (N, C)
    wmap = lambda b, d: (d, 0, 0)     # weights: stream block d's slice

    return pl.pallas_call(
        kernel,
        out_shape=jax.ShapeDtypeStruct((B, N, C), x.dtype),
        grid_spec=pltpu.PrefetchScalarGridSpec(
            num_scalar_prefetch=0,
            grid=(B // Bb, depth),
            in_specs=[
                pl.BlockSpec((Bb, N, C), xmap),          # x
                pl.BlockSpec((Bb, N, C), xmap),          # pos
                pl.BlockSpec((None, 1, C), wmap),        # ln1_w
                pl.BlockSpec((None, 1, C), wmap),        # ln1_b
                pl.BlockSpec((None, 3 * C, C), wmap),    # w_qkv  (no bias: qkv_bias=False)
                pl.BlockSpec((None, C, C), wmap),        # w_proj
                pl.BlockSpec((None, 1, C), wmap),        # b_proj
                pl.BlockSpec((None, 1, C), wmap),        # ln2_w
                pl.BlockSpec((None, 1, C), wmap),        # ln2_b
                pl.BlockSpec((None, Hm, C), wmap),       # w_fc1
                pl.BlockSpec((None, 1, Hm), wmap),       # b_fc1
                pl.BlockSpec((None, C, Hm), wmap),       # w_fc2
                pl.BlockSpec((None, 1, C), wmap),        # b_fc2
            ],
            out_specs=pl.BlockSpec((Bb, N, C), xmap),
            scratch_shapes=[pltpu.VMEM((Bb, N, C), jnp.float32)],
        ),
        compiler_params=pltpu.CompilerParams(
            dimension_semantics=("parallel", "arbitrary")),
    )(x, pos,
      params["ln1_w"], params["ln1_b"], params["w_qkv"],
      params["w_proj"], params["b_proj"], params["ln2_w"], params["ln2_b"],
      params["w_fc1"], params["b_fc1"], params["w_fc2"], params["b_fc2"])


def _reference_forward(x, pos, params, num_heads):
    """Pure-JAX reference mirroring the PyTorch TransformerEncoder forward."""
    B, N, C = x.shape
    depth = params["w_qkv"].shape[0]
    hd = C // num_heads
    scale = hd ** -0.5

    def ln(v, w, b):
        mu = v.mean(-1, keepdims=True)
        var = ((v - mu) ** 2).mean(-1, keepdims=True)
        return (v - mu) / jnp.sqrt(var + _LN_EPS) * w + b

    cur = x
    for d in range(depth):
        xp = cur + pos
        a = ln(xp, params["ln1_w"][d, 0], params["ln1_b"][d, 0])
        qkv = a @ params["w_qkv"][d].T
        qkv = qkv.reshape(B, N, 3, num_heads, hd).transpose(2, 0, 3, 1, 4)
        q, k, v = qkv[0], qkv[1], qkv[2]                         # (B, H, N, hd)
        attn = jax.nn.softmax(q @ jnp.swapaxes(k, -1, -2) * scale, axis=-1)
        o = (attn @ v).transpose(0, 2, 1, 3).reshape(B, N, C)
        o = o @ params["w_proj"][d].T + params["b_proj"][d, 0]
        xp = xp + o
        a2 = ln(xp, params["ln2_w"][d, 0], params["ln2_b"][d, 0])
        h = _gelu(a2 @ params["w_fc1"][d].T + params["b_fc1"][d, 0])
        cur = xp + (h @ params["w_fc2"][d].T + params["b_fc2"][d, 0])
    return cur


if __name__ == "__main__":
    key = jax.random.PRNGKey(0)
    B, N, C = 2, 8, 32            # batch, tokens (patches + pos), embed_dim
    num_heads, depth = 4, 2
    Hm = int(C * 4.0)             # mlp_ratio = 4.0

    ks = jax.random.split(key, 14)
    x = jax.random.normal(ks[0], (B, N, C), jnp.float32)
    pos = jax.random.normal(ks[1], (B, N, C), jnp.float32)

    def w(k, shape, s=0.05):
        return s * jax.random.normal(k, shape, jnp.float32)

    params = dict(
        ln1_w=1.0 + w(ks[2], (depth, 1, C)),
        ln1_b=w(ks[3], (depth, 1, C)),
        w_qkv=w(ks[4], (depth, 3 * C, C)),
        w_proj=w(ks[5], (depth, C, C)),
        b_proj=w(ks[6], (depth, 1, C)),
        ln2_w=1.0 + w(ks[7], (depth, 1, C)),
        ln2_b=w(ks[8], (depth, 1, C)),
        w_fc1=w(ks[9], (depth, Hm, C)),
        b_fc1=w(ks[10], (depth, 1, Hm)),
        w_fc2=w(ks[11], (depth, C, Hm)),
        b_fc2=w(ks[12], (depth, 1, C)),
    )

    fwd = jax.jit(functools.partial(transformer_encoder_forward,
                                    num_heads=num_heads))
    out = fwd(x, pos, params)
    jax.block_until_ready(out)

    assert out.shape == (B, N, C)
    assert bool(jnp.all(jnp.isfinite(out)))

    ref = _reference_forward(x, pos, params, num_heads)
    err = float(jnp.max(jnp.abs(out - ref)))
    assert err < 5e-2, f"max abs err vs reference: {err}"

    print("KERNEL_OK")
</pallas_src>

<mosaic_0001>
module attributes {stable_mosaic.version = 11 : i64} {
  func.func @_encoder_block_kernel(%arg0: i32, %arg1: i32, %arg2: memref<2x8x32xf32, #tpu.memory_space<vmem>>, %arg3: memref<2x8x32xf32, #tpu.memory_space<vmem>>, %arg4: memref<1x1x32xf32, #tpu.memory_space<vmem>>, %arg5: memref<1x1x32xf32, #tpu.memory_space<vmem>>, %arg6: memref<1x96x32xf32, #tpu.memory_space<vmem>>, %arg7: memref<1x32x32xf32, #tpu.memory_space<vmem>>, %arg8: memref<1x1x32xf32, #tpu.memory_space<vmem>>, %arg9: memref<1x1x32xf32, #tpu.memory_space<vmem>>, %arg10: memref<1x1x32xf32, #tpu.memory_space<vmem>>, %arg11: memref<1x128x32xf32, #tpu.memory_space<vmem>>, %arg12: memref<1x1x128xf32, #tpu.memory_space<vmem>>, %arg13: memref<1x32x128xf32, #tpu.memory_space<vmem>>, %arg14: memref<1x1x32xf32, #tpu.memory_space<vmem>>, %arg15: memref<2x8x32xf32, #tpu.memory_space<vmem>>, %arg16: memref<2x8x32xf32, #tpu.memory_space<vmem>>) attributes {dimension_semantics = [#tpu.dimension_semantics<parallel>, #tpu.dimension_semantics<arbitrary>], iteration_bounds = array<i64: 1, 2>, scalar_prefetch = 0 : i64, scratch_operands = 1 : i64, tpu.core_type = #tpu.core_type<tc>, window_params = [{transform_indices = @transform_0, window_bounds = array<i64: 2, 8, 32>}, {transform_indices = @transform_1, window_bounds = array<i64: 2, 8, 32>}, {transform_indices = @transform_2, window_bounds = array<i64: 1, 1, 32>}, {transform_indices = @transform_3, window_bounds = array<i64: 1, 1, 32>}, {transform_indices = @transform_4, window_bounds = array<i64: 1, 96, 32>}, {transform_indices = @transform_5, window_bounds = array<i64: 1, 32, 32>}, {transform_indices = @transform_6, window_bounds = array<i64: 1, 1, 32>}, {transform_indices = @transform_7, window_bounds = array<i64: 1, 1, 32>}, {transform_indices = @transform_8, window_bounds = array<i64: 1, 1, 32>}, {transform_indices = @transform_9, window_bounds = array<i64: 1, 128, 32>}, {transform_indices = @transform_10, window_bounds = array<i64: 1, 1, 128>}, {transform_indices = @transform_11, window_bounds = array<i64: 1, 32, 128>}, {transform_indices = @transform_12, window_bounds = array<i64: 1, 1, 32>}, {transform_indices = @transform_13, window_bounds = array<i64: 2, 8, 32>}]} {
    %c0_i32 = arith.constant 0 : i32
    %0 = arith.cmpi eq, %arg1, %c0_i32 : i32
    %1 = arith.extui %0 : i1 to i32
    %c0_i32_0 = arith.constant 0 : i32
    %2 = arith.cmpi ne, %1, %c0_i32_0 : i32
    scf.if %2 {
      %c0_86 = arith.constant 0 : index
      %c0_87 = arith.constant 0 : index
      %c0_88 = arith.constant 0 : index
      %178 = vector.load %arg2[%c0_86, %c0_87, %c0_88] : memref<2x8x32xf32, #tpu.memory_space<vmem>>, vector<2x8x32xf32>
      %c0_89 = arith.constant 0 : index
      %c0_90 = arith.constant 0 : index
      %c0_91 = arith.constant 0 : index
      %179 = vector.load %arg16[%c0_89, %c0_90, %c0_91] : memref<2x8x32xf32, #tpu.memory_space<vmem>>, vector<2x8x32xf32>
      tpu.vector_store %arg16[%c0_89, %c0_90, %c0_91], %178 {strides = array<i32>} : memref<2x8x32xf32, #tpu.memory_space<vmem>>, vector<2x8x32xf32>,
    } else {
    }
    %c0 = arith.constant 0 : index
    %c0_1 = arith.constant 0 : index
    %c0_2 = arith.constant 0 : index
    %3 = vector.load %arg16[%c0, %c0_1, %c0_2] : memref<2x8x32xf32, #tpu.memory_space<vmem>>, vector<2x8x32xf32>
    %c0_3 = arith.constant 0 : index
    %c0_4 = arith.constant 0 : index
    %c0_5 = arith.constant 0 : index
    %4 = vector.load %arg3[%c0_3, %c0_4, %c0_5] : memref<2x8x32xf32, #tpu.memory_space<vmem>>, vector<2x8x32xf32>
    %5 = arith.addf %3, %4 : vector<2x8x32xf32>
    %6 = vector.shape_cast %5 : vector<2x8x32xf32> to vector<16x32xf32>
    %c0_6 = arith.constant 0 : index
    %c0_7 = arith.constant 0 : index
    %c0_8 = arith.constant 0 : index
    %7 = vector.load %arg4[%c0_6, %c0_7, %c0_8] : memref<1x1x32xf32, #tpu.memory_space<vmem>>, vector<1x1x32xf32>
    %8 = vector.shape_cast %7 : vector<1x1x32xf32> to vector<1x32xf32>
    %c0_9 = arith.constant 0 : index
    %c0_10 = arith.constant 0 : index
    %c0_11 = arith.constant 0 : index
    %9 = vector.load %arg5[%c0_9, %c0_10, %c0_11] : memref<1x1x32xf32, #tpu.memory_space<vmem>>, vector<1x1x32xf32>
    %10 = vector.shape_cast %9 : vector<1x1x32xf32> to vector<1x32xf32>
    %cst = arith.constant dense<0.000000e+00> : vector<16xf32>
    %11 = vector.multi_reduction <add>, %6, %cst [1] : vector<16x32xf32> to vector<16xf32>
    %12 = vector.shape_cast %11 : vector<16xf32> to vector<16x1xf32>
    %cst_12 = arith.constant 3.200000e+01 : f32
    %13 = vector.broadcast %cst_12 : f32 to vector<16x1xf32>
    %14 = arith.divf %12, %13 : vector<16x1xf32>
    %15 = vector.broadcast %14 : vector<16x1xf32> to vector<16x32xf32>
    %16 = arith.subf %6, %15 : vector<16x32xf32>
    %17 = arith.mulf %16, %16 : vector<16x32xf32>
    %cst_13 = arith.constant dense<0.000000e+00> : vector<16xf32>
    %18 = vector.multi_reduction <add>, %17, %cst_13 [1] : vector<16x32xf32> to vector<16xf32>
    %19 = vector.shape_cast %18 : vector<16xf32> to vector<16x1xf32>
    %cst_14 = arith.constant 3.200000e+01 : f32
    %20 = vector.broadcast %cst_14 : f32 to vector<16x1xf32>
    %21 = arith.divf %19, %20 : vector<16x1xf32>
    %cst_15 = arith.constant 9.99999974E-6 : f32
    %22 = vector.broadcast %cst_15 : f32 to vector<16x1xf32>
    %23 = arith.addf %21, %22 : vector<16x1xf32>
    %24 = math.rsqrt %23 : vector<16x1xf32>
    %25 = vector.broadcast %24 : vector<16x1xf32> to vector<16x32xf32>
    %26 = vector.broadcast %8 : vector<1x32xf32> to vector<16x32xf32>
    %27 = arith.mulf %25, %26 : vector<16x32xf32>
    %28 = arith.mulf %16, %27 : vector<16x32xf32>
    %29 = vector.broadcast %10 : vector<1x32xf32> to vector<16x32xf32>
    %30 = arith.addf %28, %29 : vector<16x32xf32>
    %c0_16 = arith.constant 0 : index
    %c0_17 = arith.constant 0 : index
    %c0_18 = arith.constant 0 : index
    %31 = vector.load %arg6[%c0_16, %c0_17, %c0_18] : memref<1x96x32xf32, #tpu.memory_space<vmem>>, vector<1x32x32xf32>
    %32 = vector.shape_cast %31 : vector<1x32x32xf32> to vector<32x32xf32>
    %cst_19 = arith.constant dense<0.000000e+00> : vector<16x32xf32>
    %33 = tpu.matmul %30, %32, %cst_19 {dimension_numbers = #tpu.dot_dimension_numbers<[1], [1], [0], [0], [0, 0, 1, 0], [], []>} : vector<16x32xf32>, vector<32x32xf32>, vector<16x32xf32> -> vector<16x32xf32>
    %34 = vector.shape_cast %33 : vector<16x32xf32> to vector<2x8x32xf32>
    %c0_20 = arith.constant 0 : index
    %c32 = arith.constant 32 : index
    %c0_21 = arith.constant 0 : index
    %35 = vector.load %arg6[%c0_20, %c32, %c0_21] : memref<1x96x32xf32, #tpu.memory_space<vmem>>, vector<1x32x32xf32>
    %36 = vector.shape_cast %35 : vector<1x32x32xf32> to vector<32x32xf32>
    %cst_22 = arith.constant dense<0.000000e+00> : vector<16x32xf32>
    %37 = tpu.matmul %30, %36, %cst_22 {dimension_numbers = #tpu.dot_dimension_numbers<[1], [1], [0], [0], [0, 0, 1, 0], [], []>} : vector<16x32xf32>, vector<32x32xf32>, vector<16x32xf32> -> vector<16x32xf32>
    %38 = vector.shape_cast %37 : vector<16x32xf32> to vector<2x8x32xf32>
    %c0_23 = arith.constant 0 : index
    %c64 = arith.constant 64 : index
    %c0_24 = arith.constant 0 : index
    %39 = vector.load %arg6[%c0_23, %c64, %c0_24] : memref<1x96x32xf32, #tpu.memory_space<vmem>>, vector<1x32x32xf32>
    %40 = vector.shape_cast %39 : vector<1x32x32xf32> to vector<32x32xf32>
    %cst_25 = arith.constant dense<0.000000e+00> : vector<16x32xf32>
    %41 = tpu.matmul %30, %40, %cst_25 {dimension_numbers = #tpu.dot_dimension_numbers<[1], [1], [0], [0], [0, 0, 1, 0], [], []>} : vector<16x32xf32>, vector<32x32xf32>, vector<16x32xf32> -> vector<16x32xf32>
    %42 = vector.shape_cast %41 : vector<16x32xf32> to vector<2x8x32xf32>
    %43 = vector.extract_strided_slice %34 {offsets = [0, 0, 0], sizes = [2, 8, 8], strides = [1, 1, 1]} : vector<2x8x32xf32> to vector<2x8x8xf32>
    %44 = vector.extract_strided_slice %38 {offsets = [0, 0, 0], sizes = [2, 8, 8], strides = [1, 1, 1]} : vector<2x8x32xf32> to vector<2x8x8xf32>
    %45 = vector.extract_strided_slice %42 {offsets = [0, 0, 0], sizes = [2, 8, 8], strides = [1, 1, 1]} : vector<2x8x32xf32> to vector<2x8x8xf32>
    "tpu.trace_start"() <{level = 10 : i32, message = "bqd,bkd->bqk"}> : () -> ()
    %cst_26 = arith.constant dense<0.000000e+00> : vector<2x8x8xf32>
    %46 = tpu.matmul %43, %44, %cst_26 {dimension_numbers = #tpu.dot_dimension_numbers<[2], [2], [1], [1], [0, 0, 0, 1, 1, 1], [0], [0]>} : vector<2x8x8xf32>, vector<2x8x8xf32>, vector<2x8x8xf32> -> vector<2x8x8xf32>
    "tpu.trace_stop"() : () -> ()
    %cst_27 = arith.constant 0.353553385 : f32
    %47 = vector.broadcast %cst_27 : f32 to vector<2x8x8xf32>
    %48 = arith.mulf %46, %47 : vector<2x8x8xf32>
    %cst_28 = arith.constant dense<0xFF800000> : vector<2x8xf32>
    %49 = vector.multi_reduction <maximumf>, %48, %cst_28 [2] : vector<2x8x8xf32> to vector<2x8xf32>
    %50 = vector.shape_cast %49 : vector<2x8xf32> to vector<2x8x1xf32>
    %51 = vector.broadcast %50 : vector<2x8x1xf32> to vector<2x8x8xf32>
    %52 = arith.subf %48, %51 : vector<2x8x8xf32>
    %53 = math.exp %52 : vector<2x8x8xf32>
    %cst_29 = arith.constant dense<0.000000e+00> : vector<2x8xf32>
    %54 = vector.multi_reduction <add>, %53, %cst_29 [2] : vector<2x8x8xf32> to vector<2x8xf32>
    %55 = vector.shape_cast %54 : vector<2x8xf32> to vector<2x8x1xf32>
    %56 = tpu.reciprocal %55 {approx = true} : vector<2x8x1xf32> -> vector<2x8x1xf32>
    %57 = vector.broadcast %56 : vector<2x8x1xf32> to vector<2x8x8xf32>
    %58 = arith.mulf %53, %57 : vector<2x8x8xf32>
    "tpu.trace_start"() <{level = 10 : i32, message = "bqk,bkd->bqd"}> : () -> ()
    %cst_30 = arith.constant dense<0.000000e+00> : vector<2x8x8xf32>
    %59 = tpu.matmul %58, %45, %cst_30 {dimension_numbers = #tpu.dot_dimension_numbers<[2], [1], [1], [2], [0, 0, 0, 1, 1, 2], [0], [0]>} : vector<2x8x8xf32>, vector<2x8x8xf32>, vector<2x8x8xf32> -> vector<2x8x8xf32>
    "tpu.trace_stop"() : () -> ()
    %60 = vector.extract_strided_slice %34 {offsets = [0, 0, 8], sizes = [2, 8, 8], strides = [1, 1, 1]} : vector<2x8x32xf32> to vector<2x8x8xf32>
    %61 = vector.extract_strided_slice %38 {offsets = [0, 0, 8], sizes = [2, 8, 8], strides = [1, 1, 1]} : vector<2x8x32xf32> to vector<2x8x8xf32>
    %62 = vector.extract_strided_slice %42 {offsets = [0, 0, 8], sizes = [2, 8, 8], strides = [1, 1, 1]} : vector<2x8x32xf32> to vector<2x8x8xf32>
    "tpu.trace_start"() <{level = 10 : i32, message = "bqd,bkd->bqk"}> : () -> ()
    %cst_31 = arith.constant dense<0.000000e+00> : vector<2x8x8xf32>
    %63 = tpu.matmul %60, %61, %cst_31 {dimension_numbers = #tpu.dot_dimension_numbers<[2], [2], [1], [1], [0, 0, 0, 1, 1, 1], [0], [0]>} : vector<2x8x8xf32>, vector<2x8x8xf32>, vector<2x8x8xf32> -> vector<2x8x8xf32>
    "tpu.trace_stop"() : () -> ()
    %cst_32 = arith.constant 0.353553385 : f32
    %64 = vector.broadcast %cst_32 : f32 to vector<2x8x8xf32>
    %65 = arith.mulf %63, %64 : vector<2x8x8xf32>
    %cst_33 = arith.constant dense<0xFF800000> : vector<2x8xf32>
    %66 = vector.multi_reduction <maximumf>, %65, %cst_33 [2] : vector<2x8x8xf32> to vector<2x8xf32>
    %67 = vector.shape_cast %66 : vector<2x8xf32> to vector<2x8x1xf32>
    %68 = vector.broadcast %67 : vector<2x8x1xf32> to vector<2x8x8xf32>
    %69 = arith.subf %65, %68 : vector<2x8x8xf32>
    %70 = math.exp %69 : vector<2x8x8xf32>
    %cst_34 = arith.constant dense<0.000000e+00> : vector<2x8xf32>
    %71 = vector.multi_reduction <add>, %70, %cst_34 [2] : vector<2x8x8xf32> to vector<2x8xf32>
    %72 = vector.shape_cast %71 : vector<2x8xf32> to vector<2x8x1xf32>
    %73 = tpu.reciprocal %72 {approx = true} : vector<2x8x1xf32> -> vector<2x8x1xf32>
    %74 = vector.broadcast %73 : vector<2x8x1xf32> to vector<2x8x8xf32>
    %75 = arith.mulf %70, %74 : vector<2x8x8xf32>
    "tpu.trace_start"() <{level = 10 : i32, message = "bqk,bkd->bqd"}> : () -> ()
    %cst_35 = arith.constant dense<0.000000e+00> : vector<2x8x8xf32>
    %76 = tpu.matmul %75, %62, %cst_35 {dimension_numbers = #tpu.dot_dimension_numbers<[2], [1], [1], [2], [0, 0, 0, 1, 1, 2], [0], [0]>} : vector<2x8x8xf32>, vector<2x8x8xf32>, vector<2x8x8xf32> -> vector<2x8x8xf32>
    "tpu.trace_stop"() : () -> ()
    %77 = vector.extract_strided_slice %34 {offsets = [0, 0, 16], sizes = [2, 8, 8], strides = [1, 1, 1]} : vector<2x8x32xf32> to vector<2x8x8xf32>
    %78 = vector.extract_strided_slice %38 {offsets = [0, 0, 16], sizes = [2, 8, 8], strides = [1, 1, 1]} : vector<2x8x32xf32> to vector<2x8x8xf32>
    %79 = vector.extract_strided_slice %42 {offsets = [0, 0, 16], sizes = [2, 8, 8], strides = [1, 1, 1]} : vector<2x8x32xf32> to vector<2x8x8xf32>
    "tpu.trace_start"() <{level = 10 : i32, message = "bqd,bkd->bqk"}> : () -> ()
    %cst_36 = arith.constant dense<0.000000e+00> : vector<2x8x8xf32>
    %80 = tpu.matmul %77, %78, %cst_36 {dimension_numbers = #tpu.dot_dimension_numbers<[2], [2], [1], [1], [0, 0, 0, 1, 1, 1], [0], [0]>} : vector<2x8x8xf32>, vector<2x8x8xf32>, vector<2x8x8xf32> -> vector<2x8x8xf32>
    "tpu.trace_stop"() : () -> ()
    %cst_37 = arith.constant 0.353553385 : f32
    %81 = vector.broadcast %cst_37 : f32 to vector<2x8x8xf32>
    %82 = arith.mulf %80, %81 : vector<2x8x8xf32>
    %cst_38 = arith.constant dense<0xFF800000> : vector<2x8xf32>
    %83 = vector.multi_reduction <maximumf>, %82, %cst_38 [2] : vector<2x8x8xf32> to vector<2x8xf32>
    %84 = vector.shape_cast %83 : vector<2x8xf32> to vector<2x8x1xf32>
    %85 = vector.broadcast %84 : vector<2x8x1xf32> to vector<2x8x8xf32>
    %86 = arith.subf %82, %85 : vector<2x8x8xf32>
    %87 = math.exp %86 : vector<2x8x8xf32>
    %cst_39 = arith.constant dense<0.000000e+00> : vector<2x8xf32>
    %88 = vector.multi_reduction <add>, %87, %cst_39 [2] : vector<2x8x8xf32> to vector<2x8xf32>
    %89 = vector.shape_cast %88 : vector<2x8xf32> to vector<2x8x1xf32>
    %90 = tpu.reciprocal %89 {approx = true} : vector<2x8x1xf32> -> vector<2x8x1xf32>
    %91 = vector.broadcast %90 : vector<2x8x1xf32> to vector<2x8x8xf32>
    %92 = arith.mulf %87, %91 : vector<2x8x8xf32>
    "tpu.trace_start"() <{level = 10 : i32, message = "bqk,bkd->bqd"}> : () -> ()
    %cst_40 = arith.constant dense<0.000000e+00> : vector<2x8x8xf32>
    %93 = tpu.matmul %92, %79, %cst_40 {dimension_numbers = #tpu.dot_dimension_numbers<[2], [1], [1], [2], [0, 0, 0, 1, 1, 2], [0], [0]>} : vector<2x8x8xf32>, vector<2x8x8xf32>, vector<2x8x8xf32> -> vector<2x8x8xf32>
    "tpu.trace_stop"() : () -> ()
    %94 = vector.extract_strided_slice %34 {offsets = [0, 0, 24], sizes = [2, 8, 8], strides = [1, 1, 1]} : vector<2x8x32xf32> to vector<2x8x8xf32>
    %95 = vector.extract_strided_slice %38 {offsets = [0, 0, 24], sizes = [2, 8, 8], strides = [1, 1, 1]} : vector<2x8x32xf32> to vector<2x8x8xf32>
    %96 = vector.extract_strided_slice %42 {offsets = [0, 0, 24], sizes = [2, 8, 8], strides = [1, 1, 1]} : vector<2x8x32xf32> to vector<2x8x8xf32>
    "tpu.trace_start"() <{level = 10 : i32, message = "bqd,bkd->bqk"}> : () -> ()
    %cst_41 = arith.constant dense<0.000000e+00> : vector<2x8x8xf32>
    %97 = tpu.matmul %94, %95, %cst_41 {dimension_numbers = #tpu.dot_dimension_numbers<[2], [2], [1], [1], [0, 0, 0, 1, 1, 1], [0], [0]>} : vector<2x8x8xf32>, vector<2x8x8xf32>, vector<2x8x8xf32> -> vector<2x8x8xf32>
    "tpu.trace_stop"() : () -> ()
    %cst_42 = arith.constant 0.353553385 : f32
    %98 = vector.broadcast %cst_42 : f32 to vector<2x8x8xf32>
    %99 = arith.mulf %97, %98 : vector<2x8x8xf32>
    %cst_43 = arith.constant dense<0xFF800000> : vector<2x8xf32>
    %100 = vector.multi_reduction <maximumf>, %99, %cst_43 [2] : vector<2x8x8xf32> to vector<2x8xf32>
    %101 = vector.shape_cast %100 : vector<2x8xf32> to vector<2x8x1xf32>
    %102 = vector.broadcast %101 : vector<2x8x1xf32> to vector<2x8x8xf32>
    %103 = arith.subf %99, %102 : vector<2x8x8xf32>
    %104 = math.exp %103 : vector<2x8x8xf32>
    %cst_44 = arith.constant dense<0.000000e+00> : vector<2x8xf32>
    %105 = vector.multi_reduction <add>, %104, %cst_44 [2] : vector<2x8x8xf32> to vector<2x8xf32>
    %106 = vector.shape_cast %105 : vector<2x8xf32> to vector<2x8x1xf32>
    %107 = tpu.reciprocal %106 {approx = true} : vector<2x8x1xf32> -> vector<2x8x1xf32>
    %108 = vector.broadcast %107 : vector<2x8x1xf32> to vector<2x8x8xf32>
    %109 = arith.mulf %104, %108 : vector<2x8x8xf32>
    "tpu.trace_start"() <{level = 10 : i32, message = "bqk,bkd->bqd"}> : () -> ()
    %cst_45 = arith.constant dense<0.000000e+00> : vector<2x8x8xf32>
    %110 = tpu.matmul %109, %96, %cst_45 {dimension_numbers = #tpu.dot_dimension_numbers<[2], [1], [1], [2], [0, 0, 0, 1, 1, 2], [0], [0]>} : vector<2x8x8xf32>, vector<2x8x8xf32>, vector<2x8x8xf32> -> vector<2x8x8xf32>
    "tpu.trace_stop"() : () -> ()
    %111 = tpu.concatenate %59, %76, %93, %110 in 2 : vector<2x8x8xf32>, vector<2x8x8xf32>, vector<2x8x8xf32>, vector<2x8x8xf32> -> vector<2x8x32xf32>
    %112 = vector.shape_cast %111 : vector<2x8x32xf32> to vector<16x32xf32>
    %c0_46 = arith.constant 0 : index
    %c0_47 = arith.constant 0 : index
    %c0_48 = arith.constant 0 : index
    %113 = vector.load %arg7[%c0_46, %c0_47, %c0_48] : memref<1x32x32xf32, #tpu.memory_space<vmem>>, vector<1x32x32xf32>
    %114 = vector.shape_cast %113 : vector<1x32x32xf32> to vector<32x32xf32>
    %cst_49 = arith.constant dense<0.000000e+00> : vector<16x32xf32>
    %115 = tpu.matmul %112, %114, %cst_49 {dimension_numbers = #tpu.dot_dimension_numbers<[1], [1], [0], [0], [0, 0, 1, 0], [], []>} : vector<16x32xf32>, vector<32x32xf32>, vector<16x32xf32> -> vector<16x32xf32>
    %c0_50 = arith.constant 0 : index
    %c0_51 = arith.constant 0 : index
    %c0_52 = arith.constant 0 : index
    %116 = vector.load %arg8[%c0_50, %c0_51, %c0_52] : memref<1x1x32xf32, #tpu.memory_space<vmem>>, vector<1x1x32xf32>
    %117 = vector.shape_cast %116 : vector<1x1x32xf32> to vector<1x32xf32>
    %118 = vector.broadcast %117 : vector<1x32xf32> to vector<16x32xf32>
    %119 = arith.addf %115, %118 : vector<16x32xf32>
    %120 = arith.addf %6, %119 : vector<16x32xf32>
    %c0_53 = arith.constant 0 : index
    %c0_54 = arith.constant 0 : index
    %c0_55 = arith.constant 0 : index
    %121 = vector.load %arg9[%c0_53, %c0_54, %c0_55] : memref<1x1x32xf32, #tpu.memory_space<vmem>>, vector<1x1x32xf32>
    %122 = vector.shape_cast %121 : vector<1x1x32xf32> to vector<1x32xf32>
    %c0_56 = arith.constant 0 : index
    %c0_57 = arith.constant 0 : index
    %c0_58 = arith.constant 0 : index
    %123 = vector.load %arg10[%c0_56, %c0_57, %c0_58] : memref<1x1x32xf32, #tpu.memory_space<vmem>>, vector<1x1x32xf32>
    %124 = vector.shape_cast %123 : vector<1x1x32xf32> to vector<1x32xf32>
    %cst_59 = arith.constant dense<0.000000e+00> : vector<16xf32>
    %125 = vector.multi_reduction <add>, %120, %cst_59 [1] : vector<16x32xf32> to vector<16xf32>
    %126 = vector.shape_cast %125 : vector<16xf32> to vector<16x1xf32>
    %cst_60 = arith.constant 3.200000e+01 : f32
    %127 = vector.broadcast %cst_60 : f32 to vector<16x1xf32>
    %128 = arith.divf %126, %127 : vector<16x1xf32>
    %129 = vector.broadcast %128 : vector<16x1xf32> to vector<16x32xf32>
    %130 = arith.subf %120, %129 : vector<16x32xf32>
    %131 = arith.mulf %130, %130 : vector<16x32xf32>
    %cst_61 = arith.constant dense<0.000000e+00> : vector<16xf32>
    %132 = vector.multi_reduction <add>, %131, %cst_61 [1] : vector<16x32xf32> to vector<16xf32>
    %133 = vector.shape_cast %132 : vector<16xf32> to vector<16x1xf32>
    %cst_62 = arith.constant 3.200000e+01 : f32
    %134 = vector.broadcast %cst_62 : f32 to vector<16x1xf32>
    %135 = arith.divf %133, %134 : vector<16x1xf32>
    %cst_63 = arith.constant 9.99999974E-6 : f32
    %136 = vector.broadcast %cst_63 : f32 to vector<16x1xf32>
    %137 = arith.addf %135, %136 : vector<16x1xf32>
    %138 = math.rsqrt %137 : vector<16x1xf32>
    %139 = vector.broadcast %138 : vector<16x1xf32> to vector<16x32xf32>
    %140 = vector.broadcast %122 : vector<1x32xf32> to vector<16x32xf32>
    %141 = arith.mulf %139, %140 : vector<16x32xf32>
    %142 = arith.mulf %130, %141 : vector<16x32xf32>
    %143 = vector.broadcast %124 : vector<1x32xf32> to vector<16x32xf32>
    %144 = arith.addf %142, %143 : vector<16x32xf32>
    %c0_64 = arith.constant 0 : index
    %c0_65 = arith.constant 0 : index
    %c0_66 = arith.constant 0 : index
    %145 = vector.load %arg11[%c0_64, %c0_65, %c0_66] : memref<1x128x32xf32, #tpu.memory_space<vmem>>, vector<1x128x32xf32>
    %146 = vector.shape_cast %145 : vector<1x128x32xf32> to vector<128x32xf32>
    %cst_67 = arith.constant dense<0.000000e+00> : vector<16x128xf32>
    %147 = tpu.matmul %144, %146, %cst_67 {dimension_numbers = #tpu.dot_dimension_numbers<[1], [1], [0], [0], [0, 0, 1, 0], [], []>} : vector<16x32xf32>, vector<128x32xf32>, vector<16x128xf32> -> vector<16x128xf32>
    %c0_68 = arith.constant 0 : index
    %c0_69 = arith.constant 0 : index
    %c0_70 = arith.constant 0 : index
    %148 = vector.load %arg12[%c0_68, %c0_69, %c0_70] : memref<1x1x128xf32, #tpu.memory_space<vmem>>, vector<1x1x128xf32>
    %149 = vector.shape_cast %148 : vector<1x1x128xf32> to vector<1x128xf32>
    %150 = vector.broadcast %149 : vector<1x128xf32> to vector<16x128xf32>
    %151 = arith.addf %147, %150 : vector<16x128xf32>
    %cst_71 = arith.constant 5.000000e-01 : f32
    %152 = vector.broadcast %cst_71 : f32 to vector<16x128xf32>
    %153 = arith.mulf %152, %151 : vector<16x128xf32>
    %cst_72 = arith.constant 4.471500e-02 : f32
    %154 = vector.broadcast %cst_72 : f32 to vector<16x128xf32>
    %155 = arith.mulf %154, %151 : vector<16x128xf32>
    %156 = arith.mulf %155, %151 : vector<16x128xf32>
    %157 = arith.mulf %156, %151 : vector<16x128xf32>
    %158 = arith.addf %151, %157 : vector<16x128xf32>
    %cst_73 = arith.constant 0.797884583 : f32
    %159 = vector.broadcast %cst_73 : f32 to vector<16x128xf32>
    %160 = arith.mulf %159, %158 : vector<16x128xf32>
    %161 = math.tanh %160 : vector<16x128xf32>
    %cst_74 = arith.constant 1.000000e+00 : f32
    %162 = vector.broadcast %cst_74 : f32 to vector<16x128xf32>
    %163 = arith.addf %162, %161 : vector<16x128xf32>
    %164 = arith.mulf %153, %163 : vector<16x128xf32>
    %c0_75 = arith.constant 0 : index
    %c0_76 = arith.constant 0 : index
    %c0_77 = arith.constant 0 : index
    %165 = vector.load %arg13[%c0_75, %c0_76, %c0_77] : memref<1x32x128xf32, #tpu.memory_space<vmem>>, vector<1x32x128xf32>
    %166 = vector.shape_cast %165 : vector<1x32x128xf32> to vector<32x128xf32>
    %cst_78 = arith.constant dense<0.000000e+00> : vector<16x32xf32>
    %167 = tpu.matmul %164, %166, %cst_78 {dimension_numbers = #tpu.dot_dimension_numbers<[1], [1], [0], [0], [0, 0, 1, 0], [], []>} : vector<16x128xf32>, vector<32x128xf32>, vector<16x32xf32> -> vector<16x32xf32>
    %c0_79 = arith.constant 0 : index
    %c0_80 = arith.constant 0 : index
    %c0_81 = arith.constant 0 : index
    %168 = vector.load %arg14[%c0_79, %c0_80, %c0_81] : memref<1x1x32xf32, #tpu.memory_space<vmem>>, vector<1x1x32xf32>
    %169 = vector.shape_cast %168 : vector<1x1x32xf32> to vector<1x32xf32>
    %170 = vector.broadcast %169 : vector<1x32xf32> to vector<16x32xf32>
    %171 = arith.addf %167, %170 : vector<16x32xf32>
    %172 = arith.addf %120, %171 : vector<16x32xf32>
    %173 = vector.shape_cast %172 : vector<16x32xf32> to vector<2x8x32xf32>
    %c0_82 = arith.constant 0 : index
    %c0_83 = arith.constant 0 : index
    %c0_84 = arith.constant 0 : index
    %174 = vector.load %arg16[%c0_82, %c0_83, %c0_84] : memref<2x8x32xf32, #tpu.memory_space<vmem>>, vector<2x8x32xf32>
    tpu.vector_store %arg16[%c0_82, %c0_83, %c0_84], %173 {strides = array<i32>} : memref<2x8x32xf32, #tpu.memory_space<vmem>>, vector<2x8x32xf32>,
    %c1_i32 = arith.constant 1 : i32
    %175 = arith.cmpi eq, %arg1, %c1_i32 : i32
    %176 = arith.extui %175 : i1 to i32
    %c0_i32_85 = arith.constant 0 : i32
    %177 = arith.cmpi ne, %176, %c0_i32_85 : i32
    scf.if %177 {
      %c0_86 = arith.constant 0 : index
      %c0_87 = arith.constant 0 : index
      %c0_88 = arith.constant 0 : index
      %178 = vector.load %arg15[%c0_86, %c0_87, %c0_88] : memref<2x8x32xf32, #tpu.memory_space<vmem>>, vector<2x8x32xf32>
      tpu.vector_store %arg15[%c0_86, %c0_87, %c0_88], %173 {strides = array<i32>} : memref<2x8x32xf32, #tpu.memory_space<vmem>>, vector<2x8x32xf32>,
    } else {
    }
    return
  }
  func.func @transform_0(%arg0: i32, %arg1: i32) -> (i32, i32, i32) {
    %c0_i32 = arith.constant 0 : i32
    %c0_i32_0 = arith.constant 0 : i32
    %c0_i32_1 = arith.constant 0 : i32
    return %arg0, %c0_i32, %c0_i32_0 : i32, i32, i32
  }
  func.func @transform_1(%arg0: i32, %arg1: i32) -> (i32, i32, i32) {
    %c0_i32 = arith.constant 0 : i32
    %c0_i32_0 = arith.constant 0 : i32
    %c0_i32_1 = arith.constant 0 : i32
    return %arg0, %c0_i32, %c0_i32_0 : i32, i32, i32
  }
  func.func @transform_2(%arg0: i32, %arg1: i32) -> (i32, i32, i32) {
    %c0_i32 = arith.constant 0 : i32
    %c0_i32_0 = arith.constant 0 : i32
    %c0_i32_1 = arith.constant 0 : i32
    return %arg1, %c0_i32, %c0_i32_0 : i32, i32, i32
  }
  func.func @transform_3(%arg0: i32, %arg1: i32) -> (i32, i32, i32) {
    %c0_i32 = arith.constant 0 : i32
    %c0_i32_0 = arith.constant 0 : i32
    %c0_i32_1 = arith.constant 0 : i32
    return %arg1, %c0_i32, %c0_i32_0 : i32, i32, i32
  }
  func.func @transform_4(%arg0: i32, %arg1: i32) -> (i32, i32, i32) {
    %c0_i32 = arith.constant 0 : i32
    %c0_i32_0 = arith.constant 0 : i32
    %c0_i32_1 = arith.constant 0 : i32
    return %arg1, %c0_i32, %c0_i32_0 : i32, i32, i32
  }
  func.func @transform_5(%arg0: i32, %arg1: i32) -> (i32, i32, i32) {
    %c0_i32 = arith.constant 0 : i32
    %c0_i32_0 = arith.constant 0 : i32
    %c0_i32_1 = arith.constant 0 : i32
    return %arg1, %c0_i32, %c0_i32_0 : i32, i32, i32
  }
  func.func @transform_6(%arg0: i32, %arg1: i32) -> (i32, i32, i32) {
    %c0_i32 = arith.constant 0 : i32
    %c0_i32_0 = arith.constant 0 : i32
    %c0_i32_1 = arith.constant 0 : i32
    return %arg1, %c0_i32, %c0_i32_0 : i32, i32, i32
  }
  func.func @transform_7(%arg0: i32, %arg1: i32) -> (i32, i32, i32) {
    %c0_i32 = arith.constant 0 : i32
    %c0_i32_0 = arith.constant 0 : i32
    %c0_i32_1 = arith.constant 0 : i32
    return %arg1, %c0_i32, %c0_i32_0 : i32, i32, i32
  }
  func.func @transform_8(%arg0: i32, %arg1: i32) -> (i32, i32, i32) {
    %c0_i32 = arith.constant 0 : i32
    %c0_i32_0 = arith.constant 0 : i32
    %c0_i32_1 = arith.constant 0 : i32
    return %arg1, %c0_i32, %c0_i32_0 : i32, i32, i32
  }
  func.func @transform_9(%arg0: i32, %arg1: i32) -> (i32, i32, i32) {
    %c0_i32 = arith.constant 0 : i32
    %c0_i32_0 = arith.constant 0 : i32
    %c0_i32_1 = arith.constant 0 : i32
    return %arg1, %c0_i32, %c0_i32_0 : i32, i32, i32
  }
  func.func @transform_10(%arg0: i32, %arg1: i32) -> (i32, i32, i32) {
    %c0_i32 = arith.constant 0 : i32
    %c0_i32_0 = arith.constant 0 : i32
    %c0_i32_1 = arith.constant 0 : i32
    return %arg1, %c0_i32, %c0_i32_0 : i32, i32, i32
  }
  func.func @transform_11(%arg0: i32, %arg1: i32) -> (i32, i32, i32) {
    %c0_i32 = arith.constant 0 : i32
    %c0_i32_0 = arith.constant 0 : i32
    %c0_i32_1 = arith.constant 0 : i32
    return %arg1, %c0_i32, %c0_i32_0 : i32, i32, i32
  }
  func.func @transform_12(%arg0: i32, %arg1: i32) -> (i32, i32, i32) {
    %c0_i32 = arith.constant 0 : i32
    %c0_i32_0 = arith.constant 0 : i32
    %c0_i32_1 = arith.constant 0 : i32
    return %arg1, %c0_i32, %c0_i32_0 : i32, i32, i32
  }
  func.func @transform_13(%arg0: i32, %arg1: i32) -> (i32, i32, i32) {
    %c0_i32 = arith.constant 0 : i32
    %c0_i32_0 = arith.constant 0 : i32
    %c0_i32_1 = arith.constant 0 : i32
    return %arg0, %c0_i32, %c0_i32_0 : i32, i32, i32
  }
}

</mosaic_0001>

<llo_original>
// kernel: transformer_encoder_forward.1
$region0: #{transformer_encoder_forward.1}
  #allocation0 [shape = 'u32[]', space=smem, size = 0x4, offset = 0x4, fixed_abs, tag = 'smem constant byte address 0x4 - core index']
  #allocation1 [shape = 'u32[144,128]{1,0:T(1,128)}', space=vmem, size = 0x12000, scoped, tag = 'internal scratch']
  #allocation2 [shape = 'f32[2,8,32]{2,1,0:T(8,128)}', space=vmem, size = 0x2000, scoped, tag = 'scratch operand']
  %s0 = inlined_call_operand.vmem [shape: f32[2,8,32], index: 0, kind: input, shape index: {}]
  %s1 = inlined_call_operand.vmem [shape: f32[2,8,32], index: 1, kind: input, shape index: {}]
  %s2 = inlined_call_operand.vmem [shape: f32[2,1,32], index: 2, kind: input, shape index: {}]
  %s3 = inlined_call_operand.vmem [shape: f32[2,1,32], index: 3, kind: input, shape index: {}]
  %s4 = inlined_call_operand.vmem [shape: f32[2,96,32], index: 4, kind: input, shape index: {}]
  %s5 = inlined_call_operand.vmem [shape: f32[2,32,32], index: 5, kind: input, shape index: {}]
  %s6 = inlined_call_operand.vmem [shape: f32[2,1,32], index: 6, kind: input, shape index: {}]
  %s7 = inlined_call_operand.vmem [shape: f32[2,1,32], index: 7, kind: input, shape index: {}]
  %s8 = inlined_call_operand.vmem [shape: f32[2,1,32], index: 8, kind: input, shape index: {}]
  %s9 = inlined_call_operand.vmem [shape: f32[2,128,32], index: 9, kind: input, shape index: {}]
  %s10 = inlined_call_operand.vmem [shape: f32[2,1,128], index: 10, kind: input, shape index: {}]
  %s11 = inlined_call_operand.vmem [shape: f32[2,32,128], index: 11, kind: input, shape index: {}]
  %s12 = inlined_call_operand.vmem [shape: f32[2,1,32], index: 12, kind: input, shape index: {}]
  %s13 = inlined_call_operand.hbm [shape: f32[2,8,32], index: 13, kind: output, shape index: {}]
  %s14 = sld [smem:[#allocation0]]
  $region93: #{transformer_encoder_forward.1} parent=0
    _
  %s16 = ssub.s32 1, %s14
  %s17 = scalar_select 0, %s16, %s14
  $region1: #{transformer_encoder_forward.1} parent=0
    #allocation3 [shape = 'u8[8192]{0}', space=vmem, size = 0x2000, scoped, tag = 'output window, operand 0, single buffered']
    #allocation4 [shape = 's32[2]{0}', space=sflag, size = 0x8, scoped, tag = 'scoped memory for transformer_encoder_forward.1']
    %18 = vsyncpa [#allocation4], 0
    loop: start=0, step=1, limit=4
    $region2: #{transformer_encoder_forward.1} parent=1 // loop_pre_header
      _
    $region3: #{transformer_encoder_forward.1} parent=1 // loop_header
      %s20 = sphi 0, %s24
      %p21 = scmp.ge.s32.totalorder %s20, 4
      %s27 = sphi 0, %s39
      %s28 = sphi 0, %s35
      %s29 = sphi 0, %s27
      %s30 = sphi 0, %s28
      %s31 = sphi 0, %s29
      %s32 = sphi 0, %s30
      %s42 = sphi 0, %s44
      %s45 = sphi 0, %s42
      %s46 = sphi 0, %s45
      %s62 = sphi 0, %s46
      %s68 = sphi 0, %s70
      %s71 = sphi 0, %s68
      %s72 = sphi 0, %s71
      %s88 = sphi 0, %s72
      %s94 = sphi 0, %s96
      %s97 = sphi 0, %s94
      %s98 = sphi 0, %s97
      %s114 = sphi 0, %s98
      %s120 = sphi 0, %s122
      %s123 = sphi 0, %s120
      %s124 = sphi 0, %s123
      %s140 = sphi 0, %s124
      %s146 = sphi 0, %s148
      %s149 = sphi 0, %s146
      %s150 = sphi 0, %s149
      %s166 = sphi 0, %s150
      %s172 = sphi 0, %s174
      %s175 = sphi 0, %s172
      %s176 = sphi 0, %s175
      %s192 = sphi 0, %s176
      %s198 = sphi 0, %s200
      %s201 = sphi 0, %s198
      %s202 = sphi 0, %s201
      %s218 = sphi 0, %s202
      %s224 = sphi 0, %s226
      %s227 = sphi 0, %s224
      %s228 = sphi 0, %s227
      %s244 = sphi 0, %s228
      %s250 = sphi 0, %s252
      %s253 = sphi 0, %s250
      %s254 = sphi 0, %s253
      %s270 = sphi 0, %s254
      %s276 = sphi 0, %s278
      %s279 = sphi 0, %s276
      %s280 = sphi 0, %s279
      %s296 = sphi 0, %s280
      %s302 = sphi 0, %s304
      %s305 = sphi 0, %s302
      %s306 = sphi 0, %s305
      %s322 = sphi 0, %s306
      %s328 = sphi 0, %s330
      %s331 = sphi 0, %s328
      %s332 = sphi 0, %s331
      %s348 = sphi 0, %s332
      %s354 = sphi 0, %s356
      %s357 = sphi 0, %s354
      %s358 = sphi 0, %s357
      %s374 = sphi 0, %s358
      %s380 = sphi 0, %s382
      %s383 = sphi 0, %s380
      %s384 = sphi 0, %s383
      %s400 = sphi 0, %s384
    $region4: #{transformer_encoder_forward.1} parent=1 // loop_header_branch
      %23 = sbr.rel (%p21) target = $region8
    $region5: #{transformer_encoder_forward.1} parent=1 // loop_body
      %s25 = ssub.s32 %s20, 1
      %s26 = ssub.s32 %s20, 2
      %s33 = sadd.s32 1, %s28
      %p34 = scmp.ge.s32.totalorder %s33, 2
      %s35 = scalar_select %p34, 0, %s33
      %s36 = sadd.s32 1, %s27
      %s37 = scalar_select %p34, %s36, %s27
      %p38 = scmp.ge.s32.totalorder %s37, 1
      %s39 = scalar_select %p38, 0, %s37
      %s40 = ssub.s32 %s27, %s39
      %p41 = scmp.eq.s32.totalorder %s40, 0
      %s43 = sadd.s32 %s42, 1
      %s44 = scalar_select %p41, %s42, %s43
      %p47 = pneg %p41
      %p48 = scmp.eq.s32.totalorder %s20, 1
      %p49 = por %p47, %p48
      %p50 = scmp.ne.s32.totalorder %s42, %s45
      %p51 = scmp.eq.s32.totalorder %s20, 0
      %p52 = por %p50, %p51
      %p53 = scmp.ne.s32.totalorder %s42, %s45
      %p54 = scmp.eq.s32.totalorder %s25, 1
      %p55 = por %p53, %p54
      %p56 = scmp.ne.s32.totalorder %s45, %s46
      %p57 = scmp.eq.s32.totalorder %s25, 0
      %p58 = por %p56, %p57
      %p59 = scmp.ne.s32.totalorder %s45, %s46
      %p60 = scmp.eq.s32.totalorder %s26, 1
      %p61 = por %p59, %p60
      %p63 = scmp.ne.s32.totalorder %s46, %s62
      %p64 = scmp.eq.s32.totalorder %s26, 0
      %p65 = por %p63, %p64
      %s66 = ssub.s32 %s27, %s39
      %p67 = scmp.eq.s32.totalorder %s66, 0
      %s69 = sadd.s32 %s68, 1
      %s70 = scalar_select %p67, %s68, %s69
      %p73 = pneg %p67
      %p74 = scmp.eq.s32.totalorder %s20, 1
      %p75 = por %p73, %p74
      %p76 = scmp.ne.s32.totalorder %s68, %s71
      %p77 = scmp.eq.s32.totalorder %s20, 0
      %p78 = por %p76, %p77
      %p79 = scmp.ne.s32.totalorder %s68, %s71
      %p80 = scmp.eq.s32.totalorder %s25, 1
      %p81 = por %p79, %p80
      %p82 = scmp.ne.s32.totalorder %s71, %s72
      %p83 = scmp.eq.s32.totalorder %s25, 0
      %p84 = por %p82, %p83
      %p85 = scmp.ne.s32.totalorder %s71, %s72
      %p86 = scmp.eq.s32.totalorder %s26, 1
      %p87 = por %p85, %p86
      %p89 = scmp.ne.s32.totalorder %s72, %s88
      %p90 = scmp.eq.s32.totalorder %s26, 0
      %p91 = por %p89, %p90
      %s92 = ssub.s32 %s28, %s35
      %p93 = scmp.eq.s32.totalorder %s92, 0
      %s95 = sadd.s32 %s94, 1
      %s96 = scalar_select %p93, %s94, %s95
      %p99 = pneg %p93
      %p100 = scmp.eq.s32.totalorder %s20, 1
      %p101 = por %p99, %p100
      %p102 = scmp.ne.s32.totalorder %s94, %s97
      %p103 = scmp.eq.s32.totalorder %s20, 0
      %p104 = por %p102, %p103
      %p105 = scmp.ne.s32.totalorder %s94, %s97
      %p106 = scmp.eq.s32.totalorder %s25, 1
      %p107 = por %p105, %p106
      %p108 = scmp.ne.s32.totalorder %s97, %s98
      %p109 = scmp.eq.s32.totalorder %s25, 0
      %p110 = por %p108, %p109
      %p111 = scmp.ne.s32.totalorder %s97, %s98
      %p112 = scmp.eq.s32.totalorder %s26, 1
      %p113 = por %p111, %p112
      %p115 = scmp.ne.s32.totalorder %s98, %s114
      %p116 = scmp.eq.s32.totalorder %s26, 0
      %p117 = por %p115, %p116
      %s118 = ssub.s32 %s28, %s35
      %p119 = scmp.eq.s32.totalorder %s118, 0
      %s121 = sadd.s32 %s120, 1
      %s122 = scalar_select %p119, %s120, %s121
      %p125 = pneg %p119
      %p126 = scmp.eq.s32.totalorder %s20, 1
      %p127 = por %p125, %p126
      %p128 = scmp.ne.s32.totalorder %s120, %s123
      %p129 = scmp.eq.s32.totalorder %s20, 0
      %p130 = por %p128, %p129
      %p131 = scmp.ne.s32.totalorder %s120, %s123
      %p132 = scmp.eq.s32.totalorder %s25, 1
      %p133 = por %p131, %p132
      %p134 = scmp.ne.s32.totalorder %s123, %s124
      %p135 = scmp.eq.s32.totalorder %s25, 0
      %p136 = por %p134, %p135
      %p137 = scmp.ne.s32.totalorder %s123, %s124
      %p138 = scmp.eq.s32.totalorder %s26, 1
      %p139 = por %p137, %p138
      %p141 = scmp.ne.s32.totalorder %s124, %s140
      %p142 = scmp.eq.s32.totalorder %s26, 0
      %p143 = por %p141, %p142
      %s144 = ssub.s32 %s28, %s35
      %p145 = scmp.eq.s32.totalorder %s144, 0
      %s147 = sadd.s32 %s146, 1
      %s148 = scalar_select %p145, %s146, %s147
      %p151 = pneg %p145
      %p152 = scmp.eq.s32.totalorder %s20, 1
      %p153 = por %p151, %p152
      %p154 = scmp.ne.s32.totalorder %s146, %s149
      %p155 = scmp.eq.s32.totalorder %s20, 0
      %p156 = por %p154, %p155
      %p157 = scmp.ne.s32.totalorder %s146, %s149
      %p158 = scmp.eq.s32.totalorder %s25, 1
      %p159 = por %p157, %p158
      %p160 = scmp.ne.s32.totalorder %s149, %s150
      %p161 = scmp.eq.s32.totalorder %s25, 0
      %p162 = por %p160, %p161
      %p163 = scmp.ne.s32.totalorder %s149, %s150
      %p164 = scmp.eq.s32.totalorder %s26, 1
      %p165 = por %p163, %p164
      %p167 = scmp.ne.s32.totalorder %s150, %s166
      %p168 = scmp.eq.s32.totalorder %s26, 0
      %p169 = por %p167, %p168
      %s170 = ssub.s32 %s28, %s35
      %p171 = scmp.eq.s32.totalorder %s170, 0
      %s173 = sadd.s32 %s172, 1
      %s174 = scalar_select %p171, %s172, %s173
      %p177 = pneg %p171
      %p178 = scmp.eq.s32.totalorder %s20, 1
      %p179 = por %p177, %p178
      %p180 = scmp.ne.s32.totalorder %s172, %s175
      %p181 = scmp.eq.s32.totalorder %s20, 0
      %p182 = por %p180, %p181
      %p183 = scmp.ne.s32.totalorder %s172, %s175
      %p184 = scmp.eq.s32.totalorder %s25, 1
      %p185 = por %p183, %p184
      %p186 = scmp.ne.s32.totalorder %s175, %s176
      %p187 = scmp.eq.s32.totalorder %s25, 0
      %p188 = por %p186, %p187
      %p189 = scmp.ne.s32.totalorder %s175, %s176
      %p190 = scmp.eq.s32.totalorder %s26, 1
      %p191 = por %p189, %p190
      %p193 = scmp.ne.s32.totalorder %s176, %s192
      %p194 = scmp.eq.s32.totalorder %s26, 0
      %p195 = por %p193, %p194
      %s196 = ssub.s32 %s28, %s35
      %p197 = scmp.eq.s32.totalorder %s196, 0
      %s199 = sadd.s32 %s198, 1
      %s200 = scalar_select %p197, %s198, %s199
      %p203 = pneg %p197
      %p204 = scmp.eq.s32.totalorder %s20, 1
      %p205 = por %p203, %p204
      %p206 = scmp.ne.s32.totalorder %s198, %s201
      %p207 = scmp.eq.s32.totalorder %s20, 0
      %p208 = por %p206, %p207
      %p209 = scmp.ne.s32.totalorder %s198, %s201
      %p210 = scmp.eq.s32.totalorder %s25, 1
      %p211 = por %p209, %p210
      %p212 = scmp.ne.s32.totalorder %s201, %s202
      %p213 = scmp.eq.s32.totalorder %s25, 0
      %p214 = por %p212, %p213
      %p215 = scmp.ne.s32.totalorder %s201, %s202
      %p216 = scmp.eq.s32.totalorder %s26, 1
      %p217 = por %p215, %p216
      %p219 = scmp.ne.s32.totalorder %s202, %s218
      %p220 = scmp.eq.s32.totalorder %s26, 0
      %p221 = por %p219, %p220
      %s222 = ssub.s32 %s28, %s35
      %p223 = scmp.eq.s32.totalorder %s222, 0
      %s225 = sadd.s32 %s224, 1
      %s226 = scalar_select %p223, %s224, %s225
      %p229 = pneg %p223
      %p230 = scmp.eq.s32.totalorder %s20, 1
      %p231 = por %p229, %p230
      %p232 = scmp.ne.s32.totalorder %s224, %s227
      %p233 = scmp.eq.s32.totalorder %s20, 0
      %p234 = por %p232, %p233
      %p235 = scmp.ne.s32.totalorder %s224, %s227
      %p236 = scmp.eq.s32.totalorder %s25, 1
      %p237 = por %p235, %p236
      %p238 = scmp.ne.s32.totalorder %s227, %s228
      %p239 = scmp.eq.s32.totalorder %s25, 0
      %p240 = por %p238, %p239
      %p241 = scmp.ne.s32.totalorder %s227, %s228
      %p242 = scmp.eq.s32.totalorder %s26, 1
      %p243 = por %p241, %p242
      %p245 = scmp.ne.s32.totalorder %s228, %s244
      %p246 = scmp.eq.s32.totalorder %s26, 0
      %p247 = por %p245, %p246
      %s248 = ssub.s32 %s28, %s35
      %p249 = scmp.eq.s32.totalorder %s248, 0
      %s251 = sadd.s32 %s250, 1
      %s252 = scalar_select %p249, %s250, %s251
      %p255 = pneg %p249
      %p256 = scmp.eq.s32.totalorder %s20, 1
      %p257 = por %p255, %p256
      %p258 = scmp.ne.s32.totalorder %s250, %s253
      %p259 = scmp.eq.s32.totalorder %s20, 0
      %p260 = por %p258, %p259
      %p261 = scmp.ne.s32.totalorder %s250, %s253
      %p262 = scmp.eq.s32.totalorder %s25, 1
      %p263 = por %p261, %p262
      %p264 = scmp.ne.s32.totalorder %s253, %s254
      %p265 = scmp.eq.s32.totalorder %s25, 0
      %p266 = por %p264, %p265
      %p267 = scmp.ne.s32.totalorder %s253, %s254
      %p268 = scmp.eq.s32.totalorder %s26, 1
      %p269 = por %p267, %p268
      %p271 = scmp.ne.s32.totalorder %s254, %s270
      %p272 = scmp.eq.s32.totalorder %s26, 0
      %p273 = por %p271, %p272
      %s274 = ssub.s32 %s28, %s35
      %p275 = scmp.eq.s32.totalorder %s274, 0
      %s277 = sadd.s32 %s276, 1
      %s278 = scalar_select %p275, %s276, %s277
      %p281 = pneg %p275
      %p282 = scmp.eq.s32.totalorder %s20, 1
      %p283 = por %p281, %p282
      %p284 = scmp.ne.s32.totalorder %s276, %s279
      %p285 = scmp.eq.s32.totalorder %s20, 0
      %p286 = por %p284, %p285
      %p287 = scmp.ne.s32.totalorder %s276, %s279
      %p288 = scmp.eq.s32.totalorder %s25, 1
      %p289 = por %p287, %p288
      %p290 = scmp.ne.s32.totalorder %s279, %s280
      %p291 = scmp.eq.s32.totalorder %s25, 0
      %p292 = por %p290, %p291
      %p293 = scmp.ne.s32.totalorder %s279, %s280
      %p294 = scmp.eq.s32.totalorder %s26, 1
      %p295 = por %p293, %p294
      %p297 = scmp.ne.s32.totalorder %s280, %s296
      %p298 = scmp.eq.s32.totalorder %s26, 0
      %p299 = por %p297, %p298
      %s300 = ssub.s32 %s28, %s35
      %p301 = scmp.eq.s32.totalorder %s300, 0
      %s303 = sadd.s32 %s302, 1
      %s304 = scalar_select %p301, %s302, %s303
      %p307 = pneg %p301
      %p308 = scmp.eq.s32.totalorder %s20, 1
      %p309 = por %p307, %p308
      %p310 = scmp.ne.s32.totalorder %s302, %s305
      %p311 = scmp.eq.s32.totalorder %s20, 0
      %p312 = por %p310, %p311
      %p313 = scmp.ne.s32.totalorder %s302, %s305
      %p314 = scmp.eq.s32.totalorder %s25, 1
      %p315 = por %p313, %p314
      %p316 = scmp.ne.s32.totalorder %s305, %s306
      %p317 = scmp.eq.s32.totalorder %s25, 0
      %p318 = por %p316, %p317
      %p319 = scmp.ne.s32.totalorder %s305, %s306
      %p320 = scmp.eq.s32.totalorder %s26, 1
      %p321 = por %p319, %p320
      %p323 = scmp.ne.s32.totalorder %s306, %s322
      %p324 = scmp.eq.s32.totalorder %s26, 0
      %p325 = por %p323, %p324
      %s326 = ssub.s32 %s28, %s35
      %p327 = scmp.eq.s32.totalorder %s326, 0
      %s329 = sadd.s32 %s328, 1
      %s330 = scalar_select %p327, %s328, %s329
      %p333 = pneg %p327
      %p334 = scmp.eq.s32.totalorder %s20, 1
      %p335 = por %p333, %p334
      %p336 = scmp.ne.s32.totalorder %s328, %s331
      %p337 = scmp.eq.s32.totalorder %s20, 0
      %p338 = por %p336, %p337
      %p339 = scmp.ne.s32.totalorder %s328, %s331
      %p340 = scmp.eq.s32.totalorder %s25, 1
      %p341 = por %p339, %p340
      %p342 = scmp.ne.s32.totalorder %s331, %s332
      %p343 = scmp.eq.s32.totalorder %s25, 0
      %p344 = por %p342, %p343
      %p345 = scmp.ne.s32.totalorder %s331, %s332
      %p346 = scmp.eq.s32.totalorder %s26, 1
      %p347 = por %p345, %p346
      %p349 = scmp.ne.s32.totalorder %s332, %s348
      %p350 = scmp.eq.s32.totalorder %s26, 0
      %p351 = por %p349, %p350
      %s352 = ssub.s32 %s28, %s35
      %p353 = scmp.eq.s32.totalorder %s352, 0
      %s355 = sadd.s32 %s354, 1
      %s356 = scalar_select %p353, %s354, %s355
      %p359 = pneg %p353
      %p360 = scmp.eq.s32.totalorder %s20, 1
      %p361 = por %p359, %p360
      %p362 = scmp.ne.s32.totalorder %s354, %s357
      %p363 = scmp.eq.s32.totalorder %s20, 0
      %p364 = por %p362, %p363
      %p365 = scmp.ne.s32.totalorder %s354, %s357
      %p366 = scmp.eq.s32.totalorder %s25, 1
      %p367 = por %p365, %p366
      %p368 = scmp.ne.s32.totalorder %s357, %s358
      %p369 = scmp.eq.s32.totalorder %s25, 0
      %p370 = por %p368, %p369
      %p371 = scmp.ne.s32.totalorder %s357, %s358
      %p372 = scmp.eq.s32.totalorder %s26, 1
      %p373 = por %p371, %p372
      %p375 = scmp.ne.s32.totalorder %s358, %s374
      %p376 = scmp.eq.s32.totalorder %s26, 0
      %p377 = por %p375, %p376
      %s378 = ssub.s32 %s27, %s39
      %p379 = scmp.eq.s32.totalorder %s378, 0
      %s381 = sadd.s32 %s380, 1
      %s382 = scalar_select %p379, %s380, %s381
      %p385 = pneg %p379
      %p386 = scmp.eq.s32.totalorder %s20, 1
      %p387 = por %p385, %p386
      %p388 = scmp.ne.s32.totalorder %s380, %s383
      %p389 = scmp.eq.s32.totalorder %s20, 0
      %p390 = por %p388, %p389
      %p391 = scmp.ne.s32.totalorder %s380, %s383
      %p392 = scmp.eq.s32.totalorder %s25, 1
      %p393 = por %p391, %p392
      %p394 = scmp.ne.s32.totalorder %s383, %s384
      %p395 = scmp.eq.s32.totalorder %s25, 0
      %p396 = por %p394, %p395
      %p397 = scmp.ne.s32.totalorder %s383, %s384
      %p398 = scmp.eq.s32.totalorder %s26, 1
      %p399 = por %p397, %p398
      %p401 = scmp.ne.s32.totalorder %s384, %s400
      %p402 = scmp.eq.s32.totalorder %s26, 0
      %p403 = por %p401, %p402
      %p404 = scmp.le.s32.totalorder 1, %s20
      %p405 = scmp.lt.s32.totalorder %s20, 3
      %p406 = pnand %p404, %p405
      %p407 = pneg %p406
      // Predicated region
      $region9: #{transformer_encoder_forward.1} parent=5 // pred_check
        _
      $region10: #{transformer_encoder_forward.1} parent=5 // pred_check_branch
        %409 = sbr.rel (%p406) target = $region12
      $region11: #{transformer_encoder_forward.1} parent=5 // pred_region
        %s410 = ssub.s32 %s20, 1
        // Predicated region
        $region13: #{transformer_encoder_forward.1} parent=11 // pred_check
          %p411 = pneg %p58
        $region14: #{transformer_encoder_forward.1} parent=11 // pred_check_branch
          %413 = sbr.rel (%p411) target = $region16
        $region15: #{transformer_encoder_forward.1} parent=11 // pred_region
          %s414 = smul.u32 2, %s29
          %p415 = scmp.lt.s32.totalorder %s414, 1
          %s416 = scalar_select %p415, %s414, 1
          %s417 = smul.addr %s416, 8
          %s418 = scalar_lea.vmem %s0, %s417
          %s419 = smul.u32 2, %s29
        $region16: #{transformer_encoder_forward.1} parent=11 // pred_fallthru
          _
        // Predicated region
        $region17: #{transformer_encoder_forward.1} parent=11 // pred_check
          %p420 = pneg %p84
        $region18: #{transformer_encoder_forward.1} parent=11 // pred_check_branch
          %422 = sbr.rel (%p420) target = $region20
        $region19: #{transformer_encoder_forward.1} parent=11 // pred_region
          %s423 = smul.u32 2, %s29
          %p424 = scmp.lt.s32.totalorder %s423, 1
          %s425 = scalar_select %p424, %s423, 1
          %s426 = smul.addr %s425, 8
          %s427 = scalar_lea.vmem %s1, %s426
          %s428 = smul.u32 2, %s29
        $region20: #{transformer_encoder_forward.1} parent=11 // pred_fallthru
          _
      $region12: #{transformer_encoder_forward.1} parent=5 // pred_fallthru
        _
      %p429 = scmp.lt.s32.totalorder %s20, 2
      // Predicated region
      $region21: #{transformer_encoder_forward.1} parent=5 // pred_check
        %p430 = pneg %p429
      $region22: #{transformer_encoder_forward.1} parent=5 // pred_check_branch
        %432 = sbr.rel (%p430) target = $region24
      $region23: #{transformer_encoder_forward.1} parent=5 // pred_region
        // Predicated region
        $region25: #{transformer_encoder_forward.1} parent=23 // pred_check
          %p433 = pneg %p104
        $region26: #{transformer_encoder_forward.1} parent=23 // pred_check_branch
          %435 = sbr.rel (%p433) target = $region28
        $region27: #{transformer_encoder_forward.1} parent=23 // pred_region
          %p436 = scmp.lt.s32.totalorder %s28, 1
          %s437 = scalar_select %p436, %s28, 1
          %s438 = scalar_lea.vmem %s2, %s437
        $region28: #{transformer_encoder_forward.1} parent=23 // pred_fallthru
          _
        // Predicated region
        $region29: #{transformer_encoder_forward.1} parent=23 // pred_check
          %p439 = pneg %p130
        $region30: #{transformer_encoder_forward.1} parent=23 // pred_check_branch
          %441 = sbr.rel (%p439) target = $region32
        $region31: #{transformer_encoder_forward.1} parent=23 // pred_region
          %p442 = scmp.lt.s32.totalorder %s28, 1
          %s443 = scalar_select %p442, %s28, 1
          %s444 = scalar_lea.vmem %s3, %s443
        $region32: #{transformer_encoder_forward.1} parent=23 // pred_fallthru
          _
        // Predicated region
        $region33: #{transformer_encoder_forward.1} parent=23 // pred_check
          %p445 = pneg %p156
        $region34: #{transformer_encoder_forward.1} parent=23 // pred_check_branch
          %447 = sbr.rel (%p445) target = $region36
        $region35: #{transformer_encoder_forward.1} parent=23 // pred_region
          %p448 = scmp.lt.s32.totalorder %s28, 1
          %s449 = scalar_select %p448, %s28, 1
          %s450 = smul.addr %s449, 12
          %s451 = smul.addr %s450, 8
          %s452 = scalar_lea.vmem %s4, %s451
        $region36: #{transformer_encoder_forward.1} parent=23 // pred_fallthru
          _
        // Predicated region
        $region37: #{transformer_encoder_forward.1} parent=23 // pred_check
          %p453 = pneg %p182
        $region38: #{transformer_encoder_forward.1} parent=23 // pred_check_branch
          %455 = sbr.rel (%p453) target = $region40
        $region39: #{transformer_encoder_forward.1} parent=23 // pred_region
          %p456 = scmp.lt.s32.totalorder %s28, 1
          %s457 = scalar_select %p456, %s28, 1
          %s458 = smul.addr %s457, 4
          %s459 = smul.addr %s458, 8
          %s460 = scalar_lea.vmem %s5, %s459
        $region40: #{transformer_encoder_forward.1} parent=23 // pred_fallthru
          _
        // Predicated region
        $region41: #{transformer_encoder_forward.1} parent=23 // pred_check
          %p461 = pneg %p208
        $region42: #{transformer_encoder_forward.1} parent=23 // pred_check_branch
          %463 = sbr.rel (%p461) target = $region44
        $region43: #{transformer_encoder_forward.1} parent=23 // pred_region
          %p464 = scmp.lt.s32.totalorder %s28, 1
          %s465 = scalar_select %p464, %s28, 1
          %s466 = scalar_lea.vmem %s6, %s465
        $region44: #{transformer_encoder_forward.1} parent=23 // pred_fallthru
          _
        // Predicated region
        $region45: #{transformer_encoder_forward.1} parent=23 // pred_check
          %p467 = pneg %p234
        $region46: #{transformer_encoder_forward.1} parent=23 // pred_check_branch
          %469 = sbr.rel (%p467) target = $region48
        $region47: #{transformer_encoder_forward.1} parent=23 // pred_region
          %p470 = scmp.lt.s32.totalorder %s28, 1
          %s471 = scalar_select %p470, %s28, 1
          %s472 = scalar_lea.vmem %s7, %s471
        $region48: #{transformer_encoder_forward.1} parent=23 // pred_fallthru
          _
        // Predicated region
        $region49: #{transformer_encoder_forward.1} parent=23 // pred_check
          %p473 = pneg %p260
        $region50: #{transformer_encoder_forward.1} parent=23 // pred_check_branch
          %475 = sbr.rel (%p473) target = $region52
        $region51: #{transformer_encoder_forward.1} parent=23 // pred_region
          %p476 = scmp.lt.s32.totalorder %s28, 1
          %s477 = scalar_select %p476, %s28, 1
          %s478 = scalar_lea.vmem %s8, %s477
        $region52: #{transformer_encoder_forward.1} parent=23 // pred_fallthru
          _
        // Predicated region
        $region53: #{transformer_encoder_forward.1} parent=23 // pred_check
          %p479 = pneg %p286
        $region54: #{transformer_encoder_forward.1} parent=23 // pred_check_branch
          %481 = sbr.rel (%p479) target = $region56
        $region55: #{transformer_encoder_forward.1} parent=23 // pred_region
          %p482 = scmp.lt.s32.totalorder %s28, 1
          %s483 = scalar_select %p482, %s28, 1
          %s484 = smul.addr %s483, 16
          %s485 = smul.addr %s484, 8
          %s486 = scalar_lea.vmem %s9, %s485
        $region56: #{transformer_encoder_forward.1} parent=23 // pred_fallthru
          _
        // Predicated region
        $region57: #{transformer_encoder_forward.1} parent=23 // pred_check
          %p487 = pneg %p312
        $region58: #{transformer_encoder_forward.1} parent=23 // pred_check_branch
          %489 = sbr.rel (%p487) target = $region60
        $region59: #{transformer_encoder_forward.1} parent=23 // pred_region
          %p490 = scmp.lt.s32.totalorder %s28, 1
          %s491 = scalar_select %p490, %s28, 1
          %s492 = scalar_lea.vmem %s10, %s491
        $region60: #{transformer_encoder_forward.1} parent=23 // pred_fallthru
          _
        // Predicated region
        $region61: #{transformer_encoder_forward.1} parent=23 // pred_check
          %p493 = pneg %p338
        $region62: #{transformer_encoder_forward.1} parent=23 // pred_check_branch
          %495 = sbr.rel (%p493) target = $region64
        $region63: #{transformer_encoder_forward.1} parent=23 // pred_region
          %p496 = scmp.lt.s32.totalorder %s28, 1
          %s497 = scalar_select %p496, %s28, 1
          %s498 = smul.addr %s497, 4
          %s499 = smul.addr %s498, 8
          %s500 = scalar_lea.vmem %s11, %s499
        $region64: #{transformer_encoder_forward.1} parent=23 // pred_fallthru
          _
        // Predicated region
        $region65: #{transformer_encoder_forward.1} parent=23 // pred_check
          %p501 = pneg %p364
        $region66: #{transformer_encoder_forward.1} parent=23 // pred_check_branch
          %503 = sbr.rel (%p501) target = $region68
        $region67: #{transformer_encoder_forward.1} parent=23 // pred_region
          %p504 = scmp.lt.s32.totalorder %s28, 1
          %s505 = scalar_select %p504, %s28, 1
          %s506 = scalar_lea.vmem %s12, %s505
        $region68: #{transformer_encoder_forward.1} parent=23 // pred_fallthru
          _
      $region24: #{transformer_encoder_forward.1} parent=5 // pred_fallthru
        _
      %p507 = scmp.le.s32.totalorder 1, %s20
      %p508 = scmp.lt.s32.totalorder %s20, 3
      %p509 = pnand %p507, %p508
      %p510 = pneg %p509
      // Predicated region
      $region69: #{transformer_encoder_forward.1} parent=5 // pred_check
        _
      $region70: #{transformer_encoder_forward.1} parent=5 // pred_check_branch
        %512 = sbr.rel (%p509) target = $region72
      $region71: #{transformer_encoder_forward.1} parent=5 // pred_region
        %s513 = ssub.s32 %s20, 1
        %s514 = smul.u32 2, %s29
        %p515 = scmp.lt.s32.totalorder %s514, 1
        %s516 = scalar_select %p515, %s514, 1
        %s517 = smul.addr %s516, 8
        %s518 = scalar_lea.vmem %s0, %s517
        %p519 = pneg %p58
        %p520 = pneg %p55
        %s521 = smul.u32 2, %s29
        %p522 = scmp.lt.s32.totalorder %s521, 1
        %s523 = scalar_select %p522, %s521, 1
        %s524 = smul.addr %s523, 8
        %s525 = scalar_lea.vmem %s1, %s524
        %p526 = pneg %p84
        %p527 = pneg %p81
        %p528 = scmp.lt.s32.totalorder %s30, 1
        %s529 = scalar_select %p528, %s30, 1
        %s530 = scalar_lea.vmem %s2, %s529
        %p531 = pneg %p110
        %p532 = pneg %p107
        %p533 = scmp.lt.s32.totalorder %s30, 1
        %s534 = scalar_select %p533, %s30, 1
        %s535 = scalar_lea.vmem %s3, %s534
        %p536 = pneg %p136
        %p537 = pneg %p133
        %p538 = scmp.lt.s32.totalorder %s30, 1
        %s539 = scalar_select %p538, %s30, 1
        %s540 = smul.addr %s539, 12
        %s541 = smul.addr %s540, 8
        %s542 = scalar_lea.vmem %s4, %s541
        %p543 = pneg %p162
        %p544 = pneg %p159
        %p545 = scmp.lt.s32.totalorder %s30, 1
        %s546 = scalar_select %p545, %s30, 1
        %s547 = smul.addr %s546, 4
        %s548 = smul.addr %s547, 8
        %s549 = scalar_lea.vmem %s5, %s548
        %p550 = pneg %p188
        %p551 = pneg %p185
        %p552 = scmp.lt.s32.totalorder %s30, 1
        %s553 = scalar_select %p552, %s30, 1
        %s554 = scalar_lea.vmem %s6, %s553
        %p555 = pneg %p214
        %p556 = pneg %p211
        %p557 = scmp.lt.s32.totalorder %s30, 1
        %s558 = scalar_select %p557, %s30, 1
        %s559 = scalar_lea.vmem %s7, %s558
        %p560 = pneg %p240
        %p561 = pneg %p237
        %p562 = scmp.lt.s32.totalorder %s30, 1
        %s563 = scalar_select %p562, %s30, 1
        %s564 = scalar_lea.vmem %s8, %s563
        %p565 = pneg %p266
        %p566 = pneg %p263
        %p567 = scmp.lt.s32.totalorder %s30, 1
        %s568 = scalar_select %p567, %s30, 1
        %s569 = smul.addr %s568, 16
        %s570 = smul.addr %s569, 8
        %s571 = scalar_lea.vmem %s9, %s570
        %p572 = pneg %p292
        %p573 = pneg %p289
        %p574 = scmp.lt.s32.totalorder %s30, 1
        %s575 = scalar_select %p574, %s30, 1
        %s576 = scalar_lea.vmem %s10, %s575
        %p577 = pneg %p318
        %p578 = pneg %p315
        %p579 = scmp.lt.s32.totalorder %s30, 1
        %s580 = scalar_select %p579, %s30, 1
        %s581 = smul.addr %s580, 4
        %s582 = smul.addr %s581, 8
        %s583 = scalar_lea.vmem %s11, %s582
        %p584 = pneg %p344
        %p585 = pneg %p341
        %p586 = scmp.lt.s32.totalorder %s30, 1
        %s587 = scalar_select %p586, %s30, 1
        %s588 = scalar_lea.vmem %s12, %s587
        %p589 = pneg %p370
        %p590 = pneg %p367
        %p591 = pneg %p396
        %p592 = pneg %p393
        %s593 = smul.u32 2, %s29
        %p594 = scmp.lt.s32.totalorder %s593, 1
        %s595 = scalar_select %p594, %s593, 1
        %s596 = smul.addr %s595, 8
        %s597 = scalar_lea.vmem %s0, %s596
        %s598 = smul.u32 2, %s29
        %s599 = smul.u32 2, %s29
        %p600 = scmp.lt.s32.totalorder %s599, 1
        %s601 = scalar_select %p600, %s599, 1
        %s602 = smul.addr %s601, 8
        %s603 = scalar_lea.vmem %s1, %s602
        %s604 = smul.u32 2, %s29
        %p605 = scmp.lt.s32.totalorder %s30, 1
        %s606 = scalar_select %p605, %s30, 1
        %s607 = scalar_lea.vmem %s2, %s606
        %p608 = scmp.lt.s32.totalorder %s30, 1
        %s609 = scalar_select %p608, %s30, 1
        %s610 = scalar_lea.vmem %s3, %s609
        %p611 = scmp.lt.s32.totalorder %s30, 1
        %s612 = scalar_select %p611, %s30, 1
        %s613 = smul.addr %s612, 12
        %s614 = smul.addr %s613, 8
        %s615 = scalar_lea.vmem %s4, %s614
        %p616 = scmp.lt.s32.totalorder %s30, 1
        %s617 = scalar_select %p616, %s30, 1
        %s618 = smul.addr %s617, 4
        %s619 = smul.addr %s618, 8
        %s620 = scalar_lea.vmem %s5, %s619
        %p621 = scmp.lt.s32.totalorder %s30, 1
        %s622 = scalar_select %p621, %s30, 1
        %s623 = scalar_lea.vmem %s6, %s622
        %p624 = scmp.lt.s32.totalorder %s30, 1
        %s625 = scalar_select %p624, %s30, 1
        %s626 = scalar_lea.vmem %s7, %s625
        %p627 = scmp.lt.s32.totalorder %s30, 1
        %s628 = scalar_select %p627, %s30, 1
        %s629 = scalar_lea.vmem %s8, %s628
        %p630 = scmp.lt.s32.totalorder %s30, 1
        %s631 = scalar_select %p630, %s30, 1
        %s632 = smul.addr %s631, 16
        %s633 = smul.addr %s632, 8
        %s634 = scalar_lea.vmem %s9, %s633
        %p635 = scmp.lt.s32.totalorder %s30, 1
        %s636 = scalar_select %p635, %s30, 1
        %s637 = scalar_lea.vmem %s10, %s636
        %p638 = scmp.lt.s32.totalorder %s30, 1
        %s639 = scalar_select %p638, %s30, 1
        %s640 = smul.addr %s639, 4
        %s641 = smul.addr %s640, 8
        %s642 = scalar_lea.vmem %s11, %s641
        %p643 = scmp.lt.s32.totalorder %s30, 1
        %s644 = scalar_select %p643, %s30, 1
        %s645 = scalar_lea.vmem %s12, %s644
        %s646 = smul.u32 2, %s29
        %p647 = scmp.eq.s32.totalorder %s30, 0
        // Predicated region
        $region73: #{transformer_encoder_forward.1} parent=71 // pred_check
          %p648 = pneg %p647
        $region74: #{transformer_encoder_forward.1} parent=71 // pred_check_branch
          %650 = sbr.rel (%p648) target = $region76
        $region75: #{transformer_encoder_forward.1} parent=71 // pred_region
          %v651 = vld [vmem:[%s597] sm:$0xff]
          %v652 = vld [vmem:[%s597 + $0x8] sm:$0xff]
          %vm653 = vcmask 261120
          %654 = vst.msk [vmem:[#allocation2] sm:$0xff] %vm653, %v651
          %655 = vst.msk [vmem:[#allocation2 + $0x8] sm:$0xff] %vm653, %v652
        $region76: #{transformer_encoder_forward.1} parent=71 // pred_fallthru
          _
        %v656 = vld [vmem:[#allocation2] sm:$0xff]
        %v657 = vld [vmem:[#allocation2 + $0x8] sm:$0xff]
        %v658 = vld [vmem:[%s603] sm:$0xff]
        %v659 = vld [vmem:[%s603 + $0x8] sm:$0xff]
        %v660 = vadd.f32 %v656, %v658
        %v661 = vadd.f32 %v657, %v659
        %v662 = vld [vmem:[%s607] sm:$0x1]
        %v663 = vld [vmem:[%s610] sm:$0x1]
        %vm664 = vcmask 261120
        %v665 = vsel %vm664, %v660, 0.0
        %666 = vadd.xlane.f32.xlu0 %v665
        %v667 = vpop.xlane.xlu0 %666
        %v668 = vsel %vm664, %v661, 0.0
        %669 = vadd.xlane.f32.xlu0 %v668
        %v670 = vpop.xlane.xlu0 %669
        %v671 = vrcp.pop 32.0
        %v672 = vmul.f32 %v667, %v671
        %v673 = vmul.f32 %v670, %v671
        %v674 = vsub.f32 %v660, %v672
        %v675 = vsub.f32 %v661, %v673
        %v676 = vmul.f32 %v674, %v674
        %v677 = vmul.f32 %v675, %v675
        %v678 = vsel %vm664, %v676, 0.0
        %679 = vadd.xlane.f32.xlu0 %v678
        %v680 = vpop.xlane.xlu0 %679
        %v681 = vsel %vm664, %v677, 0.0
        %682 = vadd.xlane.f32.xlu0 %v681
        %v683 = vpop.xlane.xlu0 %682
        %v684 = vmul.f32 %v680, %v671
        %v685 = vmul.f32 %v683, %v671
        %v686 = vadd.f32 %v684, 1e-05
        %v687 = vadd.f32 %v685, 1e-05
        %v688 = vrsqrt.pop %v686
        %v689 = vrsqrt.pop %v687
        %v691 = vlaneseq
        %v692 = vshrl.u32 %v691, 7
        %v693 = vsub.s32 0, %v692
        %v694 = vrot.slane %v662, %v693
        %v696 = vmul.f32 %v688, %v694
        %v697 = vmul.f32 %v689, %v694
        %v698 = vmul.f32 %v674, %v696
        %v699 = vmul.f32 %v675, %v697
        %v701 = vlaneseq
        %v702 = vshrl.u32 %v701, 7
        %v703 = vsub.s32 0, %v702
        %v704 = vrot.slane %v663, %v703
        %v706 = vadd.f32 %v698, %v704
        %v707 = vadd.f32 %v699, %v704
        %v708 = vld [vmem:[%s615] sm:$0xff]
        %v709 = vld [vmem:[%s615 + $0x8] sm:$0xff]
        %v710 = vld [vmem:[%s615 + $0x10] sm:$0xff]
        %v711 = vld [vmem:[%s615 + $0x18] sm:$0xff]
        %v713 = vsel %vm664, %v706, 0
        %v716 = vsel %vm664, %v707, 0
        %v719 = vsel %vm664, %v708, 0
        %v722 = vsel %vm664, %v709, 0
        %v725 = vsel %vm664, %v710, 0
        %v728 = vsel %vm664, %v711, 0
        %730 = vmatprep.subr.mxu0 0.0
        %731 = vmatpush1.xpose.msra.mxu0 0.0
        %732 = vmatprep.subr.mxu0 0.0
        %733 = vmatpush1.xpose.msra.mxu0 0.0
        %734 = vmatprep.subr.mxu0 0.0
        %735 = vmatpush1.xpose.msra.mxu0 0.0
        %736 = vmatprep.subr.mxu0 0.0
        %737 = vmatpush1.xpose.msra.mxu0 0.0
        %738 = vmatprep.subr.mxu0 0.0
        %739 = vmatpush1.xpose.msra.mxu0 0.0
        %740 = vmatprep.subr.mxu0 0.0
        %741 = vmatpush1.xpose.msra.mxu0 0.0
        %742 = vmatprep.subr.mxu0 0.0
        %743 = vmatpush1.xpose.msra.mxu0 0.0
        %744 = vmatprep.subr.mxu0 0.0
        %745 = vmatpush1.xpose.msra.mxu0 0.0
        %746 = vmatprep.subr.mxu0 0.0
        %747 = vmatpush1.xpose.msra.mxu0 0.0
        %748 = vmatprep.subr.mxu0 0.0
        %749 = vmatpush1.xpose.msra.mxu0 0.0
        %750 = vmatprep.subr.mxu0 0.0
        %751 = vmatpush1.xpose.msra.mxu0 0.0
        %752 = vmatprep.subr.mxu0 0.0
        %753 = vmatpush1.xpose.msra.mxu0 0.0
        %754 = vmatprep.subr.mxu0 0.0
        %755 = vmatpush1.xpose.msra.mxu0 %v728
        %756 = vmatprep.subr.mxu0 0.0
        %757 = vmatpush1.xpose.msra.mxu0 %v725
        %758 = vmatprep.subr.mxu0 0.0
        %759 = vmatpush1.xpose.msra.mxu0 %v722
        %760 = vmatprep.subr.mxu0 0.0
        %761 = vmatpush1.xpose.msra.mxu0 %v719
        %762 = vmatprep.subr.mxu0 0.0
        %763 = vmatpush2.xpose.msra.mxu0 0.0
        %764 = vmatprep.subr.mxu0 0.0
        %765 = vmatpush2.xpose.msra.mxu0 0.0
        %766 = vmatprep.subr.mxu0 0.0
        %767 = vmatpush2.xpose.msra.mxu0 0.0
        %768 = vmatprep.subr.mxu0 0.0
        %769 = vmatpush2.xpose.msra.mxu0 0.0
        %770 = vmatprep.subr.mxu0 0.0
        %771 = vmatpush2.xpose.msra.mxu0 0.0
        %772 = vmatprep.subr.mxu0 0.0
        %773 = vmatpush2.xpose.msra.mxu0 0.0
        %774 = vmatprep.subr.mxu0 0.0
        %775 = vmatpush2.xpose.msra.mxu0 0.0
        %776 = vmatprep.subr.mxu0 0.0
        %777 = vmatpush2.xpose.msra.mxu0 0.0
        %778 = vmatprep.subr.mxu0 0.0
        %779 = vmatpush2.xpose.msra.mxu0 0.0
        %780 = vmatprep.subr.mxu0 0.0
        %781 = vmatpush2.xpose.msra.mxu0 0.0
        %782 = vmatprep.subr.mxu0 0.0
        %783 = vmatpush2.xpose.msra.mxu0 0.0
        %784 = vmatprep.subr.mxu0 0.0
        %785 = vmatpush2.xpose.msra.mxu0 0.0
        %786 = vmatprep.subr.mxu0 0.0
        %787 = vmatpush2.xpose.msra.mxu0 0.0
        %788 = vmatprep.subr.mxu0 0.0
        %789 = vmatpush2.xpose.msra.mxu0 0.0
        %790 = vmatprep.subr.mxu0 0.0
        %791 = vmatpush2.xpose.msra.mxu0 0.0
        %792 = vmatprep.subr.mxu0 0.0
        %793 = vmatpush2.xpose.msra.mxu0 0.0
        %794 = vmatprep.mubr.f32.mxu0 0.0
        %795 = vmatmul.mubr.f32.gmra.mxu0 %v713
        %v796 = vpop.f32.mrf.mxu0
        %v797 = vadd.f32 0.0, %v796
        %v798 = vpop.f32.mrf.mxu0
        %799 = vmatprep.mubr.f32.mxu0 0.0
        %800 = vmatmul.mubr.f32.gmra.mxu0 %v716
        %v801 = vpop.f32.mrf.mxu0
        %v802 = vadd.f32 0.0, %v801
        %v803 = vpop.f32.mrf.mxu0
        %804 = vdwg.mxu0
        %v805 = vld [vmem:[%s615 + $0x20] sm:$0xff]
        %v806 = vld [vmem:[%s615 + $0x28] sm:$0xff]
        %v807 = vld [vmem:[%s615 + $0x30] sm:$0xff]
        %v808 = vld [vmem:[%s615 + $0x38] sm:$0xff]
        %v810 = vsel %vm664, %v805, 0
        %v813 = vsel %vm664, %v806, 0
        %v816 = vsel %vm664, %v807, 0
        %v819 = vsel %vm664, %v808, 0
        %821 = vmatprep.subr.mxu0 0.0
        %822 = vmatpush1.xpose.msra.mxu0 0.0
        %823 = vmatprep.subr.mxu0 0.0
        %824 = vmatpush1.xpose.msra.mxu0 0.0
        %825 = vmatprep.subr.mxu0 0.0
        %826 = vmatpush1.xpose.msra.mxu0 0.0
        %827 = vmatprep.subr.mxu0 0.0
        %828 = vmatpush1.xpose.msra.mxu0 0.0
        %829 = vmatprep.subr.mxu0 0.0
        %830 = vmatpush1.xpose.msra.mxu0 0.0
        %831 = vmatprep.subr.mxu0 0.0
        %832 = vmatpush1.xpose.msra.mxu0 0.0
        %833 = vmatprep.subr.mxu0 0.0
        %834 = vmatpush1.xpose.msra.mxu0 0.0
        %835 = vmatprep.subr.mxu0 0.0
        %836 = vmatpush1.xpose.msra.mxu0 0.0
        %837 = vmatprep.subr.mxu0 0.0
        %838 = vmatpush1.xpose.msra.mxu0 0.0
        %839 = vmatprep.subr.mxu0 0.0
        %840 = vmatpush1.xpose.msra.mxu0 0.0
        %841 = vmatprep.subr.mxu0 0.0
        %842 = vmatpush1.xpose.msra.mxu0 0.0
        %843 = vmatprep.subr.mxu0 0.0
        %844 = vmatpush1.xpose.msra.mxu0 0.0
        %845 = vmatprep.subr.mxu0 0.0
        %846 = vmatpush1.xpose.msra.mxu0 %v819
        %847 = vmatprep.subr.mxu0 0.0
        %848 = vmatpush1.xpose.msra.mxu0 %v816
        %849 = vmatprep.subr.mxu0 0.0
        %850 = vmatpush1.xpose.msra.mxu0 %v813
        %851 = vmatprep.subr.mxu0 0.0
        %852 = vmatpush1.xpose.msra.mxu0 %v810
        %853 = vmatprep.subr.mxu0 0.0
        %854 = vmatpush2.xpose.msra.mxu0 0.0
        %855 = vmatprep.subr.mxu0 0.0
        %856 = vmatpush2.xpose.msra.mxu0 0.0
        %857 = vmatprep.subr.mxu0 0.0
        %858 = vmatpush2.xpose.msra.mxu0 0.0
        %859 = vmatprep.subr.mxu0 0.0
        %860 = vmatpush2.xpose.msra.mxu0 0.0
        %861 = vmatprep.subr.mxu0 0.0
        %862 = vmatpush2.xpose.msra.mxu0 0.0
        %863 = vmatprep.subr.mxu0 0.0
        %864 = vmatpush2.xpose.msra.mxu0 0.0
        %865 = vmatprep.subr.mxu0 0.0
        %866 = vmatpush2.xpose.msra.mxu0 0.0
        %867 = vmatprep.subr.mxu0 0.0
        %868 = vmatpush2.xpose.msra.mxu0 0.0
        %869 = vmatprep.subr.mxu0 0.0
        %870 = vmatpush2.xpose.msra.mxu0 0.0
        %871 = vmatprep.subr.mxu0 0.0
        %872 = vmatpush2.xpose.msra.mxu0 0.0
        %873 = vmatprep.subr.mxu0 0.0
        %874 = vmatpush2.xpose.msra.mxu0 0.0
        %875 = vmatprep.subr.mxu0 0.0
        %876 = vmatpush2.xpose.msra.mxu0 0.0
        %877 = vmatprep.subr.mxu0 0.0
        %878 = vmatpush2.xpose.msra.mxu0 0.0
        %879 = vmatprep.subr.mxu0 0.0
        %880 = vmatpush2.xpose.msra.mxu0 0.0
        %881 = vmatprep.subr.mxu0 0.0
        %882 = vmatpush2.xpose.msra.mxu0 0.0
        %883 = vmatprep.subr.mxu0 0.0
        %884 = vmatpush2.xpose.msra.mxu0 0.0
        %885 = vmatprep.mubr.f32.mxu0 0.0
        %886 = vmatmul.mubr.f32.gmra.mxu0 %v713
        %v887 = vpop.f32.mrf.mxu0
        %v888 = vadd.f32 0.0, %v887
        %v889 = vpop.f32.mrf.mxu0
        %890 = vmatprep.mubr.f32.mxu0 0.0
        %891 = vmatmul.mubr.f32.gmra.mxu0 %v716
        %v892 = vpop.f32.mrf.mxu0
        %v893 = vadd.f32 0.0, %v892
        %v894 = vpop.f32.mrf.mxu0
        %895 = vdwg.mxu0
        %v896 = vld [vmem:[%s615 + $0x40] sm:$0xff]
        %v897 = vld [vmem:[%s615 + $0x48] sm:$0xff]
        %v898 = vld [vmem:[%s615 + $0x50] sm:$0xff]
        %v899 = vld [vmem:[%s615 + $0x58] sm:$0xff]
        %v901 = vsel %vm664, %v896, 0
        %v904 = vsel %vm664, %v897, 0
        %v907 = vsel %vm664, %v898, 0
        %v910 = vsel %vm664, %v899, 0
        %912 = vmatprep.subr.mxu0 0.0
        %913 = vmatpush1.xpose.msra.mxu0 0.0
        %914 = vmatprep.subr.mxu0 0.0
        %915 = vmatpush1.xpose.msra.mxu0 0.0
        %916 = vmatprep.subr.mxu0 0.0
        %917 = vmatpush1.xpose.msra.mxu0 0.0
        %918 = vmatprep.subr.mxu0 0.0
        %919 = vmatpush1.xpose.msra.mxu0 0.0
        %920 = vmatprep.subr.mxu0 0.0
        %921 = vmatpush1.xpose.msra.mxu0 0.0
        %922 = vmatprep.subr.mxu0 0.0
        %923 = vmatpush1.xpose.msra.mxu0 0.0
        %924 = vmatprep.subr.mxu0 0.0
        %925 = vmatpush1.xpose.msra.mxu0 0.0
        %926 = vmatprep.subr.mxu0 0.0
        %927 = vmatpush1.xpose.msra.mxu0 0.0
        %928 = vmatprep.subr.mxu0 0.0
        %929 = vmatpush1.xpose.msra.mxu0 0.0
        %930 = vmatprep.subr.mxu0 0.0
        %931 = vmatpush1.xpose.msra.mxu0 0.0
        %932 = vmatprep.subr.mxu0 0.0
        %933 = vmatpush1.xpose.msra.mxu0 0.0
        %934 = vmatprep.subr.mxu0 0.0
        %935 = vmatpush1.xpose.msra.mxu0 0.0
        %936 = vmatprep.subr.mxu0 0.0
        %937 = vmatpush1.xpose.msra.mxu0 %v910
        %938 = vmatprep.subr.mxu0 0.0
        %939 = vmatpush1.xpose.msra.mxu0 %v907
        %940 = vmatprep.subr.mxu0 0.0
        %941 = vmatpush1.xpose.msra.mxu0 %v904
        %942 = vmatprep.subr.mxu0 0.0
        %943 = vmatpush1.xpose.msra.mxu0 %v901
        %944 = vmatprep.subr.mxu0 0.0
        %945 = vmatpush2.xpose.msra.mxu0 0.0
        %946 = vmatprep.subr.mxu0 0.0
        %947 = vmatpush2.xpose.msra.mxu0 0.0
        %948 = vmatprep.subr.mxu0 0.0
        %949 = vmatpush2.xpose.msra.mxu0 0.0
        %950 = vmatprep.subr.mxu0 0.0
        %951 = vmatpush2.xpose.msra.mxu0 0.0
        %952 = vmatprep.subr.mxu0 0.0
        %953 = vmatpush2.xpose.msra.mxu0 0.0
        %954 = vmatprep.subr.mxu0 0.0
        %955 = vmatpush2.xpose.msra.mxu0 0.0
        %956 = vmatprep.subr.mxu0 0.0
        %957 = vmatpush2.xpose.msra.mxu0 0.0
        %958 = vmatprep.subr.mxu0 0.0
        %959 = vmatpush2.xpose.msra.mxu0 0.0
        %960 = vmatprep.subr.mxu0 0.0
        %961 = vmatpush2.xpose.msra.mxu0 0.0
        %962 = vmatprep.subr.mxu0 0.0
        %963 = vmatpush2.xpose.msra.mxu0 0.0
        %964 = vmatprep.subr.mxu0 0.0
        %965 = vmatpush2.xpose.msra.mxu0 0.0
        %966 = vmatprep.subr.mxu0 0.0
        %967 = vmatpush2.xpose.msra.mxu0 0.0
        %968 = vmatprep.subr.mxu0 0.0
        %969 = vmatpush2.xpose.msra.mxu0 0.0
        %970 = vmatprep.subr.mxu0 0.0
        %971 = vmatpush2.xpose.msra.mxu0 0.0
        %972 = vmatprep.subr.mxu0 0.0
        %973 = vmatpush2.xpose.msra.mxu0 0.0
        %974 = vmatprep.subr.mxu0 0.0
        %975 = vmatpush2.xpose.msra.mxu0 0.0
        %976 = vmatprep.mubr.f32.mxu0 0.0
        %977 = vmatmul.mubr.f32.gmra.mxu0 %v713
        %v978 = vpop.f32.mrf.mxu0
        %v979 = vadd.f32 0.0, %v978
        %v980 = vpop.f32.mrf.mxu0
        %981 = vmatprep.mubr.f32.mxu0 0.0
        %982 = vmatmul.mubr.f32.gmra.mxu0 %v716
        %v983 = vpop.f32.mrf.mxu0
        %v984 = vadd.f32 0.0, %v983
        %v985 = vpop.f32.mrf.mxu0
        %986 = vdwg.mxu0
        %vm987 = vcmask 64512
        %v989 = vsel %vm987, %v797, 0
        %v992 = vsel %vm987, %v888, 0
        %994 = vmatprep.subr.mxu0 0.0
        %995 = vmatpush1.xpose.msra.mxu0 0.0
        %996 = vmatprep.subr.mxu0 0.0
        %997 = vmatpush1.xpose.msra.mxu0 0.0
        %998 = vmatprep.subr.mxu0 0.0
        %999 = vmatpush1.xpose.msra.mxu0 0.0
        %1000 = vmatprep.subr.mxu0 0.0
        %1001 = vmatpush1.xpose.msra.mxu0 0.0
        %1002 = vmatprep.subr.mxu0 0.0
        %1003 = vmatpush1.xpose.msra.mxu0 0.0
        %1004 = vmatprep.subr.mxu0 0.0
        %1005 = vmatpush1.xpose.msra.mxu0 0.0
        %1006 = vmatprep.subr.mxu0 0.0
        %1007 = vmatpush1.xpose.msra.mxu0 0.0
        %1008 = vmatprep.subr.mxu0 0.0
        %1009 = vmatpush1.xpose.msra.mxu0 0.0
        %1010 = vmatprep.subr.mxu0 0.0
        %1011 = vmatpush1.xpose.msra.mxu0 0.0
        %1012 = vmatprep.subr.mxu0 0.0
        %1013 = vmatpush1.xpose.msra.mxu0 0.0
        %1014 = vmatprep.subr.mxu0 0.0
        %1015 = vmatpush1.xpose.msra.mxu0 0.0
        %1016 = vmatprep.subr.mxu0 0.0
        %1017 = vmatpush1.xpose.msra.mxu0 0.0
        %1018 = vmatprep.subr.mxu0 0.0
        %1019 = vmatpush1.xpose.msra.mxu0 0.0
        %1020 = vmatprep.subr.mxu0 0.0
        %1021 = vmatpush1.xpose.msra.mxu0 0.0
        %1022 = vmatprep.subr.mxu0 0.0
        %1023 = vmatpush1.xpose.msra.mxu0 0.0
        %1024 = vmatprep.subr.mxu0 0.0
        %1025 = vmatpush1.xpose.msra.mxu0 %v992
        %1026 = vmatprep.subr.mxu0 0.0
        %1027 = vmatpush2.xpose.msra.mxu0 0.0
        %1028 = vmatprep.subr.mxu0 0.0
        %1029 = vmatpush2.xpose.msra.mxu0 0.0
        %1030 = vmatprep.subr.mxu0 0.0
        %1031 = vmatpush2.xpose.msra.mxu0 0.0
        %1032 = vmatprep.subr.mxu0 0.0
        %1033 = vmatpush2.xpose.msra.mxu0 0.0
        %1034 = vmatprep.subr.mxu0 0.0
        %1035 = vmatpush2.xpose.msra.mxu0 0.0
        %1036 = vmatprep.subr.mxu0 0.0
        %1037 = vmatpush2.xpose.msra.mxu0 0.0
        %1038 = vmatprep.subr.mxu0 0.0
        %1039 = vmatpush2.xpose.msra.mxu0 0.0
        %1040 = vmatprep.subr.mxu0 0.0
        %1041 = vmatpush2.xpose.msra.mxu0 0.0
        %1042 = vmatprep.subr.mxu0 0.0
        %1043 = vmatpush2.xpose.msra.mxu0 0.0
        %1044 = vmatprep.subr.mxu0 0.0
        %1045 = vmatpush2.xpose.msra.mxu0 0.0
        %1046 = vmatprep.subr.mxu0 0.0
        %1047 = vmatpush2.xpose.msra.mxu0 0.0
        %1048 = vmatprep.subr.mxu0 0.0
        %1049 = vmatpush2.xpose.msra.mxu0 0.0
        %1050 = vmatprep.subr.mxu0 0.0
        %1051 = vmatpush2.xpose.msra.mxu0 0.0
        %1052 = vmatprep.subr.mxu0 0.0
        %1053 = vmatpush2.xpose.msra.mxu0 0.0
        %1054 = vmatprep.subr.mxu0 0.0
        %1055 = vmatpush2.xpose.msra.mxu0 0.0
        %1056 = vmatprep.subr.mxu0 0.0
        %1057 = vmatpush2.xpose.msra.mxu0 0.0
        %1058 = vmatprep.mubr.f32.mxu0 0.0
        %1059 = vmatmul.mubr.f32.gmra.mxu0 %v989
        %v1060 = vpop.f32.mrf.mxu0
        %v1061 = vadd.f32 0.0, %v1060
        %v1062 = vpop.f32.mrf.mxu0
        %1063 = vdwg.mxu0
        %v1065 = vsel %vm987, %v802, 0
        %v1068 = vsel %vm987, %v893, 0
        %1070 = vmatprep.subr.mxu0 0.0
        %1071 = vmatpush1.xpose.msra.mxu0 0.0
        %1072 = vmatprep.subr.mxu0 0.0
        %1073 = vmatpush1.xpose.msra.mxu0 0.0
        %1074 = vmatprep.subr.mxu0 0.0
        %1075 = vmatpush1.xpose.msra.mxu0 0.0
        %1076 = vmatprep.subr.mxu0 0.0
        %1077 = vmatpush1.xpose.msra.mxu0 0.0
        %1078 = vmatprep.subr.mxu0 0.0
        %1079 = vmatpush1.xpose.msra.mxu0 0.0
        %1080 = vmatprep.subr.mxu0 0.0
        %1081 = vmatpush1.xpose.msra.mxu0 0.0
        %1082 = vmatprep.subr.mxu0 0.0
        %1083 = vmatpush1.xpose.msra.mxu0 0.0
        %1084 = vmatprep.subr.mxu0 0.0
        %1085 = vmatpush1.xpose.msra.mxu0 0.0
        %1086 = vmatprep.subr.mxu0 0.0
        %1087 = vmatpush1.xpose.msra.mxu0 0.0
        %1088 = vmatprep.subr.mxu0 0.0
        %1089 = vmatpush1.xpose.msra.mxu0 0.0
        %1090 = vmatprep.subr.mxu0 0.0
        %1091 = vmatpush1.xpose.msra.mxu0 0.0
        %1092 = vmatprep.subr.mxu0 0.0
        %1093 = vmatpush1.xpose.msra.mxu0 0.0
        %1094 = vmatprep.subr.mxu0 0.0
        %1095 = vmatpush1.xpose.msra.mxu0 0.0
        %1096 = vmatprep.subr.mxu0 0.0
        %1097 = vmatpush1.xpose.msra.mxu0 0.0
        %1098 = vmatprep.subr.mxu0 0.0
        %1099 = vmatpush1.xpose.msra.mxu0 0.0
        %1100 = vmatprep.subr.mxu0 0.0
        %1101 = vmatpush1.xpose.msra.mxu0 %v1068
        %1102 = vmatprep.subr.mxu0 0.0
        %1103 = vmatpush2.xpose.msra.mxu0 0.0
        %1104 = vmatprep.subr.mxu0 0.0
        %1105 = vmatpush2.xpose.msra.mxu0 0.0
        %1106 = vmatprep.subr.mxu0 0.0
        %1107 = vmatpush2.xpose.msra.mxu0 0.0
        %1108 = vmatprep.subr.mxu0 0.0
        %1109 = vmatpush2.xpose.msra.mxu0 0.0
        %1110 = vmatprep.subr.mxu0 0.0
        %1111 = vmatpush2.xpose.msra.mxu0 0.0
        %1112 = vmatprep.subr.mxu0 0.0
        %1113 = vmatpush2.xpose.msra.mxu0 0.0
        %1114 = vmatprep.subr.mxu0 0.0
        %1115 = vmatpush2.xpose.msra.mxu0 0.0
        %1116 = vmatprep.subr.mxu0 0.0
        %1117 = vmatpush2.xpose.msra.mxu0 0.0
        %1118 = vmatprep.subr.mxu0 0.0
        %1119 = vmatpush2.xpose.msra.mxu0 0.0
        %1120 = vmatprep.subr.mxu0 0.0
        %1121 = vmatpush2.xpose.msra.mxu0 0.0
        %1122 = vmatprep.subr.mxu0 0.0
        %1123 = vmatpush2.xpose.msra.mxu0 0.0
        %1124 = vmatprep.subr.mxu0 0.0
        %1125 = vmatpush2.xpose.msra.mxu0 0.0
        %1126 = vmatprep.subr.mxu0 0.0
        %1127 = vmatpush2.xpose.msra.mxu0 0.0
        %1128 = vmatprep.subr.mxu0 0.0
        %1129 = vmatpush2.xpose.msra.mxu0 0.0
        %1130 = vmatprep.subr.mxu0 0.0
        %1131 = vmatpush2.xpose.msra.mxu0 0.0
        %1132 = vmatprep.subr.mxu0 0.0
        %1133 = vmatpush2.xpose.msra.mxu0 0.0
        %1134 = vmatprep.mubr.f32.mxu0 0.0
        %1135 = vmatmul.mubr.f32.gmra.mxu0 %v1065
        %v1136 = vpop.f32.mrf.mxu0
        %v1137 = vadd.f32 0.0, %v1136
        %v1138 = vpop.f32.mrf.mxu0
        %1139 = vdwg.mxu0
        %v1140 = vmul.f32 %v1061, 0.35355338
        %v1141 = vmul.f32 %v1137, 0.35355338
        %v1142 = vsel %vm987, %v1140, -inf
        %1143 = vmax.xlane.f32.xlu0 %v1142
        %v1144 = vpop.xlane.xlu0 %1143
        %v1145 = vsel %vm987, %v1141, -inf
        %1146 = vmax.xlane.f32.xlu0 %v1145
        %v1147 = vpop.xlane.xlu0 %1146
        %v1148 = vsub.f32 %v1140, %v1144
        %v1149 = vsub.f32 %v1141, %v1147
        %v1150 = vmul.f32 %v1148, 1.442695
        %v1151 = vpow.pop %v1150
        %v1152 = vmul.f32 %v1149, 1.442695
        %v1153 = vpow.pop %v1152
        %v1154 = vsel %vm987, %v1151, 0.0
        %1155 = vadd.xlane.f32.xlu0 %v1154
        %v1156 = vpop.xlane.xlu0 %1155
        %v1157 = vsel %vm987, %v1153, 0.0
        %1158 = vadd.xlane.f32.xlu0 %v1157
        %v1159 = vpop.xlane.xlu0 %1158
        %v1160 = vrcp.pop %v1156
        %v1161 = vrcp.pop %v1159
        %v1162 = vmul.f32 %v1151, %v1160
        %v1163 = vmul.f32 %v1153, %v1161
        %v1165 = vsel %vm987, %v1162, 0
        %1167 = vmatprep.subr.mxu0 0.0
        %1168 = vmatpush1.msra.mxu0 0.0
        %1169 = vmatprep.subr.mxu0 0.0
        %1170 = vmatpush1.msra.mxu0 0.0
        %1171 = vmatprep.subr.mxu0 0.0
        %1172 = vmatpush1.msra.mxu0 0.0
        %1173 = vmatprep.subr.mxu0 0.0
        %1174 = vmatpush1.msra.mxu0 0.0
        %1175 = vmatprep.subr.mxu0 0.0
        %1176 = vmatpush1.msra.mxu0 0.0
        %1177 = vmatprep.subr.mxu0 0.0
        %1178 = vmatpush1.msra.mxu0 0.0
        %1179 = vmatprep.subr.mxu0 0.0
        %1180 = vmatpush1.msra.mxu0 0.0
        %1181 = vmatprep.subr.mxu0 0.0
        %1182 = vmatpush1.msra.mxu0 0.0
        %1183 = vmatprep.subr.mxu0 0.0
        %1184 = vmatpush1.msra.mxu0 0.0
        %1185 = vmatprep.subr.mxu0 0.0
        %1186 = vmatpush1.msra.mxu0 0.0
        %1187 = vmatprep.subr.mxu0 0.0
        %1188 = vmatpush1.msra.mxu0 0.0
        %1189 = vmatprep.subr.mxu0 0.0
        %1190 = vmatpush1.msra.mxu0 0.0
        %1191 = vmatprep.subr.mxu0 0.0
        %1192 = vmatpush1.msra.mxu0 0.0
        %1193 = vmatprep.subr.mxu0 0.0
        %1194 = vmatpush1.msra.mxu0 0.0
        %1195 = vmatprep.subr.mxu0 0.0
        %1196 = vmatpush1.msra.mxu0 0.0
        %1197 = vmatprep.subr.mxu0 0.0
        %1198 = vmatpush1.msra.mxu0 %v979
        %1199 = vmatprep.subr.mxu0 0.0
        %1200 = vmatpush2.msra.mxu0 0.0
        %1201 = vmatprep.subr.mxu0 0.0
        %1202 = vmatpush2.msra.mxu0 0.0
        %1203 = vmatprep.subr.mxu0 0.0
        %1204 = vmatpush2.msra.mxu0 0.0
        %1205 = vmatprep.subr.mxu0 0.0
        %1206 = vmatpush2.msra.mxu0 0.0
        %1207 = vmatprep.subr.mxu0 0.0
        %1208 = vmatpush2.msra.mxu0 0.0
        %1209 = vmatprep.subr.mxu0 0.0
        %1210 = vmatpush2.msra.mxu0 0.0
        %1211 = vmatprep.subr.mxu0 0.0
        %1212 = vmatpush2.msra.mxu0 0.0
        %1213 = vmatprep.subr.mxu0 0.0
        %1214 = vmatpush2.msra.mxu0 0.0
        %1215 = vmatprep.subr.mxu0 0.0
        %1216 = vmatpush2.msra.mxu0 0.0
        %1217 = vmatprep.subr.mxu0 0.0
        %1218 = vmatpush2.msra.mxu0 0.0
        %1219 = vmatprep.subr.mxu0 0.0
        %1220 = vmatpush2.msra.mxu0 0.0
        %1221 = vmatprep.subr.mxu0 0.0
        %1222 = vmatpush2.msra.mxu0 0.0
        %1223 = vmatprep.subr.mxu0 0.0
        %1224 = vmatpush2.msra.mxu0 0.0
        %1225 = vmatprep.subr.mxu0 0.0
        %1226 = vmatpush2.msra.mxu0 0.0
        %1227 = vmatprep.subr.mxu0 0.0
        %1228 = vmatpush2.msra.mxu0 0.0
        %1229 = vmatprep.subr.mxu0 0.0
        %1230 = vmatpush2.msra.mxu0 0.0
        %1231 = vmatprep.mubr.f32.mxu0 0.0
        %1232 = vmatmul.mubr.f32.gmra.mxu0 %v1165
        %v1233 = vpop.f32.mrf.mxu0
        %v1234 = vadd.f32 0.0, %v1233
        %v1235 = vpop.f32.mrf.mxu0
        %1236 = vdwg.mxu0
        %v1238 = vsel %vm987, %v1163, 0
        %1240 = vmatprep.subr.mxu0 0.0
        %1241 = vmatpush1.msra.mxu0 0.0
        %1242 = vmatprep.subr.mxu0 0.0
        %1243 = vmatpush1.msra.mxu0 0.0
        %1244 = vmatprep.subr.mxu0 0.0
        %1245 = vmatpush1.msra.mxu0 0.0
        %1246 = vmatprep.subr.mxu0 0.0
        %1247 = vmatpush1.msra.mxu0 0.0
        %1248 = vmatprep.subr.mxu0 0.0
        %1249 = vmatpush1.msra.mxu0 0.0
        %1250 = vmatprep.subr.mxu0 0.0
        %1251 = vmatpush1.msra.mxu0 0.0
        %1252 = vmatprep.subr.mxu0 0.0
        %1253 = vmatpush1.msra.mxu0 0.0
        %1254 = vmatprep.subr.mxu0 0.0
        %1255 = vmatpush1.msra.mxu0 0.0
        %1256 = vmatprep.subr.mxu0 0.0
        %1257 = vmatpush1.msra.mxu0 0.0
        %1258 = vmatprep.subr.mxu0 0.0
        %1259 = vmatpush1.msra.mxu0 0.0
        %1260 = vmatprep.subr.mxu0 0.0
        %1261 = vmatpush1.msra.mxu0 0.0
        %1262 = vmatprep.subr.mxu0 0.0
        %1263 = vmatpush1.msra.mxu0 0.0
        %1264 = vmatprep.subr.mxu0 0.0
        %1265 = vmatpush1.msra.mxu0 0.0
        %1266 = vmatprep.subr.mxu0 0.0
        %1267 = vmatpush1.msra.mxu0 0.0
        %1268 = vmatprep.subr.mxu0 0.0
        %1269 = vmatpush1.msra.mxu0 0.0
        %1270 = vmatprep.subr.mxu0 0.0
        %1271 = vmatpush1.msra.mxu0 %v984
        %1272 = vmatprep.subr.mxu0 0.0
        %1273 = vmatpush2.msra.mxu0 0.0
        %1274 = vmatprep.subr.mxu0 0.0
        %1275 = vmatpush2.msra.mxu0 0.0
        %1276 = vmatprep.subr.mxu0 0.0
        %1277 = vmatpush2.msra.mxu0 0.0
        %1278 = vmatprep.subr.mxu0 0.0
        %1279 = vmatpush2.msra.mxu0 0.0
        %1280 = vmatprep.subr.mxu0 0.0
        %1281 = vmatpush2.msra.mxu0 0.0
        %1282 = vmatprep.subr.mxu0 0.0
        %1283 = vmatpush2.msra.mxu0 0.0
        %1284 = vmatprep.subr.mxu0 0.0
        %1285 = vmatpush2.msra.mxu0 0.0
        %1286 = vmatprep.subr.mxu0 0.0
        %1287 = vmatpush2.msra.mxu0 0.0
        %1288 = vmatprep.subr.mxu0 0.0
        %1289 = vmatpush2.msra.mxu0 0.0
        %1290 = vmatprep.subr.mxu0 0.0
        %1291 = vmatpush2.msra.mxu0 0.0
        %1292 = vmatprep.subr.mxu0 0.0
        %1293 = vmatpush2.msra.mxu0 0.0
        %1294 = vmatprep.subr.mxu0 0.0
        %1295 = vmatpush2.msra.mxu0 0.0
        %1296 = vmatprep.subr.mxu0 0.0
        %1297 = vmatpush2.msra.mxu0 0.0
        %1298 = vmatprep.subr.mxu0 0.0
        %1299 = vmatpush2.msra.mxu0 0.0
        %1300 = vmatprep.subr.mxu0 0.0
        %1301 = vmatpush2.msra.mxu0 0.0
        %1302 = vmatprep.subr.mxu0 0.0
        %1303 = vmatpush2.msra.mxu0 0.0
        %1304 = vmatprep.mubr.f32.mxu0 0.0
        %1305 = vmatmul.mubr.f32.gmra.mxu0 %v1238
        %v1306 = vpop.f32.mrf.mxu0
        %v1307 = vadd.f32 0.0, %v1306
        %v1308 = vpop.f32.mrf.mxu0
        %1309 = vdwg.mxu0
        %1310 = vrot.lane.b32.xlu0 %v797, 120
        %v1311 = vpop.permute.xlu0 %1310
        %1312 = vrot.lane.b32.xlu0 %v888, 120
        %v1313 = vpop.permute.xlu0 %1312
        %v1314 = vsel %vm987, %v1311, 0
        %v1316 = vsel %vm987, %v1313, 0
        %1318 = vmatprep.subr.mxu0 0.0
        %1319 = vmatpush1.xpose.msra.mxu0 0.0
        %1320 = vmatprep.subr.mxu0 0.0
        %1321 = vmatpush1.xpose.msra.mxu0 0.0
        %1322 = vmatprep.subr.mxu0 0.0
        %1323 = vmatpush1.xpose.msra.mxu0 0.0
        %1324 = vmatprep.subr.mxu0 0.0
        %1325 = vmatpush1.xpose.msra.mxu0 0.0
        %1326 = vmatprep.subr.mxu0 0.0
        %1327 = vmatpush1.xpose.msra.mxu0 0.0
        %1328 = vmatprep.subr.mxu0 0.0
        %1329 = vmatpush1.xpose.msra.mxu0 0.0
        %1330 = vmatprep.subr.mxu0 0.0
        %1331 = vmatpush1.xpose.msra.mxu0 0.0
        %1332 = vmatprep.subr.mxu0 0.0
        %1333 = vmatpush1.xpose.msra.mxu0 0.0
        %1334 = vmatprep.subr.mxu0 0.0
        %1335 = vmatpush1.xpose.msra.mxu0 0.0
        %1336 = vmatprep.subr.mxu0 0.0
        %1337 = vmatpush1.xpose.msra.mxu0 0.0
        %1338 = vmatprep.subr.mxu0 0.0
        %1339 = vmatpush1.xpose.msra.mxu0 0.0
        %1340 = vmatprep.subr.mxu0 0.0
        %1341 = vmatpush1.xpose.msra.mxu0 0.0
        %1342 = vmatprep.subr.mxu0 0.0
        %1343 = vmatpush1.xpose.msra.mxu0 0.0
        %1344 = vmatprep.subr.mxu0 0.0
        %1345 = vmatpush1.xpose.msra.mxu0 0.0
        %1346 = vmatprep.subr.mxu0 0.0
        %1347 = vmatpush1.xpose.msra.mxu0 0.0
        %1348 = vmatprep.subr.mxu0 0.0
        %1349 = vmatpush1.xpose.msra.mxu0 %v1316
        %1350 = vmatprep.subr.mxu0 0.0
        %1351 = vmatpush2.xpose.msra.mxu0 0.0
        %1352 = vmatprep.subr.mxu0 0.0
        %1353 = vmatpush2.xpose.msra.mxu0 0.0
        %1354 = vmatprep.subr.mxu0 0.0
        %1355 = vmatpush2.xpose.msra.mxu0 0.0
        %1356 = vmatprep.subr.mxu0 0.0
        %1357 = vmatpush2.xpose.msra.mxu0 0.0
        %1358 = vmatprep.subr.mxu0 0.0
        %1359 = vmatpush2.xpose.msra.mxu0 0.0
        %1360 = vmatprep.subr.mxu0 0.0
        %1361 = vmatpush2.xpose.msra.mxu0 0.0
        %1362 = vmatprep.subr.mxu0 0.0
        %1363 = vmatpush2.xpose.msra.mxu0 0.0
        %1364 = vmatprep.subr.mxu0 0.0
        %1365 = vmatpush2.xpose.msra.mxu0 0.0
        %1366 = vmatprep.subr.mxu0 0.0
        %1367 = vmatpush2.xpose.msra.mxu0 0.0
        %1368 = vmatprep.subr.mxu0 0.0
        %1369 = vmatpush2.xpose.msra.mxu0 0.0
        %1370 = vmatprep.subr.mxu0 0.0
        %1371 = vmatpush2.xpose.msra.mxu0 0.0
        %1372 = vmatprep.subr.mxu0 0.0
        %1373 = vmatpush2.xpose.msra.mxu0 0.0
        %1374 = vmatprep.subr.mxu0 0.0
        %1375 = vmatpush2.xpose.msra.mxu0 0.0
        %1376 = vmatprep.subr.mxu0 0.0
        %1377 = vmatpush2.xpose.msra.mxu0 0.0
        %1378 = vmatprep.subr.mxu0 0.0
        %1379 = vmatpush2.xpose.msra.mxu0 0.0
        %1380 = vmatprep.subr.mxu0 0.0
        %1381 = vmatpush2.xpose.msra.mxu0 0.0
        %1382 = vmatprep.mubr.f32.mxu0 0.0
        %1383 = vmatmul.mubr.f32.gmra.mxu0 %v1314
        %v1384 = vpop.f32.mrf.mxu0
        %v1385 = vadd.f32 0.0, %v1384
        %v1386 = vpop.f32.mrf.mxu0
        %1387 = vdwg.mxu0
        %1388 = vrot.lane.b32.xlu0 %v802, 120
        %v1389 = vpop.permute.xlu0 %1388
        %1390 = vrot.lane.b32.xlu0 %v893, 120
        %v1391 = vpop.permute.xlu0 %1390
        %v1392 = vsel %vm987, %v1389, 0
        %v1394 = vsel %vm987, %v1391, 0
        %1396 = vmatprep.subr.mxu0 0.0
        %1397 = vmatpush1.xpose.msra.mxu0 0.0
        %1398 = vmatprep.subr.mxu0 0.0
        %1399 = vmatpush1.xpose.msra.mxu0 0.0
        %1400 = vmatprep.subr.mxu0 0.0
        %1401 = vmatpush1.xpose.msra.mxu0 0.0
        %1402 = vmatprep.subr.mxu0 0.0
        %1403 = vmatpush1.xpose.msra.mxu0 0.0
        %1404 = vmatprep.subr.mxu0 0.0
        %1405 = vmatpush1.xpose.msra.mxu0 0.0
        %1406 = vmatprep.subr.mxu0 0.0
        %1407 = vmatpush1.xpose.msra.mxu0 0.0
        %1408 = vmatprep.subr.mxu0 0.0
        %1409 = vmatpush1.xpose.msra.mxu0 0.0
        %1410 = vmatprep.subr.mxu0 0.0
        %1411 = vmatpush1.xpose.msra.mxu0 0.0
        %1412 = vmatprep.subr.mxu0 0.0
        %1413 = vmatpush1.xpose.msra.mxu0 0.0
        %1414 = vmatprep.subr.mxu0 0.0
        %1415 = vmatpush1.xpose.msra.mxu0 0.0
        %1416 = vmatprep.subr.mxu0 0.0
        %1417 = vmatpush1.xpose.msra.mxu0 0.0
        %1418 = vmatprep.subr.mxu0 0.0
        %1419 = vmatpush1.xpose.msra.mxu0 0.0
        %1420 = vmatprep.subr.mxu0 0.0
        %1421 = vmatpush1.xpose.msra.mxu0 0.0
        %1422 = vmatprep.subr.mxu0 0.0
        %1423 = vmatpush1.xpose.msra.mxu0 0.0
        %1424 = vmatprep.subr.mxu0 0.0
        %1425 = vmatpush1.xpose.msra.mxu0 0.0
        %1426 = vmatprep.subr.mxu0 0.0
        %1427 = vmatpush1.xpose.msra.mxu0 %v1394
        %1428 = vmatprep.subr.mxu0 0.0
        %1429 = vmatpush2.xpose.msra.mxu0 0.0
        %1430 = vmatprep.subr.mxu0 0.0
        %1431 = vmatpush2.xpose.msra.mxu0 0.0
        %1432 = vmatprep.subr.mxu0 0.0
        %1433 = vmatpush2.xpose.msra.mxu0 0.0
        %1434 = vmatprep.subr.mxu0 0.0
        %1435 = vmatpush2.xpose.msra.mxu0 0.0
        %1436 = vmatprep.subr.mxu0 0.0
        %1437 = vmatpush2.xpose.msra.mxu0 0.0
        %1438 = vmatprep.subr.mxu0 0.0
        %1439 = vmatpush2.xpose.msra.mxu0 0.0
        %1440 = vmatprep.subr.mxu0 0.0
        %1441 = vmatpush2.xpose.msra.mxu0 0.0
        %1442 = vmatprep.subr.mxu0 0.0
        %1443 = vmatpush2.xpose.msra.mxu0 0.0
        %1444 = vmatprep.subr.mxu0 0.0
        %1445 = vmatpush2.xpose.msra.mxu0 0.0
        %1446 = vmatprep.subr.mxu0 0.0
        %1447 = vmatpush2.xpose.msra.mxu0 0.0
        %1448 = vmatprep.subr.mxu0 0.0
        %1449 = vmatpush2.xpose.msra.mxu0 0.0
        %1450 = vmatprep.subr.mxu0 0.0
        %1451 = vmatpush2.xpose.msra.mxu0 0.0
        %1452 = vmatprep.subr.mxu0 0.0
        %1453 = vmatpush2.xpose.msra.mxu0 0.0
        %1454 = vmatprep.subr.mxu0 0.0
        %1455 = vmatpush2.xpose.msra.mxu0 0.0
        %1456 = vmatprep.subr.mxu0 0.0
        %1457 = vmatpush2.xpose.msra.mxu0 0.0
        %1458 = vmatprep.subr.mxu0 0.0
        %1459 = vmatpush2.xpose.msra.mxu0 0.0
        %1460 = vmatprep.mubr.f32.mxu0 0.0
        %1461 = vmatmul.mubr.f32.gmra.mxu0 %v1392
        %v1462 = vpop.f32.mrf.mxu0
        %v1463 = vadd.f32 0.0, %v1462
        %v1464 = vpop.f32.mrf.mxu0
        %1465 = vdwg.mxu0
        %v1466 = vmul.f32 %v1385, 0.35355338
        %v1467 = vmul.f32 %v1463, 0.35355338
        %v1468 = vsel %vm987, %v1466, -inf
        %1469 = vmax.xlane.f32.xlu0 %v1468
        %v1470 = vpop.xlane.xlu0 %1469
        %v1471 = vsel %vm987, %v1467, -inf
        %1472 = vmax.xlane.f32.xlu0 %v1471
        %v1473 = vpop.xlane.xlu0 %1472
        %v1474 = vsub.f32 %v1466, %v1470
        %v1475 = vsub.f32 %v1467, %v1473
        %v1476 = vmul.f32 %v1474, 1.442695
        %v1477 = vpow.pop %v1476
        %v1478 = vmul.f32 %v1475, 1.442695
        %v1479 = vpow.pop %v1478
        %v1480 = vsel %vm987, %v1477, 0.0
        %1481 = vadd.xlane.f32.xlu0 %v1480
        %v1482 = vpop.xlane.xlu0 %1481
        %v1483 = vsel %vm987, %v1479, 0.0
        %1484 = vadd.xlane.f32.xlu0 %v1483
        %v1485 = vpop.xlane.xlu0 %1484
        %v1486 = vrcp.pop %v1482
        %v1487 = vrcp.pop %v1485
        %v1488 = vmul.f32 %v1477, %v1486
        %v1489 = vmul.f32 %v1479, %v1487
        %1491 = vrot.lane.b32.xlu0 %v979, 120
        %v1492 = vpop.permute.xlu0 %1491
        %v1495 = vsel %vm987, %v1488, 0
        %1497 = vmatprep.subr.mxu0 0.0
        %1498 = vmatpush1.msra.mxu0 0.0
        %1499 = vmatprep.subr.mxu0 0.0
        %1500 = vmatpush1.msra.mxu0 0.0
        %1501 = vmatprep.subr.mxu0 0.0
        %1502 = vmatpush1.msra.mxu0 0.0
        %1503 = vmatprep.subr.mxu0 0.0
        %1504 = vmatpush1.msra.mxu0 0.0
        %1505 = vmatprep.subr.mxu0 0.0
        %1506 = vmatpush1.msra.mxu0 0.0
        %1507 = vmatprep.subr.mxu0 0.0
        %1508 = vmatpush1.msra.mxu0 0.0
        %1509 = vmatprep.subr.mxu0 0.0
        %1510 = vmatpush1.msra.mxu0 0.0
        %1511 = vmatprep.subr.mxu0 0.0
        %1512 = vmatpush1.msra.mxu0 0.0
        %1513 = vmatprep.subr.mxu0 0.0
        %1514 = vmatpush1.msra.mxu0 0.0
        %1515 = vmatprep.subr.mxu0 0.0
        %1516 = vmatpush1.msra.mxu0 0.0
        %1517 = vmatprep.subr.mxu0 0.0
        %1518 = vmatpush1.msra.mxu0 0.0
        %1519 = vmatprep.subr.mxu0 0.0
        %1520 = vmatpush1.msra.mxu0 0.0
        %1521 = vmatprep.subr.mxu0 0.0
        %1522 = vmatpush1.msra.mxu0 0.0
        %1523 = vmatprep.subr.mxu0 0.0
        %1524 = vmatpush1.msra.mxu0 0.0
        %1525 = vmatprep.subr.mxu0 0.0
        %1526 = vmatpush1.msra.mxu0 0.0
        %1527 = vmatprep.subr.mxu0 0.0
        %1528 = vmatpush1.msra.mxu0 %v1492
        %1529 = vmatprep.subr.mxu0 0.0
        %1530 = vmatpush2.msra.mxu0 0.0
        %1531 = vmatprep.subr.mxu0 0.0
        %1532 = vmatpush2.msra.mxu0 0.0
        %1533 = vmatprep.subr.mxu0 0.0
        %1534 = vmatpush2.msra.mxu0 0.0
        %1535 = vmatprep.subr.mxu0 0.0
        %1536 = vmatpush2.msra.mxu0 0.0
        %1537 = vmatprep.subr.mxu0 0.0
        %1538 = vmatpush2.msra.mxu0 0.0
        %1539 = vmatprep.subr.mxu0 0.0
        %1540 = vmatpush2.msra.mxu0 0.0
        %1541 = vmatprep.subr.mxu0 0.0
        %1542 = vmatpush2.msra.mxu0 0.0
        %1543 = vmatprep.subr.mxu0 0.0
        %1544 = vmatpush2.msra.mxu0 0.0
        %1545 = vmatprep.subr.mxu0 0.0
        %1546 = vmatpush2.msra.mxu0 0.0
        %1547 = vmatprep.subr.mxu0 0.0
        %1548 = vmatpush2.msra.mxu0 0.0
        %1549 = vmatprep.subr.mxu0 0.0
        %1550 = vmatpush2.msra.mxu0 0.0
        %1551 = vmatprep.subr.mxu0 0.0
        %1552 = vmatpush2.msra.mxu0 0.0
        %1553 = vmatprep.subr.mxu0 0.0
        %1554 = vmatpush2.msra.mxu0 0.0
        %1555 = vmatprep.subr.mxu0 0.0
        %1556 = vmatpush2.msra.mxu0 0.0
        %1557 = vmatprep.subr.mxu0 0.0
        %1558 = vmatpush2.msra.mxu0 0.0
        %1559 = vmatprep.subr.mxu0 0.0
        %1560 = vmatpush2.msra.mxu0 0.0
        %1561 = vmatprep.mubr.f32.mxu0 0.0
        %1562 = vmatmul.mubr.f32.gmra.mxu0 %v1495
        %v1563 = vpop.f32.mrf.mxu0
        %v1564 = vadd.f32 0.0, %v1563
        %v1565 = vpop.f32.mrf.mxu0
        %1566 = vdwg.mxu0
        %1568 = vrot.lane.b32.xlu0 %v984, 120
        %v1569 = vpop.permute.xlu0 %1568
        %v1572 = vsel %vm987, %v1489, 0
        %1574 = vmatprep.subr.mxu0 0.0
        %1575 = vmatpush1.msra.mxu0 0.0
        %1576 = vmatprep.subr.mxu0 0.0
        %1577 = vmatpush1.msra.mxu0 0.0
        %1578 = vmatprep.subr.mxu0 0.0
        %1579 = vmatpush1.msra.mxu0 0.0
        %1580 = vmatprep.subr.mxu0 0.0
        %1581 = vmatpush1.msra.mxu0 0.0
        %1582 = vmatprep.subr.mxu0 0.0
        %1583 = vmatpush1.msra.mxu0 0.0
        %1584 = vmatprep.subr.mxu0 0.0
        %1585 = vmatpush1.msra.mxu0 0.0
        %1586 = vmatprep.subr.mxu0 0.0
        %1587 = vmatpush1.msra.mxu0 0.0
        %1588 = vmatprep.subr.mxu0 0.0
        %1589 = vmatpush1.msra.mxu0 0.0
        %1590 = vmatprep.subr.mxu0 0.0
        %1591 = vmatpush1.msra.mxu0 0.0
        %1592 = vmatprep.subr.mxu0 0.0
        %1593 = vmatpush1.msra.mxu0 0.0
        %1594 = vmatprep.subr.mxu0 0.0
        %1595 = vmatpush1.msra.mxu0 0.0
        %1596 = vmatprep.subr.mxu0 0.0
        %1597 = vmatpush1.msra.mxu0 0.0
        %1598 = vmatprep.subr.mxu0 0.0
        %1599 = vmatpush1.msra.mxu0 0.0
        %1600 = vmatprep.subr.mxu0 0.0
        %1601 = vmatpush1.msra.mxu0 0.0
        %1602 = vmatprep.subr.mxu0 0.0
        %1603 = vmatpush1.msra.mxu0 0.0
        %1604 = vmatprep.subr.mxu0 0.0
        %1605 = vmatpush1.msra.mxu0 %v1569
        %1606 = vmatprep.subr.mxu0 0.0
        %1607 = vmatpush2.msra.mxu0 0.0
        %1608 = vmatprep.subr.mxu0 0.0
        %1609 = vmatpush2.msra.mxu0 0.0
        %1610 = vmatprep.subr.mxu0 0.0
        %1611 = vmatpush2.msra.mxu0 0.0
        %1612 = vmatprep.subr.mxu0 0.0
        %1613 = vmatpush2.msra.mxu0 0.0
        %1614 = vmatprep.subr.mxu0 0.0
        %1615 = vmatpush2.msra.mxu0 0.0
        %1616 = vmatprep.subr.mxu0 0.0
        %1617 = vmatpush2.msra.mxu0 0.0
        %1618 = vmatprep.subr.mxu0 0.0
        %1619 = vmatpush2.msra.mxu0 0.0
        %1620 = vmatprep.subr.mxu0 0.0
        %1621 = vmatpush2.msra.mxu0 0.0
        %1622 = vmatprep.subr.mxu0 0.0
        %1623 = vmatpush2.msra.mxu0 0.0
        %1624 = vmatprep.subr.mxu0 0.0
        %1625 = vmatpush2.msra.mxu0 0.0
        %1626 = vmatprep.subr.mxu0 0.0
        %1627 = vmatpush2.msra.mxu0 0.0
        %1628 = vmatprep.subr.mxu0 0.0
        %1629 = vmatpush2.msra.mxu0 0.0
        %1630 = vmatprep.subr.mxu0 0.0
        %1631 = vmatpush2.msra.mxu0 0.0
        %1632 = vmatprep.subr.mxu0 0.0
        %1633 = vmatpush2.msra.mxu0 0.0
        %1634 = vmatprep.subr.mxu0 0.0
        %1635 = vmatpush2.msra.mxu0 0.0
        %1636 = vmatprep.subr.mxu0 0.0
        %1637 = vmatpush2.msra.mxu0 0.0
        %1638 = vmatprep.mubr.f32.mxu0 0.0
        %1639 = vmatmul.mubr.f32.gmra.mxu0 %v1572
        %v1640 = vpop.f32.mrf.mxu0
        %v1641 = vadd.f32 0.0, %v1640
        %v1642 = vpop.f32.mrf.mxu0
        %1643 = vdwg.mxu0
        %1644 = vrot.lane.b32.xlu0 %v797, 112
        %v1645 = vpop.permute.xlu0 %1644
        %1646 = vrot.lane.b32.xlu0 %v888, 112
        %v1647 = vpop.permute.xlu0 %1646
        %v1648 = vsel %vm987, %v1645, 0
        %v1650 = vsel %vm987, %v1647, 0
        %1652 = vmatprep.subr.mxu0 0.0
        %1653 = vmatpush1.xpose.msra.mxu0 0.0
        %1654 = vmatprep.subr.mxu0 0.0
        %1655 = vmatpush1.xpose.msra.mxu0 0.0
        %1656 = vmatprep.subr.mxu0 0.0
        %1657 = vmatpush1.xpose.msra.mxu0 0.0
        %1658 = vmatprep.subr.mxu0 0.0
        %1659 = vmatpush1.xpose.msra.mxu0 0.0
        %1660 = vmatprep.subr.mxu0 0.0
        %1661 = vmatpush1.xpose.msra.mxu0 0.0
        %1662 = vmatprep.subr.mxu0 0.0
        %1663 = vmatpush1.xpose.msra.mxu0 0.0
        %1664 = vmatprep.subr.mxu0 0.0
        %1665 = vmatpush1.xpose.msra.mxu0 0.0
        %1666 = vmatprep.subr.mxu0 0.0
        %1667 = vmatpush1.xpose.msra.mxu0 0.0
        %1668 = vmatprep.subr.mxu0 0.0
        %1669 = vmatpush1.xpose.msra.mxu0 0.0
        %1670 = vmatprep.subr.mxu0 0.0
        %1671 = vmatpush1.xpose.msra.mxu0 0.0
        %1672 = vmatprep.subr.mxu0 0.0
        %1673 = vmatpush1.xpose.msra.mxu0 0.0
        %1674 = vmatprep.subr.mxu0 0.0
        %1675 = vmatpush1.xpose.msra.mxu0 0.0
        %1676 = vmatprep.subr.mxu0 0.0
        %1677 = vmatpush1.xpose.msra.mxu0 0.0
        %1678 = vmatprep.subr.mxu0 0.0
        %1679 = vmatpush1.xpose.msra.mxu0 0.0
        %1680 = vmatprep.subr.mxu0 0.0
        %1681 = vmatpush1.xpose.msra.mxu0 0.0
        %1682 = vmatprep.subr.mxu0 0.0
        %1683 = vmatpush1.xpose.msra.mxu0 %v1650
        %1684 = vmatprep.subr.mxu0 0.0
        %1685 = vmatpush2.xpose.msra.mxu0 0.0
        %1686 = vmatprep.subr.mxu0 0.0
        %1687 = vmatpush2.xpose.msra.mxu0 0.0
        %1688 = vmatprep.subr.mxu0 0.0
        %1689 = vmatpush2.xpose.msra.mxu0 0.0
        %1690 = vmatprep.subr.mxu0 0.0
        %1691 = vmatpush2.xpose.msra.mxu0 0.0
        %1692 = vmatprep.subr.mxu0 0.0
        %1693 = vmatpush2.xpose.msra.mxu0 0.0
        %1694 = vmatprep.subr.mxu0 0.0
        %1695 = vmatpush2.xpose.msra.mxu0 0.0
        %1696 = vmatprep.subr.mxu0 0.0
        %1697 = vmatpush2.xpose.msra.mxu0 0.0
        %1698 = vmatprep.subr.mxu0 0.0
        %1699 = vmatpush2.xpose.msra.mxu0 0.0
        %1700 = vmatprep.subr.mxu0 0.0
        %1701 = vmatpush2.xpose.msra.mxu0 0.0
        %1702 = vmatprep.subr.mxu0 0.0
        %1703 = vmatpush2.xpose.msra.mxu0 0.0
        %1704 = vmatprep.subr.mxu0 0.0
        %1705 = vmatpush2.xpose.msra.mxu0 0.0
        %1706 = vmatprep.subr.mxu0 0.0
        %1707 = vmatpush2.xpose.msra.mxu0 0.0
        %1708 = vmatprep.subr.mxu0 0.0
        %1709 = vmatpush2.xpose.msra.mxu0 0.0
        %1710 = vmatprep.subr.mxu0 0.0
        %1711 = vmatpush2.xpose.msra.mxu0 0.0
        %1712 = vmatprep.subr.mxu0 0.0
        %1713 = vmatpush2.xpose.msra.mxu0 0.0
        %1714 = vmatprep.subr.mxu0 0.0
        %1715 = vmatpush2.xpose.msra.mxu0 0.0
        %1716 = vmatprep.mubr.f32.mxu0 0.0
        %1717 = vmatmul.mubr.f32.gmra.mxu0 %v1648
        %v1718 = vpop.f32.mrf.mxu0
        %v1719 = vadd.f32 0.0, %v1718
        %v1720 = vpop.f32.mrf.mxu0
        %1721 = vdwg.mxu0
        %1722 = vrot.lane.b32.xlu0 %v802, 112
        %v1723 = vpop.permute.xlu0 %1722
        %1724 = vrot.lane.b32.xlu0 %v893, 112
        %v1725 = vpop.permute.xlu0 %1724
        %v1726 = vsel %vm987, %v1723, 0
        %v1728 = vsel %vm987, %v1725, 0
        %1730 = vmatprep.subr.mxu0 0.0
        %1731 = vmatpush1.xpose.msra.mxu0 0.0
        %1732 = vmatprep.subr.mxu0 0.0
        %1733 = vmatpush1.xpose.msra.mxu0 0.0
        %1734 = vmatprep.subr.mxu0 0.0
        %1735 = vmatpush1.xpose.msra.mxu0 0.0
        %1736 = vmatprep.subr.mxu0 0.0
        %1737 = vmatpush1.xpose.msra.mxu0 0.0
        %1738 = vmatprep.subr.mxu0 0.0
        %1739 = vmatpush1.xpose.msra.mxu0 0.0
        %1740 = vmatprep.subr.mxu0 0.0
        %1741 = vmatpush1.xpose.msra.mxu0 0.0
        %1742 = vmatprep.subr.mxu0 0.0
        %1743 = vmatpush1.xpose.msra.mxu0 0.0
        %1744 = vmatprep.subr.mxu0 0.0
        %1745 = vmatpush1.xpose.msra.mxu0 0.0
        %1746 = vmatprep.subr.mxu0 0.0
        %1747 = vmatpush1.xpose.msra.mxu0 0.0
        %1748 = vmatprep.subr.mxu0 0.0
        %1749 = vmatpush1.xpose.msra.mxu0 0.0
        %1750 = vmatprep.subr.mxu0 0.0
        %1751 = vmatpush1.xpose.msra.mxu0 0.0
        %1752 = vmatprep.subr.mxu0 0.0
        %1753 = vmatpush1.xpose.msra.mxu0 0.0
        %1754 = vmatprep.subr.mxu0 0.0
        %1755 = vmatpush1.xpose.msra.mxu0 0.0
        %1756 = vmatprep.subr.mxu0 0.0
        %1757 = vmatpush1.xpose.msra.mxu0 0.0
        %1758 = vmatprep.subr.mxu0 0.0
        %1759 = vmatpush1.xpose.msra.mxu0 0.0
        %1760 = vmatprep.subr.mxu0 0.0
        %1761 = vmatpush1.xpose.msra.mxu0 %v1728
        %1762 = vmatprep.subr.mxu0 0.0
        %1763 = vmatpush2.xpose.msra.mxu0 0.0
        %1764 = vmatprep.subr.mxu0 0.0
        %1765 = vmatpush2.xpose.msra.mxu0 0.0
        %1766 = vmatprep.subr.mxu0 0.0
        %1767 = vmatpush2.xpose.msra.mxu0 0.0
        %1768 = vmatprep.subr.mxu0 0.0
        %1769 = vmatpush2.xpose.msra.mxu0 0.0
        %1770 = vmatprep.subr.mxu0 0.0
        %1771 = vmatpush2.xpose.msra.mxu0 0.0
        %1772 = vmatprep.subr.mxu0 0.0
        %1773 = vmatpush2.xpose.msra.mxu0 0.0
        %1774 = vmatprep.subr.mxu0 0.0
        %1775 = vmatpush2.xpose.msra.mxu0 0.0
        %1776 = vmatprep.subr.mxu0 0.0
        %1777 = vmatpush2.xpose.msra.mxu0 0.0
        %1778 = vmatprep.subr.mxu0 0.0
        %1779 = vmatpush2.xpose.msra.mxu0 0.0
        %1780 = vmatprep.subr.mxu0 0.0
        %1781 = vmatpush2.xpose.msra.mxu0 0.0
        %1782 = vmatprep.subr.mxu0 0.0
        %1783 = vmatpush2.xpose.msra.mxu0 0.0
        %1784 = vmatprep.subr.mxu0 0.0
        %1785 = vmatpush2.xpose.msra.mxu0 0.0
        %1786 = vmatprep.subr.mxu0 0.0
        %1787 = vmatpush2.xpose.msra.mxu0 0.0
        %1788 = vmatprep.subr.mxu0 0.0
        %1789 = vmatpush2.xpose.msra.mxu0 0.0
        %1790 = vmatprep.subr.mxu0 0.0
        %1791 = vmatpush2.xpose.msra.mxu0 0.0
        %1792 = vmatprep.subr.mxu0 0.0
        %1793 = vmatpush2.xpose.msra.mxu0 0.0
        %1794 = vmatprep.mubr.f32.mxu0 0.0
        %1795 = vmatmul.mubr.f32.gmra.mxu0 %v1726
        %v1796 = vpop.f32.mrf.mxu0
        %v1797 = vadd.f32 0.0, %v1796
        %v1798 = vpop.f32.mrf.mxu0
        %1799 = vdwg.mxu0
        %v1800 = vmul.f32 %v1719, 0.35355338
        %v1801 = vmul.f32 %v1797, 0.35355338
        %v1802 = vsel %vm987, %v1800, -inf
        %1803 = vmax.xlane.f32.xlu0 %v1802
        %v1804 = vpop.xlane.xlu0 %1803
        %v1805 = vsel %vm987, %v1801, -inf
        %1806 = vmax.xlane.f32.xlu0 %v1805
        %v1807 = vpop.xlane.xlu0 %1806
        %v1808 = vsub.f32 %v1800, %v1804
        %v1809 = vsub.f32 %v1801, %v1807
        %v1810 = vmul.f32 %v1808, 1.442695
        %v1811 = vpow.pop %v1810
        %v1812 = vmul.f32 %v1809, 1.442695
        %v1813 = vpow.pop %v1812
        %v1814 = vsel %vm987, %v1811, 0.0
        %1815 = vadd.xlane.f32.xlu0 %v1814
        %v1816 = vpop.xlane.xlu0 %1815
        %v1817 = vsel %vm987, %v1813, 0.0
        %1818 = vadd.xlane.f32.xlu0 %v1817
        %v1819 = vpop.xlane.xlu0 %1818
        %v1820 = vrcp.pop %v1816
        %v1821 = vrcp.pop %v1819
        %v1822 = vmul.f32 %v1811, %v1820
        %v1823 = vmul.f32 %v1813, %v1821
        %1824 = vrot.lane.b32.xlu0 %v979, 112
        %v1825 = vpop.permute.xlu0 %1824
        %v1828 = vsel %vm987, %v1822, 0
        %1830 = vmatprep.subr.mxu0 0.0
        %1831 = vmatpush1.msra.mxu0 0.0
        %1832 = vmatprep.subr.mxu0 0.0
        %1833 = vmatpush1.msra.mxu0 0.0
        %1834 = vmatprep.subr.mxu0 0.0
        %1835 = vmatpush1.msra.mxu0 0.0
        %1836 = vmatprep.subr.mxu0 0.0
        %1837 = vmatpush1.msra.mxu0 0.0
        %1838 = vmatprep.subr.mxu0 0.0
        %1839 = vmatpush1.msra.mxu0 0.0
        %1840 = vmatprep.subr.mxu0 0.0
        %1841 = vmatpush1.msra.mxu0 0.0
        %1842 = vmatprep.subr.mxu0 0.0
        %1843 = vmatpush1.msra.mxu0 0.0
        %1844 = vmatprep.subr.mxu0 0.0
        %1845 = vmatpush1.msra.mxu0 0.0
        %1846 = vmatprep.subr.mxu0 0.0
        %1847 = vmatpush1.msra.mxu0 0.0
        %1848 = vmatprep.subr.mxu0 0.0
        %1849 = vmatpush1.msra.mxu0 0.0
        %1850 = vmatprep.subr.mxu0 0.0
        %1851 = vmatpush1.msra.mxu0 0.0
        %1852 = vmatprep.subr.mxu0 0.0
        %1853 = vmatpush1.msra.mxu0 0.0
        %1854 = vmatprep.subr.mxu0 0.0
        %1855 = vmatpush1.msra.mxu0 0.0
        %1856 = vmatprep.subr.mxu0 0.0
        %1857 = vmatpush1.msra.mxu0 0.0
        %1858 = vmatprep.subr.mxu0 0.0
        %1859 = vmatpush1.msra.mxu0 0.0
        %1860 = vmatprep.subr.mxu0 0.0
        %1861 = vmatpush1.msra.mxu0 %v1825
        %1862 = vmatprep.subr.mxu0 0.0
        %1863 = vmatpush2.msra.mxu0 0.0
        %1864 = vmatprep.subr.mxu0 0.0
        %1865 = vmatpush2.msra.mxu0 0.0
        %1866 = vmatprep.subr.mxu0 0.0
        %1867 = vmatpush2.msra.mxu0 0.0
        %1868 = vmatprep.subr.mxu0 0.0
        %1869 = vmatpush2.msra.mxu0 0.0
        %1870 = vmatprep.subr.mxu0 0.0
        %1871 = vmatpush2.msra.mxu0 0.0
        %1872 = vmatprep.subr.mxu0 0.0
        %1873 = vmatpush2.msra.mxu0 0.0
        %1874 = vmatprep.subr.mxu0 0.0
        %1875 = vmatpush2.msra.mxu0 0.0
        %1876 = vmatprep.subr.mxu0 0.0
        %1877 = vmatpush2.msra.mxu0 0.0
        %1878 = vmatprep.subr.mxu0 0.0
        %1879 = vmatpush2.msra.mxu0 0.0
        %1880 = vmatprep.subr.mxu0 0.0
        %1881 = vmatpush2.msra.mxu0 0.0
        %1882 = vmatprep.subr.mxu0 0.0
        %1883 = vmatpush2.msra.mxu0 0.0
        %1884 = vmatprep.subr.mxu0 0.0
        %1885 = vmatpush2.msra.mxu0 0.0
        %1886 = vmatprep.subr.mxu0 0.0
        %1887 = vmatpush2.msra.mxu0 0.0
        %1888 = vmatprep.subr.mxu0 0.0
        %1889 = vmatpush2.msra.mxu0 0.0
        %1890 = vmatprep.subr.mxu0 0.0
        %1891 = vmatpush2.msra.mxu0 0.0
        %1892 = vmatprep.subr.mxu0 0.0
        %1893 = vmatpush2.msra.mxu0 0.0
        %1894 = vmatprep.mubr.f32.mxu0 0.0
        %1895 = vmatmul.mubr.f32.gmra.mxu0 %v1828
        %v1896 = vpop.f32.mrf.mxu0
        %v1897 = vadd.f32 0.0, %v1896
        %v1898 = vpop.f32.mrf.mxu0
        %1899 = vdwg.mxu0
        %1900 = vrot.lane.b32.xlu0 %v984, 112
        %v1901 = vpop.permute.xlu0 %1900
        %v1904 = vsel %vm987, %v1823, 0
        %1906 = vmatprep.subr.mxu0 0.0
        %1907 = vmatpush1.msra.mxu0 0.0
        %1908 = vmatprep.subr.mxu0 0.0
        %1909 = vmatpush1.msra.mxu0 0.0
        %1910 = vmatprep.subr.mxu0 0.0
        %1911 = vmatpush1.msra.mxu0 0.0
        %1912 = vmatprep.subr.mxu0 0.0
        %1913 = vmatpush1.msra.mxu0 0.0
        %1914 = vmatprep.subr.mxu0 0.0
        %1915 = vmatpush1.msra.mxu0 0.0
        %1916 = vmatprep.subr.mxu0 0.0
        %1917 = vmatpush1.msra.mxu0 0.0
        %1918 = vmatprep.subr.mxu0 0.0
        %1919 = vmatpush1.msra.mxu0 0.0
        %1920 = vmatprep.subr.mxu0 0.0
        %1921 = vmatpush1.msra.mxu0 0.0
        %1922 = vmatprep.subr.mxu0 0.0
        %1923 = vmatpush1.msra.mxu0 0.0
        %1924 = vmatprep.subr.mxu0 0.0
        %1925 = vmatpush1.msra.mxu0 0.0
        %1926 = vmatprep.subr.mxu0 0.0
        %1927 = vmatpush1.msra.mxu0 0.0
        %1928 = vmatprep.subr.mxu0 0.0
        %1929 = vmatpush1.msra.mxu0 0.0
        %1930 = vmatprep.subr.mxu0 0.0
        %1931 = vmatpush1.msra.mxu0 0.0
        %1932 = vmatprep.subr.mxu0 0.0
        %1933 = vmatpush1.msra.mxu0 0.0
        %1934 = vmatprep.subr.mxu0 0.0
        %1935 = vmatpush1.msra.mxu0 0.0
        %1936 = vmatprep.subr.mxu0 0.0
        %1937 = vmatpush1.msra.mxu0 %v1901
        %1938 = vmatprep.subr.mxu0 0.0
        %1939 = vmatpush2.msra.mxu0 0.0
        %1940 = vmatprep.subr.mxu0 0.0
        %1941 = vmatpush2.msra.mxu0 0.0
        %1942 = vmatprep.subr.mxu0 0.0
        %1943 = vmatpush2.msra.mxu0 0.0
        %1944 = vmatprep.subr.mxu0 0.0
        %1945 = vmatpush2.msra.mxu0 0.0
        %1946 = vmatprep.subr.mxu0 0.0
        %1947 = vmatpush2.msra.mxu0 0.0
        %1948 = vmatprep.subr.mxu0 0.0
        %1949 = vmatpush2.msra.mxu0 0.0
        %1950 = vmatprep.subr.mxu0 0.0
        %1951 = vmatpush2.msra.mxu0 0.0
        %1952 = vmatprep.subr.mxu0 0.0
        %1953 = vmatpush2.msra.mxu0 0.0
        %1954 = vmatprep.subr.mxu0 0.0
        %1955 = vmatpush2.msra.mxu0 0.0
        %1956 = vmatprep.subr.mxu0 0.0
        %1957 = vmatpush2.msra.mxu0 0.0
        %1958 = vmatprep.subr.mxu0 0.0
        %1959 = vmatpush2.msra.mxu0 0.0
        %1960 = vmatprep.subr.mxu0 0.0
        %1961 = vmatpush2.msra.mxu0 0.0
        %1962 = vmatprep.subr.mxu0 0.0
        %1963 = vmatpush2.msra.mxu0 0.0
        %1964 = vmatprep.subr.mxu0 0.0
        %1965 = vmatpush2.msra.mxu0 0.0
        %1966 = vmatprep.subr.mxu0 0.0
        %1967 = vmatpush2.msra.mxu0 0.0
        %1968 = vmatprep.subr.mxu0 0.0
        %1969 = vmatpush2.msra.mxu0 0.0
        %1970 = vmatprep.mubr.f32.mxu0 0.0
        %1971 = vmatmul.mubr.f32.gmra.mxu0 %v1904
        %v1972 = vpop.f32.mrf.mxu0
        %v1973 = vadd.f32 0.0, %v1972
        %v1974 = vpop.f32.mrf.mxu0
        %1975 = vdwg.mxu0
        %1976 = vrot.lane.b32.xlu0 %v797, 104
        %v1977 = vpop.permute.xlu0 %1976
        %1978 = vrot.lane.b32.xlu0 %v888, 104
        %v1979 = vpop.permute.xlu0 %1978
        %v1980 = vsel %vm987, %v1977, 0
        %v1982 = vsel %vm987, %v1979, 0
        %1984 = vmatprep.subr.mxu0 0.0
        %1985 = vmatpush1.xpose.msra.mxu0 0.0
        %1986 = vmatprep.subr.mxu0 0.0
        %1987 = vmatpush1.xpose.msra.mxu0 0.0
        %1988 = vmatprep.subr.mxu0 0.0
        %1989 = vmatpush1.xpose.msra.mxu0 0.0
        %1990 = vmatprep.subr.mxu0 0.0
        %1991 = vmatpush1.xpose.msra.mxu0 0.0
        %1992 = vmatprep.subr.mxu0 0.0
        %1993 = vmatpush1.xpose.msra.mxu0 0.0
        %1994 = vmatprep.subr.mxu0 0.0
        %1995 = vmatpush1.xpose.msra.mxu0 0.0
        %1996 = vmatprep.subr.mxu0 0.0
        %1997 = vmatpush1.xpose.msra.mxu0 0.0
        %1998 = vmatprep.subr.mxu0 0.0
        %1999 = vmatpush1.xpose.msra.mxu0 0.0
        %2000 = vmatprep.subr.mxu0 0.0
        %2001 = vmatpush1.xpose.msra.mxu0 0.0
        %2002 = vmatprep.subr.mxu0 0.0
        %2003 = vmatpush1.xpose.msra.mxu0 0.0
        %2004 = vmatprep.subr.mxu0 0.0
        %2005 = vmatpush1.xpose.msra.mxu0 0.0
        %2006 = vmatprep.subr.mxu0 0.0
        %2007 = vmatpush1.xpose.msra.mxu0 0.0
        %2008 = vmatprep.subr.mxu0 0.0
        %2009 = vmatpush1.xpose.msra.mxu0 0.0
        %2010 = vmatprep.subr.mxu0 0.0
        %2011 = vmatpush1.xpose.msra.mxu0 0.0
        %2012 = vmatprep.subr.mxu0 0.0
        %2013 = vmatpush1.xpose.msra.mxu0 0.0
        %2014 = vmatprep.subr.mxu0 0.0
        %2015 = vmatpush1.xpose.msra.mxu0 %v1982
        %2016 = vmatprep.subr.mxu0 0.0
        %2017 = vmatpush2.xpose.msra.mxu0 0.0
        %2018 = vmatprep.subr.mxu0 0.0
        %2019 = vmatpush2.xpose.msra.mxu0 0.0
        %2020 = vmatprep.subr.mxu0 0.0
        %2021 = vmatpush2.xpose.msra.mxu0 0.0
        %2022 = vmatprep.subr.mxu0 0.0
        %2023 = vmatpush2.xpose.msra.mxu0 0.0
        %2024 = vmatprep.subr.mxu0 0.0
        %2025 = vmatpush2.xpose.msra.mxu0 0.0
        %2026 = vmatprep.subr.mxu0 0.0
        %2027 = vmatpush2.xpose.msra.mxu0 0.0
        %2028 = vmatprep.subr.mxu0 0.0
        %2029 = vmatpush2.xpose.msra.mxu0 0.0
        %2030 = vmatprep.subr.mxu0 0.0
        %2031 = vmatpush2.xpose.msra.mxu0 0.0
        %2032 = vmatprep.subr.mxu0 0.0
        %2033 = vmatpush2.xpose.msra.mxu0 0.0
        %2034 = vmatprep.subr.mxu0 0.0
        %2035 = vmatpush2.xpose.msra.mxu0 0.0
        %2036 = vmatprep.subr.mxu0 0.0
        %2037 = vmatpush2.xpose.msra.mxu0 0.0
        %2038 = vmatprep.subr.mxu0 0.0
        %2039 = vmatpush2.xpose.msra.mxu0 0.0
        %2040 = vmatprep.subr.mxu0 0.0
        %2041 = vmatpush2.xpose.msra.mxu0 0.0
        %2042 = vmatprep.subr.mxu0 0.0
        %2043 = vmatpush2.xpose.msra.mxu0 0.0
        %2044 = vmatprep.subr.mxu0 0.0
        %2045 = vmatpush2.xpose.msra.mxu0 0.0
        %2046 = vmatprep.subr.mxu0 0.0
        %2047 = vmatpush2.xpose.msra.mxu0 0.0
        %2048 = vmatprep.mubr.f32.mxu0 0.0
        %2049 = vmatmul.mubr.f32.gmra.mxu0 %v1980
        %v2050 = vpop.f32.mrf.mxu0
        %v2051 = vadd.f32 0.0, %v2050
        %v2052 = vpop.f32.mrf.mxu0
        %2053 = vdwg.mxu0
        %2054 = vrot.lane.b32.xlu0 %v802, 104
        %v2055 = vpop.permute.xlu0 %2054
        %2056 = vrot.lane.b32.xlu0 %v893, 104
        %v2057 = vpop.permute.xlu0 %2056
        %v2058 = vsel %vm987, %v2055, 0
        %v2060 = vsel %vm987, %v2057, 0
        %2062 = vmatprep.subr.mxu0 0.0
        %2063 = vmatpush1.xpose.msra.mxu0 0.0
        %2064 = vmatprep.subr.mxu0 0.0
        %2065 = vmatpush1.xpose.msra.mxu0 0.0
        %2066 = vmatprep.subr.mxu0 0.0
        %2067 = vmatpush1.xpose.msra.mxu0 0.0
        %2068 = vmatprep.subr.mxu0 0.0
        %2069 = vmatpush1.xpose.msra.mxu0 0.0
        %2070 = vmatprep.subr.mxu0 0.0
        %2071 = vmatpush1.xpose.msra.mxu0 0.0
        %2072 = vmatprep.subr.mxu0 0.0
        %2073 = vmatpush1.xpose.msra.mxu0 0.0
        %2074 = vmatprep.subr.mxu0 0.0
        %2075 = vmatpush1.xpose.msra.mxu0 0.0
        %2076 = vmatprep.subr.mxu0 0.0
        %2077 = vmatpush1.xpose.msra.mxu0 0.0
        %2078 = vmatprep.subr.mxu0 0.0
        %2079 = vmatpush1.xpose.msra.mxu0 0.0
        %2080 = vmatprep.subr.mxu0 0.0
        %2081 = vmatpush1.xpose.msra.mxu0 0.0
        %2082 = vmatprep.subr.mxu0 0.0
        %2083 = vmatpush1.xpose.msra.mxu0 0.0
        %2084 = vmatprep.subr.mxu0 0.0
        %2085 = vmatpush1.xpose.msra.mxu0 0.0
        %2086 = vmatprep.subr.mxu0 0.0
        %2087 = vmatpush1.xpose.msra.mxu0 0.0
        %2088 = vmatprep.subr.mxu0 0.0
        %2089 = vmatpush1.xpose.msra.mxu0 0.0
        %2090 = vmatprep.subr.mxu0 0.0
        %2091 = vmatpush1.xpose.msra.mxu0 0.0
        %2092 = vmatprep.subr.mxu0 0.0
        %2093 = vmatpush1.xpose.msra.mxu0 %v2060
        %2094 = vmatprep.subr.mxu0 0.0
        %2095 = vmatpush2.xpose.msra.mxu0 0.0
        %2096 = vmatprep.subr.mxu0 0.0
        %2097 = vmatpush2.xpose.msra.mxu0 0.0
        %2098 = vmatprep.subr.mxu0 0.0
        %2099 = vmatpush2.xpose.msra.mxu0 0.0
        %2100 = vmatprep.subr.mxu0 0.0
        %2101 = vmatpush2.xpose.msra.mxu0 0.0
        %2102 = vmatprep.subr.mxu0 0.0
        %2103 = vmatpush2.xpose.msra.mxu0 0.0
        %2104 = vmatprep.subr.mxu0 0.0
        %2105 = vmatpush2.xpose.msra.mxu0 0.0
        %2106 = vmatprep.subr.mxu0 0.0
        %2107 = vmatpush2.xpose.msra.mxu0 0.0
        %2108 = vmatprep.subr.mxu0 0.0
        %2109 = vmatpush2.xpose.msra.mxu0 0.0
        %2110 = vmatprep.subr.mxu0 0.0
        %2111 = vmatpush2.xpose.msra.mxu0 0.0
        %2112 = vmatprep.subr.mxu0 0.0
        %2113 = vmatpush2.xpose.msra.mxu0 0.0
        %2114 = vmatprep.subr.mxu0 0.0
        %2115 = vmatpush2.xpose.msra.mxu0 0.0
        %2116 = vmatprep.subr.mxu0 0.0
        %2117 = vmatpush2.xpose.msra.mxu0 0.0
        %2118 = vmatprep.subr.mxu0 0.0
        %2119 = vmatpush2.xpose.msra.mxu0 0.0
        %2120 = vmatprep.subr.mxu0 0.0
        %2121 = vmatpush2.xpose.msra.mxu0 0.0
        %2122 = vmatprep.subr.mxu0 0.0
        %2123 = vmatpush2.xpose.msra.mxu0 0.0
        %2124 = vmatprep.subr.mxu0 0.0
        %2125 = vmatpush2.xpose.msra.mxu0 0.0
        %2126 = vmatprep.mubr.f32.mxu0 0.0
        %2127 = vmatmul.mubr.f32.gmra.mxu0 %v2058
        %v2128 = vpop.f32.mrf.mxu0
        %v2129 = vadd.f32 0.0, %v2128
        %v2130 = vpop.f32.mrf.mxu0
        %2131 = vdwg.mxu0
        %v2132 = vmul.f32 %v2051, 0.35355338
        %v2133 = vmul.f32 %v2129, 0.35355338
        %v2134 = vsel %vm987, %v2132, -inf
        %2135 = vmax.xlane.f32.xlu0 %v2134
        %v2136 = vpop.xlane.xlu0 %2135
        %v2137 = vsel %vm987, %v2133, -inf
        %2138 = vmax.xlane.f32.xlu0 %v2137
        %v2139 = vpop.xlane.xlu0 %2138
        %v2140 = vsub.f32 %v2132, %v2136
        %v2141 = vsub.f32 %v2133, %v2139
        %v2142 = vmul.f32 %v2140, 1.442695
        %v2143 = vpow.pop %v2142
        %v2144 = vmul.f32 %v2141, 1.442695
        %v2145 = vpow.pop %v2144
        %v2146 = vsel %vm987, %v2143, 0.0
        %2147 = vadd.xlane.f32.xlu0 %v2146
        %v2148 = vpop.xlane.xlu0 %2147
        %v2149 = vsel %vm987, %v2145, 0.0
        %2150 = vadd.xlane.f32.xlu0 %v2149
        %v2151 = vpop.xlane.xlu0 %2150
        %v2152 = vrcp.pop %v2148
        %v2153 = vrcp.pop %v2151
        %v2154 = vmul.f32 %v2143, %v2152
        %v2155 = vmul.f32 %v2145, %v2153
        %2156 = vrot.lane.b32.xlu0 %v979, 104
        %v2157 = vpop.permute.xlu0 %2156
        %v2160 = vsel %vm987, %v2154, 0
        %2162 = vmatprep.subr.mxu0 0.0
        %2163 = vmatpush1.msra.mxu0 0.0
        %2164 = vmatprep.subr.mxu0 0.0
        %2165 = vmatpush1.msra.mxu0 0.0
        %2166 = vmatprep.subr.mxu0 0.0
        %2167 = vmatpush1.msra.mxu0 0.0
        %2168 = vmatprep.subr.mxu0 0.0
        %2169 = vmatpush1.msra.mxu0 0.0
        %2170 = vmatprep.subr.mxu0 0.0
        %2171 = vmatpush1.msra.mxu0 0.0
        %2172 = vmatprep.subr.mxu0 0.0
        %2173 = vmatpush1.msra.mxu0 0.0
        %2174 = vmatprep.subr.mxu0 0.0
        %2175 = vmatpush1.msra.mxu0 0.0
        %2176 = vmatprep.subr.mxu0 0.0
        %2177 = vmatpush1.msra.mxu0 0.0
        %2178 = vmatprep.subr.mxu0 0.0
        %2179 = vmatpush1.msra.mxu0 0.0
        %2180 = vmatprep.subr.mxu0 0.0
        %2181 = vmatpush1.msra.mxu0 0.0
        %2182 = vmatprep.subr.mxu0 0.0
        %2183 = vmatpush1.msra.mxu0 0.0
        %2184 = vmatprep.subr.mxu0 0.0
        %2185 = vmatpush1.msra.mxu0 0.0
        %2186 = vmatprep.subr.mxu0 0.0
        %2187 = vmatpush1.msra.mxu0 0.0
        %2188 = vmatprep.subr.mxu0 0.0
        %2189 = vmatpush1.msra.mxu0 0.0
        %2190 = vmatprep.subr.mxu0 0.0
        %2191 = vmatpush1.msra.mxu0 0.0
        %2192 = vmatprep.subr.mxu0 0.0
        %2193 = vmatpush1.msra.mxu0 %v2157
        %2194 = vmatprep.subr.mxu0 0.0
        %2195 = vmatpush2.msra.mxu0 0.0
        %2196 = vmatprep.subr.mxu0 0.0
        %2197 = vmatpush2.msra.mxu0 0.0
        %2198 = vmatprep.subr.mxu0 0.0
        %2199 = vmatpush2.msra.mxu0 0.0
        %2200 = vmatprep.subr.mxu0 0.0
        %2201 = vmatpush2.msra.mxu0 0.0
        %2202 = vmatprep.subr.mxu0 0.0
        %2203 = vmatpush2.msra.mxu0 0.0
        %2204 = vmatprep.subr.mxu0 0.0
        %2205 = vmatpush2.msra.mxu0 0.0
        %2206 = vmatprep.subr.mxu0 0.0
        %2207 = vmatpush2.msra.mxu0 0.0
        %2208 = vmatprep.subr.mxu0 0.0
        %2209 = vmatpush2.msra.mxu0 0.0
        %2210 = vmatprep.subr.mxu0 0.0
        %2211 = vmatpush2.msra.mxu0 0.0
        %2212 = vmatprep.subr.mxu0 0.0
        %2213 = vmatpush2.msra.mxu0 0.0
        %2214 = vmatprep.subr.mxu0 0.0
        %2215 = vmatpush2.msra.mxu0 0.0
        %2216 = vmatprep.subr.mxu0 0.0
        %2217 = vmatpush2.msra.mxu0 0.0
        %2218 = vmatprep.subr.mxu0 0.0
        %2219 = vmatpush2.msra.mxu0 0.0
        %2220 = vmatprep.subr.mxu0 0.0
        %2221 = vmatpush2.msra.mxu0 0.0
        %2222 = vmatprep.subr.mxu0 0.0
        %2223 = vmatpush2.msra.mxu0 0.0
        %2224 = vmatprep.subr.mxu0 0.0
        %2225 = vmatpush2.msra.mxu0 0.0
        %2226 = vmatprep.mubr.f32.mxu0 0.0
        %2227 = vmatmul.mubr.f32.gmra.mxu0 %v2160
        %v2228 = vpop.f32.mrf.mxu0
        %v2229 = vadd.f32 0.0, %v2228
        %v2230 = vpop.f32.mrf.mxu0
        %2231 = vdwg.mxu0
        %2232 = vrot.lane.b32.xlu0 %v984, 104
        %v2233 = vpop.permute.xlu0 %2232
        %v2236 = vsel %vm987, %v2155, 0
        %2238 = vmatprep.subr.mxu0 0.0
        %2239 = vmatpush1.msra.mxu0 0.0
        %2240 = vmatprep.subr.mxu0 0.0
        %2241 = vmatpush1.msra.mxu0 0.0
        %2242 = vmatprep.subr.mxu0 0.0
        %2243 = vmatpush1.msra.mxu0 0.0
        %2244 = vmatprep.subr.mxu0 0.0
        %2245 = vmatpush1.msra.mxu0 0.0
        %2246 = vmatprep.subr.mxu0 0.0
        %2247 = vmatpush1.msra.mxu0 0.0
        %2248 = vmatprep.subr.mxu0 0.0
        %2249 = vmatpush1.msra.mxu0 0.0
        %2250 = vmatprep.subr.mxu0 0.0
        %2251 = vmatpush1.msra.mxu0 0.0
        %2252 = vmatprep.subr.mxu0 0.0
        %2253 = vmatpush1.msra.mxu0 0.0
        %2254 = vmatprep.subr.mxu0 0.0
        %2255 = vmatpush1.msra.mxu0 0.0
        %2256 = vmatprep.subr.mxu0 0.0
        %2257 = vmatpush1.msra.mxu0 0.0
        %2258 = vmatprep.subr.mxu0 0.0
        %2259 = vmatpush1.msra.mxu0 0.0
        %2260 = vmatprep.subr.mxu0 0.0
        %2261 = vmatpush1.msra.mxu0 0.0
        %2262 = vmatprep.subr.mxu0 0.0
        %2263 = vmatpush1.msra.mxu0 0.0
        %2264 = vmatprep.subr.mxu0 0.0
        %2265 = vmatpush1.msra.mxu0 0.0
        %2266 = vmatprep.subr.mxu0 0.0
        %2267 = vmatpush1.msra.mxu0 0.0
        %2268 = vmatprep.subr.mxu0 0.0
        %2269 = vmatpush1.msra.mxu0 %v2233
        %2270 = vmatprep.subr.mxu0 0.0
        %2271 = vmatpush2.msra.mxu0 0.0
        %2272 = vmatprep.subr.mxu0 0.0
        %2273 = vmatpush2.msra.mxu0 0.0
        %2274 = vmatprep.subr.mxu0 0.0
        %2275 = vmatpush2.msra.mxu0 0.0
        %2276 = vmatprep.subr.mxu0 0.0
        %2277 = vmatpush2.msra.mxu0 0.0
        %2278 = vmatprep.subr.mxu0 0.0
        %2279 = vmatpush2.msra.mxu0 0.0
        %2280 = vmatprep.subr.mxu0 0.0
        %2281 = vmatpush2.msra.mxu0 0.0
        %2282 = vmatprep.subr.mxu0 0.0
        %2283 = vmatpush2.msra.mxu0 0.0
        %2284 = vmatprep.subr.mxu0 0.0
        %2285 = vmatpush2.msra.mxu0 0.0
        %2286 = vmatprep.subr.mxu0 0.0
        %2287 = vmatpush2.msra.mxu0 0.0
        %2288 = vmatprep.subr.mxu0 0.0
        %2289 = vmatpush2.msra.mxu0 0.0
        %2290 = vmatprep.subr.mxu0 0.0
        %2291 = vmatpush2.msra.mxu0 0.0
        %2292 = vmatprep.subr.mxu0 0.0
        %2293 = vmatpush2.msra.mxu0 0.0
        %2294 = vmatprep.subr.mxu0 0.0
        %2295 = vmatpush2.msra.mxu0 0.0
        %2296 = vmatprep.subr.mxu0 0.0
        %2297 = vmatpush2.msra.mxu0 0.0
        %2298 = vmatprep.subr.mxu0 0.0
        %2299 = vmatpush2.msra.mxu0 0.0
        %2300 = vmatprep.subr.mxu0 0.0
        %2301 = vmatpush2.msra.mxu0 0.0
        %2302 = vmatprep.mubr.f32.mxu0 0.0
        %2303 = vmatmul.mubr.f32.gmra.mxu0 %v2236
        %v2304 = vpop.f32.mrf.mxu0
        %v2305 = vadd.f32 0.0, %v2304
        %v2306 = vpop.f32.mrf.mxu0
        %2307 = vdwg.mxu0
        %2310 = vrot.lane.b32.xlu0 %v1564, 8
        %v2311 = vpop.permute.xlu0 %2310
        %2312 = vrot.lane.b32.xlu0 %v1641, 8
        %v2313 = vpop.permute.xlu0 %2312
        %2318 = vrot.lane.b32.xlu0 %v1897, 16
        %v2319 = vpop.permute.xlu0 %2318
        %2320 = vrot.lane.b32.xlu0 %v1973, 16
        %v2321 = vpop.permute.xlu0 %2320
        %2326 = vrot.lane.b32.xlu0 %v2229, 24
        %v2327 = vpop.permute.xlu0 %2326
        %2328 = vrot.lane.b32.xlu0 %v2305, 24
        %v2329 = vpop.permute.xlu0 %2328
        %v2332 = vsel %vm987, %v1234, %v2311
        %v2333 = vsel %vm987, %v1307, %v2313
        %vm2334 = vcmask 130048
        %v2335 = vsel %vm2334, %v2332, %v2319
        %v2336 = vsel %vm2334, %v2333, %v2321
        %vm2337 = vcmask 195584
        %v2338 = vsel %vm2337, %v2335, %v2327
        %v2339 = vsel %vm2337, %v2336, %v2329
        %v2340 = vld [vmem:[%s620] sm:$0xff]
        %v2341 = vld [vmem:[%s620 + $0x8] sm:$0xff]
        %v2342 = vld [vmem:[%s620 + $0x10] sm:$0xff]
        %v2343 = vld [vmem:[%s620 + $0x18] sm:$0xff]
        %v2344 = vld [vmem:[%s623] sm:$0x1]
        %v2346 = vlaneseq
        %v2347 = vshrl.u32 %v2346, 7
        %v2348 = vsub.s32 0, %v2347
        %v2349 = vrot.slane %v2344, %v2348
        %v2352 = vsel %vm664, %v2338, 0
        %v2355 = vsel %vm664, %v2339, 0
        %v2358 = vsel %vm664, %v2340, 0
        %v2361 = vsel %vm664, %v2341, 0
        %v2364 = vsel %vm664, %v2342, 0
        %v2367 = vsel %vm664, %v2343, 0
        %2369 = vmatprep.subr.mxu0 0.0
        %2370 = vmatpush1.xpose.msra.mxu0 0.0
        %2371 = vmatprep.subr.mxu0 0.0
        %2372 = vmatpush1.xpose.msra.mxu0 0.0
        %2373 = vmatprep.subr.mxu0 0.0
        %2374 = vmatpush1.xpose.msra.mxu0 0.0
        %2375 = vmatprep.subr.mxu0 0.0
        %2376 = vmatpush1.xpose.msra.mxu0 0.0
        %2377 = vmatprep.subr.mxu0 0.0
        %2378 = vmatpush1.xpose.msra.mxu0 0.0
        %2379 = vmatprep.subr.mxu0 0.0
        %2380 = vmatpush1.xpose.msra.mxu0 0.0
        %2381 = vmatprep.subr.mxu0 0.0
        %2382 = vmatpush1.xpose.msra.mxu0 0.0
        %2383 = vmatprep.subr.mxu0 0.0
        %2384 = vmatpush1.xpose.msra.mxu0 0.0
        %2385 = vmatprep.subr.mxu0 0.0
        %2386 = vmatpush1.xpose.msra.mxu0 0.0
        %2387 = vmatprep.subr.mxu0 0.0
        %2388 = vmatpush1.xpose.msra.mxu0 0.0
        %2389 = vmatprep.subr.mxu0 0.0
        %2390 = vmatpush1.xpose.msra.mxu0 0.0
        %2391 = vmatprep.subr.mxu0 0.0
        %2392 = vmatpush1.xpose.msra.mxu0 0.0
        %2393 = vmatprep.subr.mxu0 0.0
        %2394 = vmatpush1.xpose.msra.mxu0 %v2367
        %2395 = vmatprep.subr.mxu0 0.0
        %2396 = vmatpush1.xpose.msra.mxu0 %v2364
        %2397 = vmatprep.subr.mxu0 0.0
        %2398 = vmatpush1.xpose.msra.mxu0 %v2361
        %2399 = vmatprep.subr.mxu0 0.0
        %2400 = vmatpush1.xpose.msra.mxu0 %v2358
        %2401 = vmatprep.subr.mxu0 0.0
        %2402 = vmatpush2.xpose.msra.mxu0 0.0
        %2403 = vmatprep.subr.mxu0 0.0
        %2404 = vmatpush2.xpose.msra.mxu0 0.0
        %2405 = vmatprep.subr.mxu0 0.0
        %2406 = vmatpush2.xpose.msra.mxu0 0.0
        %2407 = vmatprep.subr.mxu0 0.0
        %2408 = vmatpush2.xpose.msra.mxu0 0.0
        %2409 = vmatprep.subr.mxu0 0.0
        %2410 = vmatpush2.xpose.msra.mxu0 0.0
        %2411 = vmatprep.subr.mxu0 0.0
        %2412 = vmatpush2.xpose.msra.mxu0 0.0
        %2413 = vmatprep.subr.mxu0 0.0
        %2414 = vmatpush2.xpose.msra.mxu0 0.0
        %2415 = vmatprep.subr.mxu0 0.0
        %2416 = vmatpush2.xpose.msra.mxu0 0.0
        %2417 = vmatprep.subr.mxu0 0.0
        %2418 = vmatpush2.xpose.msra.mxu0 0.0
        %2419 = vmatprep.subr.mxu0 0.0
        %2420 = vmatpush2.xpose.msra.mxu0 0.0
        %2421 = vmatprep.subr.mxu0 0.0
        %2422 = vmatpush2.xpose.msra.mxu0 0.0
        %2423 = vmatprep.subr.mxu0 0.0
        %2424 = vmatpush2.xpose.msra.mxu0 0.0
        %2425 = vmatprep.subr.mxu0 0.0
        %2426 = vmatpush2.xpose.msra.mxu0 0.0
        %2427 = vmatprep.subr.mxu0 0.0
        %2428 = vmatpush2.xpose.msra.mxu0 0.0
        %2429 = vmatprep.subr.mxu0 0.0
        %2430 = vmatpush2.xpose.msra.mxu0 0.0
        %2431 = vmatprep.subr.mxu0 0.0
        %2432 = vmatpush2.xpose.msra.mxu0 0.0
        %2433 = vmatprep.mubr.f32.mxu0 0.0
        %2434 = vmatmul.mubr.f32.gmra.mxu0 %v2352
        %v2435 = vpop.f32.mrf.mxu0
        %v2436 = vadd.f32 %v2349, %v2435
        %v2437 = vpop.f32.mrf.mxu0
        %2438 = vmatprep.mubr.f32.mxu0 0.0
        %2439 = vmatmul.mubr.f32.gmra.mxu0 %v2355
        %v2440 = vpop.f32.mrf.mxu0
        %v2441 = vadd.f32 %v2349, %v2440
        %v2442 = vpop.f32.mrf.mxu0
        %2443 = vdwg.mxu0
        %v2444 = vadd.f32 %v660, %v2436
        %v2445 = vadd.f32 %v661, %v2441
        %v2446 = vld [vmem:[%s626] sm:$0x1]
        %v2447 = vld [vmem:[%s629] sm:$0x1]
        %v2448 = vsel %vm664, %v2444, 0.0
        %2449 = vadd.xlane.f32.xlu0 %v2448
        %v2450 = vpop.xlane.xlu0 %2449
        %v2451 = vsel %vm664, %v2445, 0.0
        %2452 = vadd.xlane.f32.xlu0 %v2451
        %v2453 = vpop.xlane.xlu0 %2452
        %v2454 = vmul.f32 %v2450, %v671
        %v2455 = vmul.f32 %v2453, %v671
        %v2456 = vsub.f32 %v2444, %v2454
        %v2457 = vsub.f32 %v2445, %v2455
        %v2458 = vmul.f32 %v2456, %v2456
        %v2459 = vmul.f32 %v2457, %v2457
        %v2460 = vsel %vm664, %v2458, 0.0
        %2461 = vadd.xlane.f32.xlu0 %v2460
        %v2462 = vpop.xlane.xlu0 %2461
        %v2463 = vsel %vm664, %v2459, 0.0
        %2464 = vadd.xlane.f32.xlu0 %v2463
        %v2465 = vpop.xlane.xlu0 %2464
        %v2466 = vmul.f32 %v2462, %v671
        %v2467 = vmul.f32 %v2465, %v671
        %v2468 = vadd.f32 %v2466, 1e-05
        %v2469 = vadd.f32 %v2467, 1e-05
        %v2470 = vrsqrt.pop %v2468
        %v2471 = vrsqrt.pop %v2469
        %v2473 = vlaneseq
        %v2474 = vshrl.u32 %v2473, 7
        %v2475 = vsub.s32 0, %v2474
        %v2476 = vrot.slane %v2446, %v2475
        %v2478 = vmul.f32 %v2470, %v2476
        %v2479 = vmul.f32 %v2471, %v2476
        %v2480 = vmul.f32 %v2456, %v2478
        %v2481 = vmul.f32 %v2457, %v2479
        %v2483 = vlaneseq
        %v2484 = vshrl.u32 %v2483, 7
        %v2485 = vsub.s32 0, %v2484
        %v2486 = vrot.slane %v2447, %v2485
        %v2488 = vadd.f32 %v2480, %v2486
        %v2489 = vadd.f32 %v2481, %v2486
        %v2490 = vld [vmem:[%s634] sm:$0xff]
        %v2491 = vld [vmem:[%s634 + $0x8] sm:$0xff]
        %v2492 = vld [vmem:[%s634 + $0x10] sm:$0xff]
        %v2493 = vld [vmem:[%s634 + $0x18] sm:$0xff]
        %v2494 = vld [vmem:[%s634 + $0x20] sm:$0xff]
        %v2495 = vld [vmem:[%s634 + $0x28] sm:$0xff]
        %v2496 = vld [vmem:[%s634 + $0x30] sm:$0xff]
        %v2497 = vld [vmem:[%s634 + $0x38] sm:$0xff]
        %v2498 = vld [vmem:[%s634 + $0x40] sm:$0xff]
        %v2499 = vld [vmem:[%s634 + $0x48] sm:$0xff]
        %v2500 = vld [vmem:[%s634 + $0x50] sm:$0xff]
        %v2501 = vld [vmem:[%s634 + $0x58] sm:$0xff]
        %v2502 = vld [vmem:[%s634 + $0x60] sm:$0xff]
        %v2503 = vld [vmem:[%s634 + $0x68] sm:$0xff]
        %v2504 = vld [vmem:[%s634 + $0x70] sm:$0xff]
        %v2505 = vld [vmem:[%s634 + $0x78] sm:$0xff]
        %v2506 = vld [vmem:[%s637] sm:$0x1]
        %v2508 = vlaneseq
        %v2509 = vshrl.u32 %v2508, 7
        %v2510 = vsub.s32 0, %v2509
        %v2511 = vrot.slane %v2506, %v2510
        %v2514 = vsel %vm664, %v2488, 0
        %v2517 = vsel %vm664, %v2489, 0
        %v2520 = vsel %vm664, %v2490, 0
        %v2523 = vsel %vm664, %v2491, 0
        %v2526 = vsel %vm664, %v2492, 0
        %v2529 = vsel %vm664, %v2493, 0
        %v2532 = vsel %vm664, %v2494, 0
        %v2535 = vsel %vm664, %v2495, 0
        %v2538 = vsel %vm664, %v2496, 0
        %v2541 = vsel %vm664, %v2497, 0
        %v2544 = vsel %vm664, %v2498, 0
        %v2547 = vsel %vm664, %v2499, 0
        %v2550 = vsel %vm664, %v2500, 0
        %v2553 = vsel %vm664, %v2501, 0
        %v2556 = vsel %vm664, %v2502, 0
        %v2559 = vsel %vm664, %v2503, 0
        %v2562 = vsel %vm664, %v2504, 0
        %v2565 = vsel %vm664, %v2505, 0
        %2567 = vmatprep.subr.mxu0 0.0
        %2568 = vmatpush1.xpose.msra.mxu0 %v2565
        %2569 = vmatprep.subr.mxu0 0.0
        %2570 = vmatpush1.xpose.msra.mxu0 %v2562
        %2571 = vmatprep.subr.mxu0 0.0
        %2572 = vmatpush1.xpose.msra.mxu0 %v2559
        %2573 = vmatprep.subr.mxu0 0.0
        %2574 = vmatpush1.xpose.msra.mxu0 %v2556
        %2575 = vmatprep.subr.mxu0 0.0
        %2576 = vmatpush1.xpose.msra.mxu0 %v2553
        %2577 = vmatprep.subr.mxu0 0.0
        %2578 = vmatpush1.xpose.msra.mxu0 %v2550
        %2579 = vmatprep.subr.mxu0 0.0
        %2580 = vmatpush1.xpose.msra.mxu0 %v2547
        %2581 = vmatprep.subr.mxu0 0.0
        %2582 = vmatpush1.xpose.msra.mxu0 %v2544
        %2583 = vmatprep.subr.mxu0 0.0
        %2584 = vmatpush1.xpose.msra.mxu0 %v2541
        %2585 = vmatprep.subr.mxu0 0.0
        %2586 = vmatpush1.xpose.msra.mxu0 %v2538
        %2587 = vmatprep.subr.mxu0 0.0
        %2588 = vmatpush1.xpose.msra.mxu0 %v2535
        %2589 = vmatprep.subr.mxu0 0.0
        %2590 = vmatpush1.xpose.msra.mxu0 %v2532
        %2591 = vmatprep.subr.mxu0 0.0
        %2592 = vmatpush1.xpose.msra.mxu0 %v2529
        %2593 = vmatprep.subr.mxu0 0.0
        %2594 = vmatpush1.xpose.msra.mxu0 %v2526
        %2595 = vmatprep.subr.mxu0 0.0
        %2596 = vmatpush1.xpose.msra.mxu0 %v2523
        %2597 = vmatprep.subr.mxu0 0.0
        %2598 = vmatpush1.xpose.msra.mxu0 %v2520
        %2599 = vmatprep.subr.mxu0 0.0
        %2600 = vmatpush2.xpose.msra.mxu0 0.0
        %2601 = vmatprep.subr.mxu0 0.0
        %2602 = vmatpush2.xpose.msra.mxu0 0.0
        %2603 = vmatprep.subr.mxu0 0.0
        %2604 = vmatpush2.xpose.msra.mxu0 0.0
        %2605 = vmatprep.subr.mxu0 0.0
        %2606 = vmatpush2.xpose.msra.mxu0 0.0
        %2607 = vmatprep.subr.mxu0 0.0
        %2608 = vmatpush2.xpose.msra.mxu0 0.0
        %2609 = vmatprep.subr.mxu0 0.0
        %2610 = vmatpush2.xpose.msra.mxu0 0.0
        %2611 = vmatprep.subr.mxu0 0.0
        %2612 = vmatpush2.xpose.msra.mxu0 0.0
        %2613 = vmatprep.subr.mxu0 0.0
        %2614 = vmatpush2.xpose.msra.mxu0 0.0
        %2615 = vmatprep.subr.mxu0 0.0
        %2616 = vmatpush2.xpose.msra.mxu0 0.0
        %2617 = vmatprep.subr.mxu0 0.0
        %2618 = vmatpush2.xpose.msra.mxu0 0.0
        %2619 = vmatprep.subr.mxu0 0.0
        %2620 = vmatpush2.xpose.msra.mxu0 0.0
        %2621 = vmatprep.subr.mxu0 0.0
        %2622 = vmatpush2.xpose.msra.mxu0 0.0
        %2623 = vmatprep.subr.mxu0 0.0
        %2624 = vmatpush2.xpose.msra.mxu0 0.0
        %2625 = vmatprep.subr.mxu0 0.0
        %2626 = vmatpush2.xpose.msra.mxu0 0.0
        %2627 = vmatprep.subr.mxu0 0.0
        %2628 = vmatpush2.xpose.msra.mxu0 0.0
        %2629 = vmatprep.subr.mxu0 0.0
        %2630 = vmatpush2.xpose.msra.mxu0 0.0
        %2631 = vmatprep.mubr.f32.mxu0 0.0
        %2632 = vmatmul.mubr.f32.gmra.mxu0 %v2514
        %v2633 = vpop.f32.mrf.mxu0
        %v2634 = vadd.f32 %v2511, %v2633
        %v2635 = vpop.f32.mrf.mxu0
        %2636 = vmatprep.mubr.f32.mxu0 0.0
        %2637 = vmatmul.mubr.f32.gmra.mxu0 %v2517
        %v2638 = vpop.f32.mrf.mxu0
        %v2639 = vadd.f32 %v2511, %v2638
        %v2640 = vpop.f32.mrf.mxu0
        %2641 = vdwg.mxu0
        %v2642 = vmul.f32 %v2634, 0.5
        %v2643 = vmul.f32 %v2639, 0.5
        %v2644 = vmul.f32 %v2634, 0.044715
        %v2645 = vmul.f32 %v2639, 0.044715
        %v2646 = vmul.f32 %v2644, %v2634
        %v2647 = vmul.f32 %v2645, %v2639
        %v2648 = vmul.f32 %v2646, %v2634
        %v2649 = vmul.f32 %v2647, %v2639
        %v2650 = vadd.f32 %v2634, %v2648
        %v2651 = vadd.f32 %v2639, %v2649
        %v2652 = vmul.f32 %v2650, 0.7978846
        %v2653 = vmul.f32 %v2651, 0.7978846
        %v2654 = vtanh.pop %v2652
        %v2655 = vtanh.pop %v2653
        %v2656 = vadd.f32 %v2654, 1.0
        %v2657 = vadd.f32 %v2655, 1.0
        %v2658 = vmul.f32 %v2642, %v2656
        %v2659 = vmul.f32 %v2643, %v2657
        %v2660 = vld [vmem:[%s642] sm:$0xff]
        %v2661 = vld [vmem:[%s642 + $0x8] sm:$0xff]
        %v2662 = vld [vmem:[%s642 + $0x10] sm:$0xff]
        %v2663 = vld [vmem:[%s642 + $0x18] sm:$0xff]
        %v2664 = vld [vmem:[%s645] sm:$0x1]
        %v2666 = vlaneseq
        %v2667 = vshrl.u32 %v2666, 7
        %v2668 = vsub.s32 0, %v2667
        %v2669 = vrot.slane %v2664, %v2668
        %2671 = vmatprep.subr.mxu0 0.0
        %2672 = vmatpush1.xpose.msra.mxu0 0.0
        %2673 = vmatprep.subr.mxu0 0.0
        %2674 = vmatpush1.xpose.msra.mxu0 0.0
        %2675 = vmatprep.subr.mxu0 0.0
        %2676 = vmatpush1.xpose.msra.mxu0 0.0
        %2677 = vmatprep.subr.mxu0 0.0
        %2678 = vmatpush1.xpose.msra.mxu0 0.0
        %2679 = vmatprep.subr.mxu0 0.0
        %2680 = vmatpush1.xpose.msra.mxu0 0.0
        %2681 = vmatprep.subr.mxu0 0.0
        %2682 = vmatpush1.xpose.msra.mxu0 0.0
        %2683 = vmatprep.subr.mxu0 0.0
        %2684 = vmatpush1.xpose.msra.mxu0 0.0
        %2685 = vmatprep.subr.mxu0 0.0
        %2686 = vmatpush1.xpose.msra.mxu0 0.0
        %2687 = vmatprep.subr.mxu0 0.0
        %2688 = vmatpush1.xpose.msra.mxu0 0.0
        %2689 = vmatprep.subr.mxu0 0.0
        %2690 = vmatpush1.xpose.msra.mxu0 0.0
        %2691 = vmatprep.subr.mxu0 0.0
        %2692 = vmatpush1.xpose.msra.mxu0 0.0
        %2693 = vmatprep.subr.mxu0 0.0
        %2694 = vmatpush1.xpose.msra.mxu0 0.0
        %2695 = vmatprep.subr.mxu0 0.0
        %2696 = vmatpush1.xpose.msra.mxu0 %v2663
        %2697 = vmatprep.subr.mxu0 0.0
        %2698 = vmatpush1.xpose.msra.mxu0 %v2662
        %2699 = vmatprep.subr.mxu0 0.0
        %2700 = vmatpush1.xpose.msra.mxu0 %v2661
        %2701 = vmatprep.subr.mxu0 0.0
        %2702 = vmatpush1.xpose.msra.mxu0 %v2660
        %2703 = vmatprep.subr.mxu0 0.0
        %2704 = vmatpush2.xpose.msra.mxu0 0.0
        %2705 = vmatprep.subr.mxu0 0.0
        %2706 = vmatpush2.xpose.msra.mxu0 0.0
        %2707 = vmatprep.subr.mxu0 0.0
        %2708 = vmatpush2.xpose.msra.mxu0 0.0
        %2709 = vmatprep.subr.mxu0 0.0
        %2710 = vmatpush2.xpose.msra.mxu0 0.0
        %2711 = vmatprep.subr.mxu0 0.0
        %2712 = vmatpush2.xpose.msra.mxu0 0.0
        %2713 = vmatprep.subr.mxu0 0.0
        %2714 = vmatpush2.xpose.msra.mxu0 0.0
        %2715 = vmatprep.subr.mxu0 0.0
        %2716 = vmatpush2.xpose.msra.mxu0 0.0
        %2717 = vmatprep.subr.mxu0 0.0
        %2718 = vmatpush2.xpose.msra.mxu0 0.0
        %2719 = vmatprep.subr.mxu0 0.0
        %2720 = vmatpush2.xpose.msra.mxu0 0.0
        %2721 = vmatprep.subr.mxu0 0.0
        %2722 = vmatpush2.xpose.msra.mxu0 0.0
        %2723 = vmatprep.subr.mxu0 0.0
        %2724 = vmatpush2.xpose.msra.mxu0 0.0
        %2725 = vmatprep.subr.mxu0 0.0
        %2726 = vmatpush2.xpose.msra.mxu0 0.0
        %2727 = vmatprep.subr.mxu0 0.0
        %2728 = vmatpush2.xpose.msra.mxu0 0.0
        %2729 = vmatprep.subr.mxu0 0.0
        %2730 = vmatpush2.xpose.msra.mxu0 0.0
        %2731 = vmatprep.subr.mxu0 0.0
        %2732 = vmatpush2.xpose.msra.mxu0 0.0
        %2733 = vmatprep.subr.mxu0 0.0
        %2734 = vmatpush2.xpose.msra.mxu0 0.0
        %2735 = vmatprep.mubr.f32.mxu0 0.0
        %2736 = vmatmul.mubr.f32.gmra.mxu0 %v2658
        %v2737 = vpop.f32.mrf.mxu0
        %v2738 = vadd.f32 %v2669, %v2737
        %v2739 = vpop.f32.mrf.mxu0
        %2740 = vmatprep.mubr.f32.mxu0 0.0
        %2741 = vmatmul.mubr.f32.gmra.mxu0 %v2659
        %v2742 = vpop.f32.mrf.mxu0
        %v2743 = vadd.f32 %v2669, %v2742
        %v2744 = vpop.f32.mrf.mxu0
        %2745 = vdwg.mxu0
        %v2746 = vadd.f32 %v2444, %v2738
        %v2747 = vadd.f32 %v2445, %v2743
        %2748 = vst.msk [vmem:[#allocation2] sm:$0xff] %vm664, %v2746
        %2749 = vst.msk [vmem:[#allocation2 + $0x8] sm:$0xff] %vm664, %v2747
        %p2750 = scmp.eq.s32.totalorder %s30, 1
        // Predicated region
        $region77: #{transformer_encoder_forward.1} parent=71 // pred_check
          %p2751 = pneg %p2750
        $region78: #{transformer_encoder_forward.1} parent=71 // pred_check_branch
          %2753 = sbr.rel (%p2751) target = $region80
        $region79: #{transformer_encoder_forward.1} parent=71 // pred_region
          %2754 = vst.msk [vmem:[#allocation3] sm:$0xff] %vm664, %v2746
          %2755 = vst.msk [vmem:[#allocation3 + $0x8] sm:$0xff] %vm664, %v2747
        $region80: #{transformer_encoder_forward.1} parent=71 // pred_fallthru
          _
        // Predicated region
        $region81: #{transformer_encoder_forward.1} parent=71 // pred_check
          %p2756 = pneg %p393
        $region82: #{transformer_encoder_forward.1} parent=71 // pred_check_branch
          %2758 = sbr.rel (%p2756) target = $region84
        $region83: #{transformer_encoder_forward.1} parent=71 // pred_region
          %s2759 = smul.u32 2, %s29
          %s2761 = ssub.s32 256, 256
          %2762 = vsyncadd [#allocation4], %s2761
          %s2763 = smul.addr %s2759, 128
          %s2764 = scalar_lea.hbm %s13, %s2763
          %s2765 = sshll.u32 [#allocation3], 4
          %s2766 = int_to_ptr.vmem [resolvable:$true] %s2765
          %2771 = dma.vmem_to_hbm [thread:$0]  %s2766, 256, %s2764, [#allocation4], 128, 128, 8
        $region84: #{transformer_encoder_forward.1} parent=71 // pred_fallthru
          _
        // Predicated region
        $region85: #{transformer_encoder_forward.1} parent=71 // pred_check
          %p2772 = pneg %p393
        $region86: #{transformer_encoder_forward.1} parent=71 // pred_check_branch
          %2774 = sbr.rel (%p2772) target = $region88
        $region87: #{transformer_encoder_forward.1} parent=71 // pred_region
          %2775 = dma.done [#allocation4], 256
        $region88: #{transformer_encoder_forward.1} parent=71 // pred_fallthru
          _
      $region72: #{transformer_encoder_forward.1} parent=5 // pred_fallthru
        _
      %p2776 = scmp.le.s32.totalorder 2, %s20
      // Predicated region
      $region89: #{transformer_encoder_forward.1} parent=5 // pred_check
        %p2777 = pneg %p2776
      $region90: #{transformer_encoder_forward.1} parent=5 // pred_check_branch
        %2779 = sbr.rel (%p2777) target = $region92
      $region91: #{transformer_encoder_forward.1} parent=5 // pred_region
        %s2780 = ssub.s32 %s20, 2
      $region92: #{transformer_encoder_forward.1} parent=5 // pred_fallthru
        _
    $region6: #{transformer_encoder_forward.1} parent=1 // loop_footer
      %s24 = sadd.s32 1, %s20
    $region7: #{transformer_encoder_forward.1} parent=1 // loop_footer_branch
      %19 = sbr.rel target = $region3
    $region8: #{transformer_encoder_forward.1} parent=1 // loop_exit
      _
    %2781 = vsyncpa [#allocation4], 1
    %s2782 = scalar_lea.sflag [#allocation4], 1
    %2783 = vsyncpa %s2782, 1

</llo_original>
